<compile_context>
chip_gen: v7x
topology: tpu7x:2x2x1
jax: 0.10.0
libtpu: 0.0.40
codegen_flags: <defaults>
</compile_context>

<pallas_src>
import math
import jax
import jax.numpy as jnp
from jax import lax
from jax.experimental import pallas as pl
from jax.experimental.pallas import tpu as pltpu


def make_attention_kernel(num_heads, head_dim, C, N, tq, single_tile, exp_dtype, q_align):
    def attend(q_cn, k_cn, v_cn):
        """Multi-head attention on channel-major f32 slabs.

        q_cn: (C, tq), k_cn / v_cn: (C, N), all f32.  Returns (C, tq) f32.
        Heads ride a leading batch axis of a single dot_general (MXU stays busy instead of
        draining per 8-deep head contraction).  f32 reshapes split the sublane axis at
        head_dim(=8)-row boundaries, i.e. exactly at (8,128) tile boundaries.
        """
        tq_ = q_cn.shape[1]
        q3 = q_cn.reshape(num_heads, head_dim, tq_).astype(jnp.bfloat16)   # (nh, hd, tq)
        k3 = k_cn.reshape(num_heads, head_dim, N).astype(jnp.bfloat16)     # (nh, hd, N)
        v3 = v_cn.reshape(num_heads, head_dim, N).astype(jnp.bfloat16)     # (nh, hd, N)

        # Scores (scale already folded into Wq/bq): batch over heads, contract head_dim.
        s = jnp.einsum("hdq,hdk->hqk", q3, k3,
                       preferred_element_type=jnp.float32)                 # (nh, tq, N) f32
        m = jnp.max(s, axis=-1, keepdims=True)                             # (nh, tq, 1)
        # bf16 exp on v6e/v7x (bf16 EUP path), f32 elsewhere.
        p = jnp.exp((s - m).astype(exp_dtype))                             # (nh, tq, N)
        denom = jnp.sum(p.astype(jnp.float32), axis=-1)                    # (nh, tq)  f32
        p_mx = p if p.dtype == jnp.bfloat16 else p.astype(jnp.bfloat16)

        # PV in transposed orientation -> (nh, hd, tq); normalize AFTER the matmul
        # (C*tq multiplies instead of nh*tq*N).
        pv = jnp.einsum("hdk,hqk->hdq", v3, p_mx,
                        preferred_element_type=jnp.float32)                # (nh, hd, tq) f32
        recip = pl.reciprocal(denom, approx=True).reshape(num_heads, 1, tq_)
        return (pv * recip).reshape(C, tq_)                                # (C, tq) f32

    def project_out(attn_ct, wo, bo):
        return jnp.dot(wo, attn_ct.astype(jnp.bfloat16),
                       preferred_element_type=jnp.float32) + bo            # (C, tq) f32

    if single_tile:
        # Small-N fast path: one grid step per batch element, no persistent scratch, no
        # cross-step carry -> both grid axes are safe to mark 'parallel' (v7x megacore).
        def kernel(x_ref, wqkv_ref, bqkv_ref, wo_ref, bo_ref, o_ref):
            x_cn = x_ref[0]                                                 # (C, N) f32
            qkv = (jnp.dot(wqkv_ref[...], x_cn.astype(jnp.bfloat16),
                           preferred_element_type=jnp.float32)
                   + bqkv_ref[...])                                         # (3C, N) f32
            attn = attend(qkv[0:C], qkv[C:2 * C], qkv[2 * C:3 * C])
            o_ref[0] = project_out(attn, wo_ref[...], bo_ref[...]) + x_cn
        return kernel

    # Tiled-query path for larger N: fused QKV computed once per batch element at qi == 0 and
    # kept resident in VMEM scratch (q axis must stay 'arbitrary' because of this carry).
    def kernel(x_ref, wqkv_ref, bqkv_ref, wo_ref, bo_ref, o_ref, qkv_sc):
        qi = pl.program_id(1)

        @pl.when(qi == 0)
        def _():
            qkv_sc[...] = (jnp.dot(wqkv_ref[...], x_ref[0].astype(jnp.bfloat16),
                                   preferred_element_type=jnp.float32)
                           + bqkv_ref[...])                                 # (3C, N) f32

        q_off = pl.multiple_of(qi * tq, q_align)
        attn = attend(qkv_sc[0:C, pl.ds(q_off, tq)],
                      qkv_sc[C:2 * C, :],
                      qkv_sc[2 * C:3 * C, :])
        o_ref[0] = (project_out(attn, wo_ref[...], bo_ref[...])
                    + x_ref[0, :, pl.ds(q_off, tq)])                        # residual

    return kernel


def attention_forward(x_nchw, params, *, num_heads, head_dim, tq=None):
    """Self-attention forward, semantics of Attention.forward(x) with default config."""
    B, C, H, W = x_nchw.shape
    N = H * W
    assert C == num_heads * head_dim

    # Channel-major layout: (B, C, H, W) -> (B, C, N); no transpose (N rides the lanes).
    x_cn = x_nchw.reshape(B, C, N).astype(jnp.float32)

    # Fold softmax scale into Wq/bq; fuse QKV weights (PyTorch Linear weight is (out, in),
    # exactly the orientation the (C, N)-layout kernel consumes).
    scale = 1.0 / math.sqrt(head_dim)
    wqkv = jnp.concatenate([params["wq"] * scale, params["wk"], params["wv"]],
                           axis=0).astype(jnp.bfloat16)                      # (3C, C)
    bqkv = jnp.concatenate([params["bq"] * scale, params["bk"], params["bv"]],
                           axis=0).reshape(3 * C, 1).astype(jnp.float32)     # (3C, 1)
    wo = params["wo"].astype(jnp.bfloat16)                                   # (C, C)
    bo = params["bo"].reshape(C, 1).astype(jnp.float32)                      # (C, 1)

    # Small N (including the tested N=256): one query tile = whole sequence, grid=(B, 1).
    if tq is None:
        tq = N if N <= 512 else 128
    assert N % tq == 0
    nq = N // tq
    single_tile = (nq == 1)
    q_align = 128 if tq % 128 == 0 else 8

    # bf16 exp only on chips with a bf16 EUP path (v6e / v7x); f32 on v5e and older.
    kind = ""
    try:
        kind = jax.devices()[0].device_kind.lower()
    except Exception:
        pass
    exp_dtype = jnp.bfloat16 if ("v6" in kind or "v7" in kind) else jnp.float32

    # Explicit VMEM budget with headroom for the VMEM-resident softmax intermediates.
    est = (2 * C * N * 4 + 2 * C * tq * 4
           + 2 * (3 * C * C * 2 + 3 * C * 4 + C * C * 2 + C * 4)
           + (0 if single_tile else 3 * C * N * 4)
           + num_heads * tq * N * 6 + 3 * C * N * 4)
    vmem_limit = int(min(max(est * 3 // 2 + (4 << 20), 32 << 20), 96 << 20))

    flops = B * (8 * C * C * N + 4 * C * N * N)
    transcendentals = B * num_heads * N * N
    bytes_accessed = 2 * B * C * N * 4 + 4 * C * C * 2 + 4 * C * 4

    scratch_shapes = [] if single_tile else [pltpu.VMEM((3 * C, N), jnp.float32)]
    dim_sem = ("parallel", "parallel") if single_tile else ("parallel", "arbitrary")

    def run(exp_dt):
        kernel = make_attention_kernel(num_heads, head_dim, C, N, tq,
                                       single_tile, exp_dt, q_align)
        return pl.pallas_call(
            kernel,
            out_shape=jax.ShapeDtypeStruct((B, C, N), jnp.float32),
            grid_spec=pltpu.PrefetchScalarGridSpec(
                num_scalar_prefetch=0,
                grid=(B, nq),
                in_specs=[
                    pl.BlockSpec((1, C, N), lambda b, q: (b, 0, 0)),      # x (channel-major)
                    pl.BlockSpec((3 * C, C), lambda b, q: (0, 0)),        # fused Wqkv (bf16)
                    pl.BlockSpec((3 * C, 1), lambda b, q: (0, 0)),        # fused bias (f32)
                    pl.BlockSpec((C, C), lambda b, q: (0, 0)),            # Wo (bf16)
                    pl.BlockSpec((C, 1), lambda b, q: (0, 0)),            # bo (f32)
                ],
                out_specs=pl.BlockSpec((1, C, tq), lambda b, q: (b, 0, q)),
                scratch_shapes=scratch_shapes,
            ),
            compiler_params=pltpu.CompilerParams(
                dimension_semantics=dim_sem,
                vmem_limit_bytes=vmem_limit),
            cost_estimate=pl.CostEstimate(flops=flops,
                                          transcendentals=transcendentals,
                                          bytes_accessed=bytes_accessed),
        )(x_cn, wqkv, bqkv, wo, bo)

    if exp_dtype == jnp.float32:
        out_cn = run(jnp.float32)
    else:
        try:
            out_cn = run(exp_dtype)
        except Exception:
            # Fallback for toolchains/chips without a bf16 exp lowering.
            out_cn = run(jnp.float32)

    # return_shape='1D': (B, C, N) -> (B, N, C)
    return jnp.transpose(out_cn, (0, 2, 1))


def attention_reference(x_nchw, params, *, num_heads, head_dim):
    """Pure-JAX f32 reference mirroring the PyTorch module."""
    B, C, H, W = x_nchw.shape
    N = H * W
    x = jnp.transpose(x_nchw.reshape(B, C, N), (0, 2, 1))              # (B, N, C)
    q = x @ params["wq"].T + params["bq"]
    k = x @ params["wk"].T + params["bk"]
    v = x @ params["wv"].T + params["bv"]

    def split(t):
        return jnp.transpose(t.reshape(B, N, num_heads, head_dim), (0, 2, 1, 3))

    q, k, v = split(q), split(k), split(v)
    s = jnp.einsum("bhqd,bhkd->bhqk", q, k) / math.sqrt(head_dim)
    p = jax.nn.softmax(s, axis=-1)
    o = jnp.einsum("bhqk,bhkd->bhqd", p, v)
    o = jnp.transpose(o, (0, 2, 1, 3)).reshape(B, N, C)
    o = o @ params["wo"].T + params["bo"]
    return o + x                                                        # residual, '1D'


def init_params(key, C):
    ks = jax.random.split(key, 8)
    scale = 1.0 / math.sqrt(C)
    return {
        "wq": jax.random.uniform(ks[0], (C, C), jnp.float32, -scale, scale),
        "wk": jax.random.uniform(ks[1], (C, C), jnp.float32, -scale, scale),
        "wv": jax.random.uniform(ks[2], (C, C), jnp.float32, -scale, scale),
        "wo": jax.random.uniform(ks[3], (C, C), jnp.float32, -scale, scale),
        "bq": jax.random.uniform(ks[4], (C,), jnp.float32, -scale, scale),
        "bk": jax.random.uniform(ks[5], (C,), jnp.float32, -scale, scale),
        "bv": jax.random.uniform(ks[6], (C,), jnp.float32, -scale, scale),
        "bo": jax.random.uniform(ks[7], (C,), jnp.float32, -scale, scale),
    }


if __name__ == "__main__":
    # Small config consistent with the module: embedding_dimension == C, head_dim divides C.
    B, C, H, W = 2, 32, 16, 16
    head_dim = 8
    num_heads = C // head_dim

    key = jax.random.PRNGKey(0)
    k_x, k_p = jax.random.split(key)
    x = jax.random.normal(k_x, (B, C, H, W), jnp.float32)
    params = init_params(k_p, C)

    # TODO(synk): cross-attention (context/attention_mask), GroupNorm and dropout paths are not
    # exercised: module defaults are self-attention, groupnorm_groups=None, dropout=0.0.

    out = attention_forward(x, params, num_heads=num_heads, head_dim=head_dim)
    out = jax.block_until_ready(out)

    ref = attention_reference(x, params, num_heads=num_heads, head_dim=head_dim)
    assert out.shape == (B, H * W, C)
    # Precision contract: bf16 MXU operands, bf16 exp (v6e/v7x) and approx reciprocal -> looser
    # tolerance than the pure-f32 PyTorch path.
    assert jnp.allclose(out, ref, atol=6e-2, rtol=5e-2), "mismatch vs pure-JAX reference"

    print("KERNEL_OK")
</pallas_src>

<mosaic_0001>
module attributes {stable_mosaic.version = 11 : i64} {
  func.func @kernel(%arg0: i32, %arg1: i32, %arg2: memref<1x32x256xf32, #tpu.memory_space<vmem>>, %arg3: memref<96x32xbf16, #tpu.memory_space<vmem>>, %arg4: memref<96x1xf32, #tpu.memory_space<vmem>>, %arg5: memref<32x32xbf16, #tpu.memory_space<vmem>>, %arg6: memref<32x1xf32, #tpu.memory_space<vmem>>, %arg7: memref<1x32x256xf32, #tpu.memory_space<vmem>>) attributes {dimension_semantics = [#tpu.dimension_semantics<parallel>, #tpu.dimension_semantics<parallel>], iteration_bounds = array<i64: 2, 1>, scalar_prefetch = 0 : i64, scratch_operands = 0 : i64, tpu.core_type = #tpu.core_type<tc>, window_params = [{transform_indices = @transform_0, window_bounds = array<i64: 1, 32, 256>}, {pipeline_mode = #tpu.pipeline_mode<synchronous>, transform_indices = @transform_1, window_bounds = array<i64: 96, 32>}, {pipeline_mode = #tpu.pipeline_mode<synchronous>, transform_indices = @transform_2, window_bounds = array<i64: 96, 1>}, {pipeline_mode = #tpu.pipeline_mode<synchronous>, transform_indices = @transform_3, window_bounds = array<i64: 32, 32>}, {pipeline_mode = #tpu.pipeline_mode<synchronous>, transform_indices = @transform_4, window_bounds = array<i64: 32, 1>}, {transform_indices = @transform_5, window_bounds = array<i64: 1, 32, 256>}]} {
    %c0 = arith.constant 0 : index
    %c0_0 = arith.constant 0 : index
    %c0_1 = arith.constant 0 : index
    %0 = vector.load %arg2[%c0, %c0_0, %c0_1] : memref<1x32x256xf32, #tpu.memory_space<vmem>>, vector<1x32x256xf32>
    %1 = vector.shape_cast %0 : vector<1x32x256xf32> to vector<32x256xf32>
    %c0_2 = arith.constant 0 : index
    %c0_3 = arith.constant 0 : index
    %2 = vector.load %arg3[%c0_2, %c0_3] : memref<96x32xbf16, #tpu.memory_space<vmem>>, vector<96x32xbf16>
    %3 = arith.truncf %1 : vector<32x256xf32> to vector<32x256xbf16>
    %cst = arith.constant dense<0.000000e+00> : vector<96x256xf32>
    %4 = tpu.matmul %2, %3, %cst {dimension_numbers = #tpu.dot_dimension_numbers<[1], [0], [0], [1], [0, 0, 1, 1], [], []>} : vector<96x32xbf16>, vector<32x256xbf16>, vector<96x256xf32> -> vector<96x256xf32>
    %c0_4 = arith.constant 0 : index
    %c0_5 = arith.constant 0 : index
    %5 = vector.load %arg4[%c0_4, %c0_5] : memref<96x1xf32, #tpu.memory_space<vmem>>, vector<96x1xf32>
    %6 = vector.broadcast %5 : vector<96x1xf32> to vector<96x256xf32>
    %7 = arith.addf %4, %6 : vector<96x256xf32>
    %8 = vector.extract_strided_slice %7 {offsets = [0, 0], sizes = [32, 256], strides = [1, 1]} : vector<96x256xf32> to vector<32x256xf32>
    %9 = vector.extract_strided_slice %7 {offsets = [32, 0], sizes = [32, 256], strides = [1, 1]} : vector<96x256xf32> to vector<32x256xf32>
    %10 = vector.extract_strided_slice %7 {offsets = [64, 0], sizes = [32, 256], strides = [1, 1]} : vector<96x256xf32> to vector<32x256xf32>
    %11 = vector.shape_cast %8 : vector<32x256xf32> to vector<4x8x256xf32>
    %12 = arith.truncf %11 : vector<4x8x256xf32> to vector<4x8x256xbf16>
    %13 = vector.shape_cast %9 : vector<32x256xf32> to vector<4x8x256xf32>
    %14 = arith.truncf %13 : vector<4x8x256xf32> to vector<4x8x256xbf16>
    %15 = vector.shape_cast %10 : vector<32x256xf32> to vector<4x8x256xf32>
    %16 = arith.truncf %15 : vector<4x8x256xf32> to vector<4x8x256xbf16>
    "tpu.trace_start"() <{level = 10 : i32, message = "hdq,hdk->hqk"}> : () -> ()
    %cst_6 = arith.constant dense<0.000000e+00> : vector<4x256x256xf32>
    %17 = tpu.matmul %12, %14, %cst_6 {dimension_numbers = #tpu.dot_dimension_numbers<[1], [1], [2], [2], [0, 0, 0, 2, 1, 2], [0], [0]>} : vector<4x8x256xbf16>, vector<4x8x256xbf16>, vector<4x256x256xf32> -> vector<4x256x256xf32>
    "tpu.trace_stop"() : () -> ()
    %cst_7 = arith.constant dense<0xFF800000> : vector<4x256xf32>
    %18 = vector.multi_reduction <maximumf>, %17, %cst_7 [2] : vector<4x256x256xf32> to vector<4x256xf32>
    %19 = vector.shape_cast %18 : vector<4x256xf32> to vector<4x256x1xf32>
    %20 = vector.broadcast %19 : vector<4x256x1xf32> to vector<4x256x256xf32>
    %21 = arith.subf %17, %20 : vector<4x256x256xf32>
    %22 = math.exp %21 : vector<4x256x256xf32>
    %cst_8 = arith.constant dense<0.000000e+00> : vector<4x256xf32>
    %23 = vector.multi_reduction <add>, %22, %cst_8 [2] : vector<4x256x256xf32> to vector<4x256xf32>
    %24 = arith.truncf %22 : vector<4x256x256xf32> to vector<4x256x256xbf16>
    "tpu.trace_start"() <{level = 10 : i32, message = "hdk,hqk->hdq"}> : () -> ()
    %cst_9 = arith.constant dense<0.000000e+00> : vector<4x8x256xf32>
    %25 = tpu.matmul %16, %24, %cst_9 {dimension_numbers = #tpu.dot_dimension_numbers<[2], [2], [1], [1], [0, 0, 0, 1, 1, 1], [0], [0]>} : vector<4x8x256xbf16>, vector<4x256x256xbf16>, vector<4x8x256xf32> -> vector<4x8x256xf32>
    "tpu.trace_stop"() : () -> ()
    %26 = tpu.reciprocal %23 {approx = true} : vector<4x256xf32> -> vector<4x256xf32>
    %27 = vector.shape_cast %26 : vector<4x256xf32> to vector<4x1x256xf32>
    %28 = vector.broadcast %27 : vector<4x1x256xf32> to vector<4x8x256xf32>
    %29 = arith.mulf %25, %28 : vector<4x8x256xf32>
    %30 = vector.shape_cast %29 : vector<4x8x256xf32> to vector<32x256xf32>
    %c0_10 = arith.constant 0 : index
    %c0_11 = arith.constant 0 : index
    %31 = vector.load %arg5[%c0_10, %c0_11] : memref<32x32xbf16, #tpu.memory_space<vmem>>, vector<32x32xbf16>
    %c0_12 = arith.constant 0 : index
    %c0_13 = arith.constant 0 : index
    %32 = vector.load %arg6[%c0_12, %c0_13] : memref<32x1xf32, #tpu.memory_space<vmem>>, vector<32x1xf32>
    %33 = arith.truncf %30 : vector<32x256xf32> to vector<32x256xbf16>
    %cst_14 = arith.constant dense<0.000000e+00> : vector<32x256xf32>
    %34 = tpu.matmul %31, %33, %cst_14 {dimension_numbers = #tpu.dot_dimension_numbers<[1], [0], [0], [1], [0, 0, 1, 1], [], []>} : vector<32x32xbf16>, vector<32x256xbf16>, vector<32x256xf32> -> vector<32x256xf32>
    %35 = vector.broadcast %32 : vector<32x1xf32> to vector<32x256xf32>
    %36 = arith.addf %34, %35 : vector<32x256xf32>
    %37 = arith.addf %36, %1 : vector<32x256xf32>
    %c0_15 = arith.constant 0 : index
    %c0_16 = arith.constant 0 : index
    %c0_17 = arith.constant 0 : index
    %38 = vector.load %arg7[%c0_15, %c0_16, %c0_17] : memref<1x32x256xf32, #tpu.memory_space<vmem>>, vector<1x32x256xf32>
    %39 = vector.shape_cast %38 : vector<1x32x256xf32> to vector<32x256xf32>
    %40 = vector.shape_cast %37 : vector<32x256xf32> to vector<1x32x256xf32>
    tpu.vector_store %arg7[%c0_15, %c0_16, %c0_17], %40 {strides = array<i32>} : memref<1x32x256xf32, #tpu.memory_space<vmem>>, vector<1x32x256xf32>,
    return
  }
  func.func @transform_0(%arg0: i32, %arg1: i32) -> (i32, i32, i32) {
    %c0_i32 = arith.constant 0 : i32
    %c0_i32_0 = arith.constant 0 : i32
    %c0_i32_1 = arith.constant 0 : i32
    return %arg0, %c0_i32, %c0_i32_0 : i32, i32, i32
  }
  func.func @transform_1(%arg0: i32, %arg1: i32) -> (i32, i32) {
    %c0_i32 = arith.constant 0 : i32
    %c0_i32_0 = arith.constant 0 : i32
    %c0_i32_1 = arith.constant 0 : i32
    return %c0_i32, %c0_i32_0 : i32, i32
  }
  func.func @transform_2(%arg0: i32, %arg1: i32) -> (i32, i32) {
    %c0_i32 = arith.constant 0 : i32
    %c0_i32_0 = arith.constant 0 : i32
    %c0_i32_1 = arith.constant 0 : i32
    return %c0_i32, %c0_i32_0 : i32, i32
  }
  func.func @transform_3(%arg0: i32, %arg1: i32) -> (i32, i32) {
    %c0_i32 = arith.constant 0 : i32
    %c0_i32_0 = arith.constant 0 : i32
    %c0_i32_1 = arith.constant 0 : i32
    return %c0_i32, %c0_i32_0 : i32, i32
  }
  func.func @transform_4(%arg0: i32, %arg1: i32) -> (i32, i32) {
    %c0_i32 = arith.constant 0 : i32
    %c0_i32_0 = arith.constant 0 : i32
    %c0_i32_1 = arith.constant 0 : i32
    return %c0_i32, %c0_i32_0 : i32, i32
  }
  func.func @transform_5(%arg0: i32, %arg1: i32) -> (i32, i32, i32) {
    %c0_i32 = arith.constant 0 : i32
    %c0_i32_0 = arith.constant 0 : i32
    return %arg0, %c0_i32, %arg1 : i32, i32, i32
  }
}

</mosaic_0001>

<llo_original>
// kernel: tpu_custom_call.1
$region0: #{tpu_custom_call.1}
  #allocation0 [shape = 'u32[]', space=smem, size = 0x4, offset = 0x4, fixed_abs, tag = 'smem constant byte address 0x4 - core index']
  #allocation1 [shape = 'u32[144,128]{1,0:T(1,128)}', space=vmem, size = 0x12000, scoped, tag = 'internal scratch']
  %s0 = inlined_call_operand.vmem [shape: f32[2,32,256], index: 0, kind: input, shape index: {}]
  %s1 = inlined_call_operand.vmem [shape: bf16[96,32], index: 1, kind: input, shape index: {}]
  %s2 = inlined_call_operand.vmem [shape: f32[96,1], index: 2, kind: input, shape index: {}]
  %s3 = inlined_call_operand.vmem [shape: bf16[32,32], index: 3, kind: input, shape index: {}]
  %s4 = inlined_call_operand.vmem [shape: f32[32,1], index: 4, kind: input, shape index: {}]
  %s5 = inlined_call_operand.hbm [shape: f32[2,32,256], index: 5, kind: output, shape index: {}]
  %s6 = sld [smem:[#allocation0]]
  $region53: #{tpu_custom_call.1} parent=0
    _
  %s8 = ssub.s32 1, %s6
  %s9 = scalar_select 0, %s8, %s6
  $region1: #{tpu_custom_call.1} parent=0
    #allocation2 [shape = 'u8[65536]{0}', space=vmem, size = 0x10000, scoped, tag = 'output window, operand 0']
    #allocation3 [shape = 's32[2]{0}', space=sflag, size = 0x8, scoped, tag = 'scoped memory for tpu_custom_call.1']
    %10 = vsyncpa [#allocation3], 0
    %s11 = scalar_lea.sflag [#allocation3], 1
    %12 = vsyncpa %s11, 0
    loop: start=0, step=1, limit=4
    $region2: #{tpu_custom_call.1} parent=1 // loop_pre_header
      _
    $region3: #{tpu_custom_call.1} parent=1 // loop_header
      %s14 = sphi 0, %s18
      %p15 = scmp.ge.s32.totalorder %s14, 4
      %s21 = sphi 0, %s33
      %s22 = sphi 0, %s29
      %s23 = sphi 0, %s21
      %s24 = sphi 0, %s22
      %s25 = sphi 0, %s23
      %s26 = sphi 0, %s24
      %s36 = sphi 0, %s38
      %s39 = sphi 0, %s36
      %s40 = sphi 0, %s39
      %s56 = sphi 0, %s40
      %s60 = sphi 0, %s60
      %s62 = sphi 0, %s60
      %s63 = sphi 0, %s62
      %s77 = sphi 0, %s63
      %s81 = sphi 0, %s81
      %s83 = sphi 0, %s81
      %s84 = sphi 0, %s83
      %s98 = sphi 0, %s84
      %s102 = sphi 0, %s102
      %s104 = sphi 0, %s102
      %s105 = sphi 0, %s104
      %s119 = sphi 0, %s105
      %s123 = sphi 0, %s123
      %s125 = sphi 0, %s123
      %s126 = sphi 0, %s125
      %s140 = sphi 0, %s126
      %s148 = sphi 0, %s150
      %s151 = sphi 0, %s148
      %s152 = sphi 0, %s151
      %s168 = sphi 0, %s152
    $region4: #{tpu_custom_call.1} parent=1 // loop_header_branch
      %17 = sbr.rel (%p15) target = $region8
    $region5: #{tpu_custom_call.1} parent=1 // loop_body
      %s19 = ssub.s32 %s14, 1
      %s20 = ssub.s32 %s14, 2
      %s27 = sadd.s32 1, %s22
      %p28 = scmp.ge.s32.totalorder %s27, 1
      %s29 = scalar_select %p28, 0, %s27
      %s30 = sadd.s32 1, %s21
      %s31 = scalar_select %p28, %s30, %s21
      %p32 = scmp.ge.s32.totalorder %s31, 2
      %s33 = scalar_select %p32, 0, %s31
      %s34 = ssub.s32 %s21, %s33
      %p35 = scmp.eq.s32.totalorder %s34, 0
      %s37 = sadd.s32 %s36, 1
      %s38 = scalar_select %p35, %s36, %s37
      %p41 = pneg %p35
      %p42 = scmp.eq.s32.totalorder %s14, 1
      %p43 = por %p41, %p42
      %p44 = scmp.ne.s32.totalorder %s36, %s39
      %p45 = scmp.eq.s32.totalorder %s14, 0
      %p46 = por %p44, %p45
      %p47 = scmp.ne.s32.totalorder %s36, %s39
      %p48 = scmp.eq.s32.totalorder %s19, 1
      %p49 = por %p47, %p48
      %p50 = scmp.ne.s32.totalorder %s39, %s40
      %p51 = scmp.eq.s32.totalorder %s19, 0
      %p52 = por %p50, %p51
      %p53 = scmp.ne.s32.totalorder %s39, %s40
      %p54 = scmp.eq.s32.totalorder %s20, 1
      %p55 = por %p53, %p54
      %p57 = scmp.ne.s32.totalorder %s40, %s56
      %p58 = scmp.eq.s32.totalorder %s20, 0
      %p59 = por %p57, %p58
      %s61 = sadd.s32 %s60, 1
      %p64 = scmp.eq.s32.totalorder %s14, 1
      %p65 = scmp.ne.s32.totalorder %s60, %s62
      %p66 = scmp.eq.s32.totalorder %s14, 0
      %p67 = por %p65, %p66
      %p68 = scmp.ne.s32.totalorder %s60, %s62
      %p69 = scmp.eq.s32.totalorder %s19, 1
      %p70 = por %p68, %p69
      %p71 = scmp.ne.s32.totalorder %s62, %s63
      %p72 = scmp.eq.s32.totalorder %s19, 0
      %p73 = por %p71, %p72
      %p74 = scmp.ne.s32.totalorder %s62, %s63
      %p75 = scmp.eq.s32.totalorder %s20, 1
      %p76 = por %p74, %p75
      %p78 = scmp.ne.s32.totalorder %s63, %s77
      %p79 = scmp.eq.s32.totalorder %s20, 0
      %p80 = por %p78, %p79
      %s82 = sadd.s32 %s81, 1
      %p85 = scmp.eq.s32.totalorder %s14, 1
      %p86 = scmp.ne.s32.totalorder %s81, %s83
      %p87 = scmp.eq.s32.totalorder %s14, 0
      %p88 = por %p86, %p87
      %p89 = scmp.ne.s32.totalorder %s81, %s83
      %p90 = scmp.eq.s32.totalorder %s19, 1
      %p91 = por %p89, %p90
      %p92 = scmp.ne.s32.totalorder %s83, %s84
      %p93 = scmp.eq.s32.totalorder %s19, 0
      %p94 = por %p92, %p93
      %p95 = scmp.ne.s32.totalorder %s83, %s84
      %p96 = scmp.eq.s32.totalorder %s20, 1
      %p97 = por %p95, %p96
      %p99 = scmp.ne.s32.totalorder %s84, %s98
      %p100 = scmp.eq.s32.totalorder %s20, 0
      %p101 = por %p99, %p100
      %s103 = sadd.s32 %s102, 1
      %p106 = scmp.eq.s32.totalorder %s14, 1
      %p107 = scmp.ne.s32.totalorder %s102, %s104
      %p108 = scmp.eq.s32.totalorder %s14, 0
      %p109 = por %p107, %p108
      %p110 = scmp.ne.s32.totalorder %s102, %s104
      %p111 = scmp.eq.s32.totalorder %s19, 1
      %p112 = por %p110, %p111
      %p113 = scmp.ne.s32.totalorder %s104, %s105
      %p114 = scmp.eq.s32.totalorder %s19, 0
      %p115 = por %p113, %p114
      %p116 = scmp.ne.s32.totalorder %s104, %s105
      %p117 = scmp.eq.s32.totalorder %s20, 1
      %p118 = por %p116, %p117
      %p120 = scmp.ne.s32.totalorder %s105, %s119
      %p121 = scmp.eq.s32.totalorder %s20, 0
      %p122 = por %p120, %p121
      %s124 = sadd.s32 %s123, 1
      %p127 = scmp.eq.s32.totalorder %s14, 1
      %p128 = scmp.ne.s32.totalorder %s123, %s125
      %p129 = scmp.eq.s32.totalorder %s14, 0
      %p130 = por %p128, %p129
      %p131 = scmp.ne.s32.totalorder %s123, %s125
      %p132 = scmp.eq.s32.totalorder %s19, 1
      %p133 = por %p131, %p132
      %p134 = scmp.ne.s32.totalorder %s125, %s126
      %p135 = scmp.eq.s32.totalorder %s19, 0
      %p136 = por %p134, %p135
      %p137 = scmp.ne.s32.totalorder %s125, %s126
      %p138 = scmp.eq.s32.totalorder %s20, 1
      %p139 = por %p137, %p138
      %p141 = scmp.ne.s32.totalorder %s126, %s140
      %p142 = scmp.eq.s32.totalorder %s20, 0
      %p143 = por %p141, %p142
      %s144 = ssub.s32 %s21, %s33
      %s145 = ssub.s32 %s22, %s29
      %s146 = sor.u32 %s144, %s145
      %p147 = scmp.eq.s32.totalorder %s146, 0
      %s149 = sadd.s32 %s148, 1
      %s150 = scalar_select %p147, %s148, %s149
      %p153 = pneg %p147
      %p154 = scmp.eq.s32.totalorder %s14, 1
      %p155 = por %p153, %p154
      %p156 = scmp.ne.s32.totalorder %s148, %s151
      %p157 = scmp.eq.s32.totalorder %s14, 0
      %p158 = por %p156, %p157
      %p159 = scmp.ne.s32.totalorder %s148, %s151
      %p160 = scmp.eq.s32.totalorder %s19, 1
      %p161 = por %p159, %p160
      %p162 = scmp.ne.s32.totalorder %s151, %s152
      %p163 = scmp.eq.s32.totalorder %s19, 0
      %p164 = por %p162, %p163
      %p165 = scmp.ne.s32.totalorder %s151, %s152
      %p166 = scmp.eq.s32.totalorder %s20, 1
      %p167 = por %p165, %p166
      %p169 = scmp.ne.s32.totalorder %s152, %s168
      %p170 = scmp.eq.s32.totalorder %s20, 0
      %p171 = por %p169, %p170
      %p172 = scmp.le.s32.totalorder 1, %s14
      %p173 = scmp.lt.s32.totalorder %s14, 3
      %p174 = pnand %p172, %p173
      %p175 = pneg %p174
      // Predicated region
      $region9: #{tpu_custom_call.1} parent=5 // pred_check
        _
      $region10: #{tpu_custom_call.1} parent=5 // pred_check_branch
        %177 = sbr.rel (%p174) target = $region12
      $region11: #{tpu_custom_call.1} parent=5 // pred_region
        %s178 = ssub.s32 %s14, 1
        // Predicated region
        $region13: #{tpu_custom_call.1} parent=11 // pred_check
          %p179 = pneg %p73
        $region14: #{tpu_custom_call.1} parent=11 // pred_check_branch
          %181 = sbr.rel (%p179) target = $region16
        $region15: #{tpu_custom_call.1} parent=11 // pred_region
          _
        $region16: #{tpu_custom_call.1} parent=11 // pred_fallthru
          _
        // Predicated region
        $region17: #{tpu_custom_call.1} parent=11 // pred_check
          %p182 = pneg %p94
        $region18: #{tpu_custom_call.1} parent=11 // pred_check_branch
          %184 = sbr.rel (%p182) target = $region20
        $region19: #{tpu_custom_call.1} parent=11 // pred_region
          _
        $region20: #{tpu_custom_call.1} parent=11 // pred_fallthru
          _
        // Predicated region
        $region21: #{tpu_custom_call.1} parent=11 // pred_check
          %p185 = pneg %p115
        $region22: #{tpu_custom_call.1} parent=11 // pred_check_branch
          %187 = sbr.rel (%p185) target = $region24
        $region23: #{tpu_custom_call.1} parent=11 // pred_region
          _
        $region24: #{tpu_custom_call.1} parent=11 // pred_fallthru
          _
        // Predicated region
        $region25: #{tpu_custom_call.1} parent=11 // pred_check
          %p188 = pneg %p136
        $region26: #{tpu_custom_call.1} parent=11 // pred_check_branch
          %190 = sbr.rel (%p188) target = $region28
        $region27: #{tpu_custom_call.1} parent=11 // pred_region
          _
        $region28: #{tpu_custom_call.1} parent=11 // pred_fallthru
          _
      $region12: #{tpu_custom_call.1} parent=5 // pred_fallthru
        _
      %p191 = scmp.lt.s32.totalorder %s14, 2
      // Predicated region
      $region29: #{tpu_custom_call.1} parent=5 // pred_check
        %p192 = pneg %p191
      $region30: #{tpu_custom_call.1} parent=5 // pred_check_branch
        %194 = sbr.rel (%p192) target = $region32
      $region31: #{tpu_custom_call.1} parent=5 // pred_region
        // Predicated region
        $region33: #{tpu_custom_call.1} parent=31 // pred_check
          %p195 = pneg %p46
        $region34: #{tpu_custom_call.1} parent=31 // pred_check_branch
          %197 = sbr.rel (%p195) target = $region36
        $region35: #{tpu_custom_call.1} parent=31 // pred_region
          %p198 = scmp.lt.s32.totalorder %s21, 1
          %s199 = scalar_select %p198, %s21, 1
          %s200 = smul.addr %s199, 8
          %s201 = smul.addr %s200, 8
          %s202 = scalar_lea.vmem %s0, %s201
        $region36: #{tpu_custom_call.1} parent=31 // pred_fallthru
          _
      $region32: #{tpu_custom_call.1} parent=5 // pred_fallthru
        _
      %p203 = scmp.le.s32.totalorder 1, %s14
      %p204 = scmp.lt.s32.totalorder %s14, 3
      %p205 = pnand %p203, %p204
      %p206 = pneg %p205
      // Predicated region
      $region37: #{tpu_custom_call.1} parent=5 // pred_check
        _
      $region38: #{tpu_custom_call.1} parent=5 // pred_check_branch
        %208 = sbr.rel (%p205) target = $region40
      $region39: #{tpu_custom_call.1} parent=5 // pred_region
        %s209 = ssub.s32 %s14, 1
        %p210 = scmp.lt.s32.totalorder %s23, 1
        %s211 = scalar_select %p210, %s23, 1
        %s212 = smul.addr %s211, 8
        %s213 = smul.addr %s212, 8
        %s214 = scalar_lea.vmem %s0, %s213
        %p215 = pneg %p52
        %p216 = pneg %p49
        %p217 = pneg %p73
        %p218 = pneg %p70
        %p219 = pneg %p94
        %p220 = pneg %p91
        %p221 = pneg %p115
        %p222 = pneg %p112
        %p223 = pneg %p136
        %p224 = pneg %p133
        %p225 = pneg %p164
        %p226 = pneg %p161
        %s227 = sand.u32 %s151, 1
        %s228 = scalar_lea.sflag [#allocation3], %s227
        %s229 = sand.u32 %s151, 1
        %s230 = smul.addr %s229, 64
        %s231 = scalar_lea.vmem [#allocation2], %s230
        %p232 = scmp.lt.s32.totalorder %s23, 1
        %s233 = scalar_select %p232, %s23, 1
        %s234 = smul.addr %s233, 8
        %s235 = smul.addr %s234, 8
        %s236 = scalar_lea.vmem %s0, %s235
        %s237 = smul.u32 2, %s24
        %v239 = vld [vmem:[%s236] sm:$0xff]
        %v240 = vld [vmem:[%s236 + $0x8] sm:$0xff]
        %v241 = vld [vmem:[%s236 + $0x10] sm:$0xff]
        %v242 = vld [vmem:[%s236 + $0x18] sm:$0xff]
        %v243 = vld [vmem:[%s236 + $0x20] sm:$0xff]
        %v244 = vld [vmem:[%s236 + $0x28] sm:$0xff]
        %v245 = vld [vmem:[%s236 + $0x30] sm:$0xff]
        %v246 = vld [vmem:[%s236 + $0x38] sm:$0xff]
        %v247 = vld [vmem:[%s1] sm:$0xf]
        %v248 = vld [vmem:[%s1 + $0x4] sm:$0xf]
        %v249 = vld [vmem:[%s1 + $0x8] sm:$0xf]
        %v250 = vld [vmem:[%s1 + $0xc] sm:$0xf]
        %v251 = vld [vmem:[%s1 + $0x10] sm:$0xf]
        %v252 = vld [vmem:[%s1 + $0x14] sm:$0xf]
        %v253 = vld [vmem:[%s1 + $0x18] sm:$0xf]
        %v254 = vld [vmem:[%s1 + $0x1c] sm:$0xf]
        %v255 = vld [vmem:[%s1 + $0x20] sm:$0xf]
        %v256 = vld [vmem:[%s1 + $0x24] sm:$0xf]
        %v257 = vld [vmem:[%s1 + $0x28] sm:$0xf]
        %v258 = vld [vmem:[%s1 + $0x2c] sm:$0xf]
        %v259 = vpack.c.bf16 %v241, %v239
        %v260 = vpack.c.bf16 %v242, %v240
        %v261 = vpack.c.bf16 %v245, %v243
        %v262 = vpack.c.bf16 %v246, %v244
        %v263 = vld [vmem:[%s2] sm:$0xff]
        %v264 = vld [vmem:[%s2 + $0x8] sm:$0xff]
        %v265 = vld [vmem:[%s2 + $0x10] sm:$0xff]
        %v266 = vld [vmem:[%s2 + $0x18] sm:$0xff]
        %v267 = vld [vmem:[%s2 + $0x20] sm:$0xff]
        %v268 = vld [vmem:[%s2 + $0x28] sm:$0xff]
        %v269 = vld [vmem:[%s2 + $0x30] sm:$0xff]
        %v270 = vld [vmem:[%s2 + $0x38] sm:$0xff]
        %v271 = vld [vmem:[%s2 + $0x40] sm:$0xff]
        %v272 = vld [vmem:[%s2 + $0x48] sm:$0xff]
        %v273 = vld [vmem:[%s2 + $0x50] sm:$0xff]
        %v274 = vld [vmem:[%s2 + $0x58] sm:$0xff]
        %276 = vset.pattern.permute.xlu0 0
        %277 = vperm.xlu0 %276, %v263
        %v278 = vpop.permute.xlu0 %277
        %281 = vset.pattern.permute.xlu0 0
        %282 = vperm.xlu0 %281, %v264
        %v283 = vpop.permute.xlu0 %282
        %286 = vset.pattern.permute.xlu0 0
        %287 = vperm.xlu0 %286, %v265
        %v288 = vpop.permute.xlu0 %287
        %291 = vset.pattern.permute.xlu0 0
        %292 = vperm.xlu0 %291, %v266
        %v293 = vpop.permute.xlu0 %292
        %296 = vset.pattern.permute.xlu0 0
        %297 = vperm.xlu0 %296, %v267
        %v298 = vpop.permute.xlu0 %297
        %301 = vset.pattern.permute.xlu0 0
        %302 = vperm.xlu0 %301, %v268
        %v303 = vpop.permute.xlu0 %302
        %306 = vset.pattern.permute.xlu0 0
        %307 = vperm.xlu0 %306, %v269
        %v308 = vpop.permute.xlu0 %307
        %311 = vset.pattern.permute.xlu0 0
        %312 = vperm.xlu0 %311, %v270
        %v313 = vpop.permute.xlu0 %312
        %316 = vset.pattern.permute.xlu0 0
        %317 = vperm.xlu0 %316, %v271
        %v318 = vpop.permute.xlu0 %317
        %321 = vset.pattern.permute.xlu0 0
        %322 = vperm.xlu0 %321, %v272
        %v323 = vpop.permute.xlu0 %322
        %326 = vset.pattern.permute.xlu0 0
        %327 = vperm.xlu0 %326, %v273
        %v328 = vpop.permute.xlu0 %327
        %331 = vset.pattern.permute.xlu0 0
        %332 = vperm.xlu0 %331, %v274
        %v333 = vpop.permute.xlu0 %332
        %v347 = vunpack.c.l.b16 %v247
        %v348 = vunpack.c.l.b16 %v248
        %v349 = vunpack.c.l.b16 %v249
        %v350 = vunpack.c.l.b16 %v250
        %v351 = vunpack.c.l.b16 %v251
        %v352 = vunpack.c.l.b16 %v252
        %v353 = vunpack.c.l.b16 %v253
        %v354 = vunpack.c.l.b16 %v254
        %v355 = vunpack.c.l.b16 %v255
        %v356 = vunpack.c.l.b16 %v256
        %v357 = vunpack.c.l.b16 %v257
        %v358 = vunpack.c.l.b16 %v258
        %v359 = vpack.c.b16 %v348, %v347
        %v360 = vpack.c.b16 %v350, %v349
        %v361 = vpack.c.b16 %v352, %v351
        %v362 = vpack.c.b16 %v354, %v353
        %v363 = vpack.c.b16 %v356, %v355
        %v364 = vpack.c.b16 %v358, %v357
        %vm365 = vcmask 261120
        %v367 = vsel %vm365, %v359, 0
        %v370 = vsel %vm365, %v360, 0
        %v373 = vsel %vm365, %v361, 0
        %v376 = vsel %vm365, %v362, 0
        %v379 = vsel %vm365, %v363, 0
        %v382 = vsel %vm365, %v364, 0
        %384 = vmatprep.subr.bf16.mxu0 %v260
        %385 = vmatpush1.bf16.msra.mxu0 %v259
        %386 = vmatprep.subr.bf16.mxu0 %v262
        %387 = vmatpush1.bf16.msra.mxu0 %v261
        %388 = vmatprep.subr.bf16.mxu0 0
        %389 = vmatpush1.bf16.msra.mxu0 0
        %390 = vmatprep.subr.bf16.mxu0 0
        %391 = vmatpush1.bf16.msra.mxu0 0
        %392 = vmatprep.subr.bf16.mxu0 0
        %393 = vmatpush1.bf16.msra.mxu0 0
        %394 = vmatprep.subr.bf16.mxu0 0
        %395 = vmatpush1.bf16.msra.mxu0 0
        %396 = vmatprep.subr.bf16.mxu0 0
        %397 = vmatpush1.bf16.msra.mxu0 0
        %398 = vmatprep.subr.bf16.mxu0 0
        %399 = vmatpush1.bf16.msra.mxu0 0
        %400 = vmatprep.subr.bf16.mxu0 0
        %401 = vmatpush1.bf16.msra.mxu0 0
        %402 = vmatprep.subr.bf16.mxu0 0
        %403 = vmatpush1.bf16.msra.mxu0 0
        %404 = vmatprep.subr.bf16.mxu0 0
        %405 = vmatpush1.bf16.msra.mxu0 0
        %406 = vmatprep.subr.bf16.mxu0 0
        %407 = vmatpush1.bf16.msra.mxu0 0
        %408 = vmatprep.subr.bf16.mxu0 0
        %409 = vmatpush1.bf16.msra.mxu0 0
        %410 = vmatprep.subr.bf16.mxu0 0
        %411 = vmatpush1.bf16.msra.mxu0 0
        %412 = vmatprep.subr.bf16.mxu0 0
        %413 = vmatpush1.bf16.msra.mxu0 0
        %414 = vmatprep.subr.bf16.mxu0 0
        %415 = vmatpush1.bf16.msra.mxu0 0
        %416 = vmatprep.mubr.bf16.mxu0 0
        %417 = vmatmul.mubr.bf16.gmra.mrb[0].mxu0 %v367
        %v418 = vpop.f32.mrb[0].mxu0
        %v419 = vadd.f32 %v278, %v418
        %v420 = vpop.f32.mrb[0].mxu0
        %v421 = vadd.f32 %v278, %v420
        %v422 = vpop.f32.mrb[0].mxu0
        %v423 = vadd.f32 %v283, %v422
        %v424 = vpop.f32.mrb[0].mxu0
        %v425 = vadd.f32 %v283, %v424
        %426 = vmatprep.mubr.bf16.mxu0 0
        %427 = vmatmul.mubr.bf16.gmra.mrb[0].mxu0 %v370
        %v428 = vpop.f32.mrb[0].mxu0
        %v429 = vadd.f32 %v288, %v428
        %v430 = vpop.f32.mrb[0].mxu0
        %v431 = vadd.f32 %v288, %v430
        %v432 = vpop.f32.mrb[0].mxu0
        %v433 = vadd.f32 %v293, %v432
        %v434 = vpop.f32.mrb[0].mxu0
        %v435 = vadd.f32 %v293, %v434
        %436 = vmatprep.mubr.bf16.mxu0 0
        %437 = vmatmul.mubr.bf16.gmra.mrb[0].mxu0 %v373
        %v438 = vpop.f32.mrb[0].mxu0
        %v439 = vadd.f32 %v298, %v438
        %v440 = vpop.f32.mrb[0].mxu0
        %v441 = vadd.f32 %v298, %v440
        %v442 = vpop.f32.mrb[0].mxu0
        %v443 = vadd.f32 %v303, %v442
        %v444 = vpop.f32.mrb[0].mxu0
        %v445 = vadd.f32 %v303, %v444
        %446 = vmatprep.mubr.bf16.mxu0 0
        %447 = vmatmul.mubr.bf16.gmra.mrb[0].mxu0 %v376
        %v448 = vpop.f32.mrb[0].mxu0
        %v449 = vadd.f32 %v308, %v448
        %v450 = vpop.f32.mrb[0].mxu0
        %v451 = vadd.f32 %v308, %v450
        %v452 = vpop.f32.mrb[0].mxu0
        %v453 = vadd.f32 %v313, %v452
        %v454 = vpop.f32.mrb[0].mxu0
        %v455 = vadd.f32 %v313, %v454
        %456 = vmatprep.mubr.bf16.mxu0 0
        %457 = vmatmul.mubr.bf16.gmra.mrb[0].mxu0 %v379
        %v458 = vpop.f32.mrb[0].mxu0
        %v459 = vadd.f32 %v318, %v458
        %v460 = vpop.f32.mrb[0].mxu0
        %v461 = vadd.f32 %v318, %v460
        %v462 = vpop.f32.mrb[0].mxu0
        %v463 = vadd.f32 %v323, %v462
        %v464 = vpop.f32.mrb[0].mxu0
        %v465 = vadd.f32 %v323, %v464
        %466 = vmatprep.mubr.bf16.mxu0 0
        %467 = vmatmul.mubr.bf16.gmra.mrb[0].mxu0 %v382
        %v468 = vpop.f32.mrb[0].mxu0
        %v469 = vadd.f32 %v328, %v468
        %v470 = vpop.f32.mrb[0].mxu0
        %v471 = vadd.f32 %v328, %v470
        %v472 = vpop.f32.mrb[0].mxu0
        %v473 = vadd.f32 %v333, %v472
        %v474 = vpop.f32.mrb[0].mxu0
        %v475 = vadd.f32 %v333, %v474
        %476 = vdwg.mxu0
        %v477 = vpack.c.bf16 %v419, %v419
        %v478 = vpack.c.bf16 %v421, %v421
        %v479 = vpack.c.bf16 %v423, %v423
        %v480 = vpack.c.bf16 %v425, %v425
        %v481 = vpack.c.bf16 %v429, %v429
        %v482 = vpack.c.bf16 %v431, %v431
        %v483 = vpack.c.bf16 %v433, %v433
        %v484 = vpack.c.bf16 %v435, %v435
        %v485 = vpack.c.bf16 %v439, %v439
        %v486 = vpack.c.bf16 %v441, %v441
        %v487 = vpack.c.bf16 %v443, %v443
        %v488 = vpack.c.bf16 %v445, %v445
        %v489 = vpack.c.bf16 %v449, %v449
        %v490 = vpack.c.bf16 %v451, %v451
        %v491 = vpack.c.bf16 %v453, %v453
        %v492 = vpack.c.bf16 %v455, %v455
        %v493 = vpack.c.bf16 %v459, %v459
        %v494 = vpack.c.bf16 %v461, %v461
        %v495 = vpack.c.bf16 %v463, %v463
        %v496 = vpack.c.bf16 %v465, %v465
        %v497 = vpack.c.bf16 %v469, %v469
        %v498 = vpack.c.bf16 %v471, %v471
        %v499 = vpack.c.bf16 %v473, %v473
        %v500 = vpack.c.bf16 %v475, %v475
        %501 = vxpose.xlu0.c.b16.start [1/8] %v477, 128
        %502 = vxpose.xlu0.c.b16.cont [2/8] 0, 128
        %503 = vxpose.xlu0.c.b16.cont [3/8] 0, 128
        %504 = vxpose.xlu0.c.b16.cont [4/8] 0, 128
        %505 = vxpose.xlu0.c.b16.cont [5/8] 0, 128
        %506 = vxpose.xlu0.c.b16.cont [6/8] 0, 128
        %507 = vxpose.xlu0.c.b16.cont [7/8] 0, 128
        %508 = vxpose.xlu0.c.b16.end [8/8] 0, 128
        %v509 = vpop.trf.xlu0
        %v510 = vpop.trf.xlu0
        %v511 = vpop.trf.xlu0
        %v512 = vpop.trf.xlu0
        %v513 = vpop.trf.xlu0
        %v514 = vpop.trf.xlu0
        %v515 = vpop.trf.xlu0
        %v516 = vpop.trf.xlu0
        %517 = vxpose.xlu0.c.b16.start [1/8] %v478, 128
        %518 = vxpose.xlu0.c.b16.cont [2/8] 0, 128
        %519 = vxpose.xlu0.c.b16.cont [3/8] 0, 128
        %520 = vxpose.xlu0.c.b16.cont [4/8] 0, 128
        %521 = vxpose.xlu0.c.b16.cont [5/8] 0, 128
        %522 = vxpose.xlu0.c.b16.cont [6/8] 0, 128
        %523 = vxpose.xlu0.c.b16.cont [7/8] 0, 128
        %524 = vxpose.xlu0.c.b16.end [8/8] 0, 128
        %v525 = vpop.trf.xlu0
        %v526 = vpop.trf.xlu0
        %v527 = vpop.trf.xlu0
        %v528 = vpop.trf.xlu0
        %v529 = vpop.trf.xlu0
        %v530 = vpop.trf.xlu0
        %v531 = vpop.trf.xlu0
        %v532 = vpop.trf.xlu0
        %vm533 = vcmask 64512
        %v535 = vsel %vm533, %v509, 0
        %v538 = vsel %vm533, %v510, 0
        %v541 = vsel %vm533, %v511, 0
        %v544 = vsel %vm533, %v512, 0
        %v547 = vsel %vm533, %v513, 0
        %v550 = vsel %vm533, %v514, 0
        %v553 = vsel %vm533, %v515, 0
        %v556 = vsel %vm533, %v516, 0
        %v559 = vsel %vm533, %v525, 0
        %v562 = vsel %vm533, %v526, 0
        %v565 = vsel %vm533, %v527, 0
        %v568 = vsel %vm533, %v528, 0
        %v571 = vsel %vm533, %v529, 0
        %v574 = vsel %vm533, %v530, 0
        %v577 = vsel %vm533, %v531, 0
        %v580 = vsel %vm533, %v532, 0
        %vm582 = vcmask 1043456
        %v584 = vsel %vm582, %v485, 0
        %v587 = vsel %vm582, %v486, 0
        %589 = vmatprep.subr.bf16.mxu0 %v587
        %590 = vmatpush1.bf16.msra.mxu0 %v584
        %591 = vmatprep.subr.bf16.mxu0 0
        %592 = vmatpush1.bf16.msra.mxu0 0
        %593 = vmatprep.subr.bf16.mxu0 0
        %594 = vmatpush1.bf16.msra.mxu0 0
        %595 = vmatprep.subr.bf16.mxu0 0
        %596 = vmatpush1.bf16.msra.mxu0 0
        %597 = vmatprep.subr.bf16.mxu0 0
        %598 = vmatpush1.bf16.msra.mxu0 0
        %599 = vmatprep.subr.bf16.mxu0 0
        %600 = vmatpush1.bf16.msra.mxu0 0
        %601 = vmatprep.subr.bf16.mxu0 0
        %602 = vmatpush1.bf16.msra.mxu0 0
        %603 = vmatprep.subr.bf16.mxu0 0
        %604 = vmatpush1.bf16.msra.mxu0 0
        %605 = vmatprep.subr.bf16.mxu0 0
        %606 = vmatpush1.bf16.msra.mxu0 0
        %607 = vmatprep.subr.bf16.mxu0 0
        %608 = vmatpush1.bf16.msra.mxu0 0
        %609 = vmatprep.subr.bf16.mxu0 0
        %610 = vmatpush1.bf16.msra.mxu0 0
        %611 = vmatprep.subr.bf16.mxu0 0
        %612 = vmatpush1.bf16.msra.mxu0 0
        %613 = vmatprep.subr.bf16.mxu0 0
        %614 = vmatpush1.bf16.msra.mxu0 0
        %615 = vmatprep.subr.bf16.mxu0 0
        %616 = vmatpush1.bf16.msra.mxu0 0
        %617 = vmatprep.subr.bf16.mxu0 0
        %618 = vmatpush1.bf16.msra.mxu0 0
        %619 = vmatprep.subr.bf16.mxu0 0
        %620 = vmatpush1.bf16.msra.mxu0 0
        %621 = vmatprep.mubr.bf16.mxu0 0
        %622 = vmatmul.mubr.bf16.gmra.mrb[0].mxu0 %v535
        %v623 = vpop.f32.mrb[0].mxu0
        %v624 = vadd.f32 0.0, %v623
        %v625 = vpop.f32.mrb[0].mxu0
        %v626 = vadd.f32 0.0, %v625
        %v627 = vpop.f32.mrb[0].mxu0
        %v628 = vadd.f32 0.0, %v627
        %v629 = vpop.f32.mrb[0].mxu0
        %v630 = vadd.f32 0.0, %v629
        %631 = vmatprep.mubr.bf16.mxu0 0
        %632 = vmatmul.mubr.bf16.gmra.mrb[0].mxu0 %v538
        %v633 = vpop.f32.mrb[0].mxu0
        %v634 = vadd.f32 0.0, %v633
        %v635 = vpop.f32.mrb[0].mxu0
        %v636 = vadd.f32 0.0, %v635
        %v637 = vpop.f32.mrb[0].mxu0
        %v638 = vadd.f32 0.0, %v637
        %v639 = vpop.f32.mrb[0].mxu0
        %v640 = vadd.f32 0.0, %v639
        %641 = vmatprep.mubr.bf16.mxu0 0
        %642 = vmatmul.mubr.bf16.gmra.mrb[0].mxu0 %v541
        %v643 = vpop.f32.mrb[0].mxu0
        %v644 = vadd.f32 0.0, %v643
        %v645 = vpop.f32.mrb[0].mxu0
        %v646 = vadd.f32 0.0, %v645
        %v647 = vpop.f32.mrb[0].mxu0
        %v648 = vadd.f32 0.0, %v647
        %v649 = vpop.f32.mrb[0].mxu0
        %v650 = vadd.f32 0.0, %v649
        %651 = vmatprep.mubr.bf16.mxu0 0
        %652 = vmatmul.mubr.bf16.gmra.mrb[0].mxu0 %v544
        %v653 = vpop.f32.mrb[0].mxu0
        %v654 = vadd.f32 0.0, %v653
        %v655 = vpop.f32.mrb[0].mxu0
        %v656 = vadd.f32 0.0, %v655
        %v657 = vpop.f32.mrb[0].mxu0
        %v658 = vadd.f32 0.0, %v657
        %v659 = vpop.f32.mrb[0].mxu0
        %v660 = vadd.f32 0.0, %v659
        %661 = vmatprep.mubr.bf16.mxu0 0
        %662 = vmatmul.mubr.bf16.gmra.mrb[0].mxu0 %v547
        %v663 = vpop.f32.mrb[0].mxu0
        %v664 = vadd.f32 0.0, %v663
        %v665 = vpop.f32.mrb[0].mxu0
        %v666 = vadd.f32 0.0, %v665
        %v667 = vpop.f32.mrb[0].mxu0
        %v668 = vadd.f32 0.0, %v667
        %v669 = vpop.f32.mrb[0].mxu0
        %v670 = vadd.f32 0.0, %v669
        %671 = vmatprep.mubr.bf16.mxu0 0
        %672 = vmatmul.mubr.bf16.gmra.mrb[0].mxu0 %v550
        %v673 = vpop.f32.mrb[0].mxu0
        %v674 = vadd.f32 0.0, %v673
        %v675 = vpop.f32.mrb[0].mxu0
        %v676 = vadd.f32 0.0, %v675
        %v677 = vpop.f32.mrb[0].mxu0
        %v678 = vadd.f32 0.0, %v677
        %v679 = vpop.f32.mrb[0].mxu0
        %v680 = vadd.f32 0.0, %v679
        %681 = vmatprep.mubr.bf16.mxu0 0
        %682 = vmatmul.mubr.bf16.gmra.mrb[0].mxu0 %v553
        %v683 = vpop.f32.mrb[0].mxu0
        %v684 = vadd.f32 0.0, %v683
        %v685 = vpop.f32.mrb[0].mxu0
        %v686 = vadd.f32 0.0, %v685
        %v687 = vpop.f32.mrb[0].mxu0
        %v688 = vadd.f32 0.0, %v687
        %v689 = vpop.f32.mrb[0].mxu0
        %v690 = vadd.f32 0.0, %v689
        %691 = vmatprep.mubr.bf16.mxu0 0
        %692 = vmatmul.mubr.bf16.gmra.mrb[0].mxu0 %v556
        %v693 = vpop.f32.mrb[0].mxu0
        %v694 = vadd.f32 0.0, %v693
        %v695 = vpop.f32.mrb[0].mxu0
        %v696 = vadd.f32 0.0, %v695
        %v697 = vpop.f32.mrb[0].mxu0
        %v698 = vadd.f32 0.0, %v697
        %v699 = vpop.f32.mrb[0].mxu0
        %v700 = vadd.f32 0.0, %v699
        %701 = vmatprep.mubr.bf16.mxu0 0
        %702 = vmatmul.mubr.bf16.gmra.mrb[0].mxu0 %v559
        %v703 = vpop.f32.mrb[0].mxu0
        %v704 = vadd.f32 0.0, %v703
        %v705 = vpop.f32.mrb[0].mxu0
        %v706 = vadd.f32 0.0, %v705
        %v707 = vpop.f32.mrb[0].mxu0
        %v708 = vadd.f32 0.0, %v707
        %v709 = vpop.f32.mrb[0].mxu0
        %v710 = vadd.f32 0.0, %v709
        %711 = vmatprep.mubr.bf16.mxu0 0
        %712 = vmatmul.mubr.bf16.gmra.mrb[0].mxu0 %v562
        %v713 = vpop.f32.mrb[0].mxu0
        %v714 = vadd.f32 0.0, %v713
        %v715 = vpop.f32.mrb[0].mxu0
        %v716 = vadd.f32 0.0, %v715
        %v717 = vpop.f32.mrb[0].mxu0
        %v718 = vadd.f32 0.0, %v717
        %v719 = vpop.f32.mrb[0].mxu0
        %v720 = vadd.f32 0.0, %v719
        %721 = vmatprep.mubr.bf16.mxu0 0
        %722 = vmatmul.mubr.bf16.gmra.mrb[0].mxu0 %v565
        %v723 = vpop.f32.mrb[0].mxu0
        %v724 = vadd.f32 0.0, %v723
        %v725 = vpop.f32.mrb[0].mxu0
        %v726 = vadd.f32 0.0, %v725
        %v727 = vpop.f32.mrb[0].mxu0
        %v728 = vadd.f32 0.0, %v727
        %v729 = vpop.f32.mrb[0].mxu0
        %v730 = vadd.f32 0.0, %v729
        %731 = vmatprep.mubr.bf16.mxu0 0
        %732 = vmatmul.mubr.bf16.gmra.mrb[0].mxu0 %v568
        %v733 = vpop.f32.mrb[0].mxu0
        %v734 = vadd.f32 0.0, %v733
        %v735 = vpop.f32.mrb[0].mxu0
        %v736 = vadd.f32 0.0, %v735
        %v737 = vpop.f32.mrb[0].mxu0
        %v738 = vadd.f32 0.0, %v737
        %v739 = vpop.f32.mrb[0].mxu0
        %v740 = vadd.f32 0.0, %v739
        %741 = vmatprep.mubr.bf16.mxu0 0
        %742 = vmatmul.mubr.bf16.gmra.mrb[0].mxu0 %v571
        %v743 = vpop.f32.mrb[0].mxu0
        %v744 = vadd.f32 0.0, %v743
        %v745 = vpop.f32.mrb[0].mxu0
        %v746 = vadd.f32 0.0, %v745
        %v747 = vpop.f32.mrb[0].mxu0
        %v748 = vadd.f32 0.0, %v747
        %v749 = vpop.f32.mrb[0].mxu0
        %v750 = vadd.f32 0.0, %v749
        %751 = vmatprep.mubr.bf16.mxu0 0
        %752 = vmatmul.mubr.bf16.gmra.mrb[0].mxu0 %v574
        %v753 = vpop.f32.mrb[0].mxu0
        %v754 = vadd.f32 0.0, %v753
        %v755 = vpop.f32.mrb[0].mxu0
        %v756 = vadd.f32 0.0, %v755
        %v757 = vpop.f32.mrb[0].mxu0
        %v758 = vadd.f32 0.0, %v757
        %v759 = vpop.f32.mrb[0].mxu0
        %v760 = vadd.f32 0.0, %v759
        %761 = vmatprep.mubr.bf16.mxu0 0
        %762 = vmatmul.mubr.bf16.gmra.mrb[0].mxu0 %v577
        %v763 = vpop.f32.mrb[0].mxu0
        %v764 = vadd.f32 0.0, %v763
        %v765 = vpop.f32.mrb[0].mxu0
        %v766 = vadd.f32 0.0, %v765
        %v767 = vpop.f32.mrb[0].mxu0
        %v768 = vadd.f32 0.0, %v767
        %v769 = vpop.f32.mrb[0].mxu0
        %v770 = vadd.f32 0.0, %v769
        %771 = vmatprep.mubr.bf16.mxu0 0
        %772 = vmatmul.mubr.bf16.gmra.mrb[0].mxu0 %v580
        %v773 = vpop.f32.mrb[0].mxu0
        %v774 = vadd.f32 0.0, %v773
        %v775 = vpop.f32.mrb[0].mxu0
        %v776 = vadd.f32 0.0, %v775
        %v777 = vpop.f32.mrb[0].mxu0
        %v778 = vadd.f32 0.0, %v777
        %v779 = vpop.f32.mrb[0].mxu0
        %v780 = vadd.f32 0.0, %v779
        %781 = vdwg.mxu0
        %782 = vxpose.xlu0.c.b16.start [1/8] %v479, 128
        %783 = vxpose.xlu0.c.b16.cont [2/8] 0, 128
        %784 = vxpose.xlu0.c.b16.cont [3/8] 0, 128
        %785 = vxpose.xlu0.c.b16.cont [4/8] 0, 128
        %786 = vxpose.xlu0.c.b16.cont [5/8] 0, 128
        %787 = vxpose.xlu0.c.b16.cont [6/8] 0, 128
        %788 = vxpose.xlu0.c.b16.cont [7/8] 0, 128
        %789 = vxpose.xlu0.c.b16.end [8/8] 0, 128
        %v790 = vpop.trf.xlu0
        %v791 = vpop.trf.xlu0
        %v792 = vpop.trf.xlu0
        %v793 = vpop.trf.xlu0
        %v794 = vpop.trf.xlu0
        %v795 = vpop.trf.xlu0
        %v796 = vpop.trf.xlu0
        %v797 = vpop.trf.xlu0
        %798 = vxpose.xlu0.c.b16.start [1/8] %v480, 128
        %799 = vxpose.xlu0.c.b16.cont [2/8] 0, 128
        %800 = vxpose.xlu0.c.b16.cont [3/8] 0, 128
        %801 = vxpose.xlu0.c.b16.cont [4/8] 0, 128
        %802 = vxpose.xlu0.c.b16.cont [5/8] 0, 128
        %803 = vxpose.xlu0.c.b16.cont [6/8] 0, 128
        %804 = vxpose.xlu0.c.b16.cont [7/8] 0, 128
        %805 = vxpose.xlu0.c.b16.end [8/8] 0, 128
        %v806 = vpop.trf.xlu0
        %v807 = vpop.trf.xlu0
        %v808 = vpop.trf.xlu0
        %v809 = vpop.trf.xlu0
        %v810 = vpop.trf.xlu0
        %v811 = vpop.trf.xlu0
        %v812 = vpop.trf.xlu0
        %v813 = vpop.trf.xlu0
        %v815 = vsel %vm533, %v790, 0
        %v818 = vsel %vm533, %v791, 0
        %v821 = vsel %vm533, %v792, 0
        %v824 = vsel %vm533, %v793, 0
        %v827 = vsel %vm533, %v794, 0
        %v830 = vsel %vm533, %v795, 0
        %v833 = vsel %vm533, %v796, 0
        %v836 = vsel %vm533, %v797, 0
        %v839 = vsel %vm533, %v806, 0
        %v842 = vsel %vm533, %v807, 0
        %v845 = vsel %vm533, %v808, 0
        %v848 = vsel %vm533, %v809, 0
        %v851 = vsel %vm533, %v810, 0
        %v854 = vsel %vm533, %v811, 0
        %v857 = vsel %vm533, %v812, 0
        %v860 = vsel %vm533, %v813, 0
        %v863 = vsel %vm582, %v487, 0
        %v866 = vsel %vm582, %v488, 0
        %868 = vmatprep.subr.bf16.mxu0 %v866
        %869 = vmatpush1.bf16.msra.mxu0 %v863
        %870 = vmatprep.subr.bf16.mxu0 0
        %871 = vmatpush1.bf16.msra.mxu0 0
        %872 = vmatprep.subr.bf16.mxu0 0
        %873 = vmatpush1.bf16.msra.mxu0 0
        %874 = vmatprep.subr.bf16.mxu0 0
        %875 = vmatpush1.bf16.msra.mxu0 0
        %876 = vmatprep.subr.bf16.mxu0 0
        %877 = vmatpush1.bf16.msra.mxu0 0
        %878 = vmatprep.subr.bf16.mxu0 0
        %879 = vmatpush1.bf16.msra.mxu0 0
        %880 = vmatprep.subr.bf16.mxu0 0
        %881 = vmatpush1.bf16.msra.mxu0 0
        %882 = vmatprep.subr.bf16.mxu0 0
        %883 = vmatpush1.bf16.msra.mxu0 0
        %884 = vmatprep.subr.bf16.mxu0 0
        %885 = vmatpush1.bf16.msra.mxu0 0
        %886 = vmatprep.subr.bf16.mxu0 0
        %887 = vmatpush1.bf16.msra.mxu0 0
        %888 = vmatprep.subr.bf16.mxu0 0
        %889 = vmatpush1.bf16.msra.mxu0 0
        %890 = vmatprep.subr.bf16.mxu0 0
        %891 = vmatpush1.bf16.msra.mxu0 0
        %892 = vmatprep.subr.bf16.mxu0 0
        %893 = vmatpush1.bf16.msra.mxu0 0
        %894 = vmatprep.subr.bf16.mxu0 0
        %895 = vmatpush1.bf16.msra.mxu0 0
        %896 = vmatprep.subr.bf16.mxu0 0
        %897 = vmatpush1.bf16.msra.mxu0 0
        %898 = vmatprep.subr.bf16.mxu0 0
        %899 = vmatpush1.bf16.msra.mxu0 0
        %900 = vmatprep.mubr.bf16.mxu0 0
        %901 = vmatmul.mubr.bf16.gmra.mrb[0].mxu0 %v815
        %v902 = vpop.f32.mrb[0].mxu0
        %v903 = vadd.f32 0.0, %v902
        %v904 = vpop.f32.mrb[0].mxu0
        %v905 = vadd.f32 0.0, %v904
        %v906 = vpop.f32.mrb[0].mxu0
        %v907 = vadd.f32 0.0, %v906
        %v908 = vpop.f32.mrb[0].mxu0
        %v909 = vadd.f32 0.0, %v908
        %910 = vmatprep.mubr.bf16.mxu0 0
        %911 = vmatmul.mubr.bf16.gmra.mrb[0].mxu0 %v818
        %v912 = vpop.f32.mrb[0].mxu0
        %v913 = vadd.f32 0.0, %v912
        %v914 = vpop.f32.mrb[0].mxu0
        %v915 = vadd.f32 0.0, %v914
        %v916 = vpop.f32.mrb[0].mxu0
        %v917 = vadd.f32 0.0, %v916
        %v918 = vpop.f32.mrb[0].mxu0
        %v919 = vadd.f32 0.0, %v918
        %920 = vmatprep.mubr.bf16.mxu0 0
        %921 = vmatmul.mubr.bf16.gmra.mrb[0].mxu0 %v821
        %v922 = vpop.f32.mrb[0].mxu0
        %v923 = vadd.f32 0.0, %v922
        %v924 = vpop.f32.mrb[0].mxu0
        %v925 = vadd.f32 0.0, %v924
        %v926 = vpop.f32.mrb[0].mxu0
        %v927 = vadd.f32 0.0, %v926
        %v928 = vpop.f32.mrb[0].mxu0
        %v929 = vadd.f32 0.0, %v928
        %930 = vmatprep.mubr.bf16.mxu0 0
        %931 = vmatmul.mubr.bf16.gmra.mrb[0].mxu0 %v824
        %v932 = vpop.f32.mrb[0].mxu0
        %v933 = vadd.f32 0.0, %v932
        %v934 = vpop.f32.mrb[0].mxu0
        %v935 = vadd.f32 0.0, %v934
        %v936 = vpop.f32.mrb[0].mxu0
        %v937 = vadd.f32 0.0, %v936
        %v938 = vpop.f32.mrb[0].mxu0
        %v939 = vadd.f32 0.0, %v938
        %940 = vmatprep.mubr.bf16.mxu0 0
        %941 = vmatmul.mubr.bf16.gmra.mrb[0].mxu0 %v827
        %v942 = vpop.f32.mrb[0].mxu0
        %v943 = vadd.f32 0.0, %v942
        %v944 = vpop.f32.mrb[0].mxu0
        %v945 = vadd.f32 0.0, %v944
        %v946 = vpop.f32.mrb[0].mxu0
        %v947 = vadd.f32 0.0, %v946
        %v948 = vpop.f32.mrb[0].mxu0
        %v949 = vadd.f32 0.0, %v948
        %950 = vmatprep.mubr.bf16.mxu0 0
        %951 = vmatmul.mubr.bf16.gmra.mrb[0].mxu0 %v830
        %v952 = vpop.f32.mrb[0].mxu0
        %v953 = vadd.f32 0.0, %v952
        %v954 = vpop.f32.mrb[0].mxu0
        %v955 = vadd.f32 0.0, %v954
        %v956 = vpop.f32.mrb[0].mxu0
        %v957 = vadd.f32 0.0, %v956
        %v958 = vpop.f32.mrb[0].mxu0
        %v959 = vadd.f32 0.0, %v958
        %960 = vmatprep.mubr.bf16.mxu0 0
        %961 = vmatmul.mubr.bf16.gmra.mrb[0].mxu0 %v833
        %v962 = vpop.f32.mrb[0].mxu0
        %v963 = vadd.f32 0.0, %v962
        %v964 = vpop.f32.mrb[0].mxu0
        %v965 = vadd.f32 0.0, %v964
        %v966 = vpop.f32.mrb[0].mxu0
        %v967 = vadd.f32 0.0, %v966
        %v968 = vpop.f32.mrb[0].mxu0
        %v969 = vadd.f32 0.0, %v968
        %970 = vmatprep.mubr.bf16.mxu0 0
        %971 = vmatmul.mubr.bf16.gmra.mrb[0].mxu0 %v836
        %v972 = vpop.f32.mrb[0].mxu0
        %v973 = vadd.f32 0.0, %v972
        %v974 = vpop.f32.mrb[0].mxu0
        %v975 = vadd.f32 0.0, %v974
        %v976 = vpop.f32.mrb[0].mxu0
        %v977 = vadd.f32 0.0, %v976
        %v978 = vpop.f32.mrb[0].mxu0
        %v979 = vadd.f32 0.0, %v978
        %980 = vmatprep.mubr.bf16.mxu0 0
        %981 = vmatmul.mubr.bf16.gmra.mrb[0].mxu0 %v839
        %v982 = vpop.f32.mrb[0].mxu0
        %v983 = vadd.f32 0.0, %v982
        %v984 = vpop.f32.mrb[0].mxu0
        %v985 = vadd.f32 0.0, %v984
        %v986 = vpop.f32.mrb[0].mxu0
        %v987 = vadd.f32 0.0, %v986
        %v988 = vpop.f32.mrb[0].mxu0
        %v989 = vadd.f32 0.0, %v988
        %990 = vmatprep.mubr.bf16.mxu0 0
        %991 = vmatmul.mubr.bf16.gmra.mrb[0].mxu0 %v842
        %v992 = vpop.f32.mrb[0].mxu0
        %v993 = vadd.f32 0.0, %v992
        %v994 = vpop.f32.mrb[0].mxu0
        %v995 = vadd.f32 0.0, %v994
        %v996 = vpop.f32.mrb[0].mxu0
        %v997 = vadd.f32 0.0, %v996
        %v998 = vpop.f32.mrb[0].mxu0
        %v999 = vadd.f32 0.0, %v998
        %1000 = vmatprep.mubr.bf16.mxu0 0
        %1001 = vmatmul.mubr.bf16.gmra.mrb[0].mxu0 %v845
        %v1002 = vpop.f32.mrb[0].mxu0
        %v1003 = vadd.f32 0.0, %v1002
        %v1004 = vpop.f32.mrb[0].mxu0
        %v1005 = vadd.f32 0.0, %v1004
        %v1006 = vpop.f32.mrb[0].mxu0
        %v1007 = vadd.f32 0.0, %v1006
        %v1008 = vpop.f32.mrb[0].mxu0
        %v1009 = vadd.f32 0.0, %v1008
        %1010 = vmatprep.mubr.bf16.mxu0 0
        %1011 = vmatmul.mubr.bf16.gmra.mrb[0].mxu0 %v848
        %v1012 = vpop.f32.mrb[0].mxu0
        %v1013 = vadd.f32 0.0, %v1012
        %v1014 = vpop.f32.mrb[0].mxu0
        %v1015 = vadd.f32 0.0, %v1014
        %v1016 = vpop.f32.mrb[0].mxu0
        %v1017 = vadd.f32 0.0, %v1016
        %v1018 = vpop.f32.mrb[0].mxu0
        %v1019 = vadd.f32 0.0, %v1018
        %1020 = vmatprep.mubr.bf16.mxu0 0
        %1021 = vmatmul.mubr.bf16.gmra.mrb[0].mxu0 %v851
        %v1022 = vpop.f32.mrb[0].mxu0
        %v1023 = vadd.f32 0.0, %v1022
        %v1024 = vpop.f32.mrb[0].mxu0
        %v1025 = vadd.f32 0.0, %v1024
        %v1026 = vpop.f32.mrb[0].mxu0
        %v1027 = vadd.f32 0.0, %v1026
        %v1028 = vpop.f32.mrb[0].mxu0
        %v1029 = vadd.f32 0.0, %v1028
        %1030 = vmatprep.mubr.bf16.mxu0 0
        %1031 = vmatmul.mubr.bf16.gmra.mrb[0].mxu0 %v854
        %v1032 = vpop.f32.mrb[0].mxu0
        %v1033 = vadd.f32 0.0, %v1032
        %v1034 = vpop.f32.mrb[0].mxu0
        %v1035 = vadd.f32 0.0, %v1034
        %v1036 = vpop.f32.mrb[0].mxu0
        %v1037 = vadd.f32 0.0, %v1036
        %v1038 = vpop.f32.mrb[0].mxu0
        %v1039 = vadd.f32 0.0, %v1038
        %1040 = vmatprep.mubr.bf16.mxu0 0
        %1041 = vmatmul.mubr.bf16.gmra.mrb[0].mxu0 %v857
        %v1042 = vpop.f32.mrb[0].mxu0
        %v1043 = vadd.f32 0.0, %v1042
        %v1044 = vpop.f32.mrb[0].mxu0
        %v1045 = vadd.f32 0.0, %v1044
        %v1046 = vpop.f32.mrb[0].mxu0
        %v1047 = vadd.f32 0.0, %v1046
        %v1048 = vpop.f32.mrb[0].mxu0
        %v1049 = vadd.f32 0.0, %v1048
        %1050 = vmatprep.mubr.bf16.mxu0 0
        %1051 = vmatmul.mubr.bf16.gmra.mrb[0].mxu0 %v860
        %v1052 = vpop.f32.mrb[0].mxu0
        %v1053 = vadd.f32 0.0, %v1052
        %v1054 = vpop.f32.mrb[0].mxu0
        %v1055 = vadd.f32 0.0, %v1054
        %v1056 = vpop.f32.mrb[0].mxu0
        %v1057 = vadd.f32 0.0, %v1056
        %v1058 = vpop.f32.mrb[0].mxu0
        %v1059 = vadd.f32 0.0, %v1058
        %1060 = vdwg.mxu0
        %1061 = vxpose.xlu0.c.b16.start [1/8] %v481, 128
        %1062 = vxpose.xlu0.c.b16.cont [2/8] 0, 128
        %1063 = vxpose.xlu0.c.b16.cont [3/8] 0, 128
        %1064 = vxpose.xlu0.c.b16.cont [4/8] 0, 128
        %1065 = vxpose.xlu0.c.b16.cont [5/8] 0, 128
        %1066 = vxpose.xlu0.c.b16.cont [6/8] 0, 128
        %1067 = vxpose.xlu0.c.b16.cont [7/8] 0, 128
        %1068 = vxpose.xlu0.c.b16.end [8/8] 0, 128
        %v1069 = vpop.trf.xlu0
        %v1070 = vpop.trf.xlu0
        %v1071 = vpop.trf.xlu0
        %v1072 = vpop.trf.xlu0
        %v1073 = vpop.trf.xlu0
        %v1074 = vpop.trf.xlu0
        %v1075 = vpop.trf.xlu0
        %v1076 = vpop.trf.xlu0
        %1077 = vxpose.xlu0.c.b16.start [1/8] %v482, 128
        %1078 = vxpose.xlu0.c.b16.cont [2/8] 0, 128
        %1079 = vxpose.xlu0.c.b16.cont [3/8] 0, 128
        %1080 = vxpose.xlu0.c.b16.cont [4/8] 0, 128
        %1081 = vxpose.xlu0.c.b16.cont [5/8] 0, 128
        %1082 = vxpose.xlu0.c.b16.cont [6/8] 0, 128
        %1083 = vxpose.xlu0.c.b16.cont [7/8] 0, 128
        %1084 = vxpose.xlu0.c.b16.end [8/8] 0, 128
        %v1085 = vpop.trf.xlu0
        %v1086 = vpop.trf.xlu0
        %v1087 = vpop.trf.xlu0
        %v1088 = vpop.trf.xlu0
        %v1089 = vpop.trf.xlu0
        %v1090 = vpop.trf.xlu0
        %v1091 = vpop.trf.xlu0
        %v1092 = vpop.trf.xlu0
        %v1094 = vsel %vm533, %v1069, 0
        %v1097 = vsel %vm533, %v1070, 0
        %v1100 = vsel %vm533, %v1071, 0
        %v1103 = vsel %vm533, %v1072, 0
        %v1106 = vsel %vm533, %v1073, 0
        %v1109 = vsel %vm533, %v1074, 0
        %v1112 = vsel %vm533, %v1075, 0
        %v1115 = vsel %vm533, %v1076, 0
        %v1118 = vsel %vm533, %v1085, 0
        %v1121 = vsel %vm533, %v1086, 0
        %v1124 = vsel %vm533, %v1087, 0
        %v1127 = vsel %vm533, %v1088, 0
        %v1130 = vsel %vm533, %v1089, 0
        %v1133 = vsel %vm533, %v1090, 0
        %v1136 = vsel %vm533, %v1091, 0
        %v1139 = vsel %vm533, %v1092, 0
        %v1142 = vsel %vm582, %v489, 0
        %v1145 = vsel %vm582, %v490, 0
        %1147 = vmatprep.subr.bf16.mxu0 %v1145
        %1148 = vmatpush1.bf16.msra.mxu0 %v1142
        %1149 = vmatprep.subr.bf16.mxu0 0
        %1150 = vmatpush1.bf16.msra.mxu0 0
        %1151 = vmatprep.subr.bf16.mxu0 0
        %1152 = vmatpush1.bf16.msra.mxu0 0
        %1153 = vmatprep.subr.bf16.mxu0 0
        %1154 = vmatpush1.bf16.msra.mxu0 0
        %1155 = vmatprep.subr.bf16.mxu0 0
        %1156 = vmatpush1.bf16.msra.mxu0 0
        %1157 = vmatprep.subr.bf16.mxu0 0
        %1158 = vmatpush1.bf16.msra.mxu0 0
        %1159 = vmatprep.subr.bf16.mxu0 0
        %1160 = vmatpush1.bf16.msra.mxu0 0
        %1161 = vmatprep.subr.bf16.mxu0 0
        %1162 = vmatpush1.bf16.msra.mxu0 0
        %1163 = vmatprep.subr.bf16.mxu0 0
        %1164 = vmatpush1.bf16.msra.mxu0 0
        %1165 = vmatprep.subr.bf16.mxu0 0
        %1166 = vmatpush1.bf16.msra.mxu0 0
        %1167 = vmatprep.subr.bf16.mxu0 0
        %1168 = vmatpush1.bf16.msra.mxu0 0
        %1169 = vmatprep.subr.bf16.mxu0 0
        %1170 = vmatpush1.bf16.msra.mxu0 0
        %1171 = vmatprep.subr.bf16.mxu0 0
        %1172 = vmatpush1.bf16.msra.mxu0 0
        %1173 = vmatprep.subr.bf16.mxu0 0
        %1174 = vmatpush1.bf16.msra.mxu0 0
        %1175 = vmatprep.subr.bf16.mxu0 0
        %1176 = vmatpush1.bf16.msra.mxu0 0
        %1177 = vmatprep.subr.bf16.mxu0 0
        %1178 = vmatpush1.bf16.msra.mxu0 0
        %1179 = vmatprep.mubr.bf16.mxu0 0
        %1180 = vmatmul.mubr.bf16.gmra.mrb[0].mxu0 %v1094
        %v1181 = vpop.f32.mrb[0].mxu0
        %v1182 = vadd.f32 0.0, %v1181
        %v1183 = vpop.f32.mrb[0].mxu0
        %v1184 = vadd.f32 0.0, %v1183
        %v1185 = vpop.f32.mrb[0].mxu0
        %v1186 = vadd.f32 0.0, %v1185
        %v1187 = vpop.f32.mrb[0].mxu0
        %v1188 = vadd.f32 0.0, %v1187
        %1189 = vmatprep.mubr.bf16.mxu0 0
        %1190 = vmatmul.mubr.bf16.gmra.mrb[0].mxu0 %v1097
        %v1191 = vpop.f32.mrb[0].mxu0
        %v1192 = vadd.f32 0.0, %v1191
        %v1193 = vpop.f32.mrb[0].mxu0
        %v1194 = vadd.f32 0.0, %v1193
        %v1195 = vpop.f32.mrb[0].mxu0
        %v1196 = vadd.f32 0.0, %v1195
        %v1197 = vpop.f32.mrb[0].mxu0
        %v1198 = vadd.f32 0.0, %v1197
        %1199 = vmatprep.mubr.bf16.mxu0 0
        %1200 = vmatmul.mubr.bf16.gmra.mrb[0].mxu0 %v1100
        %v1201 = vpop.f32.mrb[0].mxu0
        %v1202 = vadd.f32 0.0, %v1201
        %v1203 = vpop.f32.mrb[0].mxu0
        %v1204 = vadd.f32 0.0, %v1203
        %v1205 = vpop.f32.mrb[0].mxu0
        %v1206 = vadd.f32 0.0, %v1205
        %v1207 = vpop.f32.mrb[0].mxu0
        %v1208 = vadd.f32 0.0, %v1207
        %1209 = vmatprep.mubr.bf16.mxu0 0
        %1210 = vmatmul.mubr.bf16.gmra.mrb[0].mxu0 %v1103
        %v1211 = vpop.f32.mrb[0].mxu0
        %v1212 = vadd.f32 0.0, %v1211
        %v1213 = vpop.f32.mrb[0].mxu0
        %v1214 = vadd.f32 0.0, %v1213
        %v1215 = vpop.f32.mrb[0].mxu0
        %v1216 = vadd.f32 0.0, %v1215
        %v1217 = vpop.f32.mrb[0].mxu0
        %v1218 = vadd.f32 0.0, %v1217
        %1219 = vmatprep.mubr.bf16.mxu0 0
        %1220 = vmatmul.mubr.bf16.gmra.mrb[0].mxu0 %v1106
        %v1221 = vpop.f32.mrb[0].mxu0
        %v1222 = vadd.f32 0.0, %v1221
        %v1223 = vpop.f32.mrb[0].mxu0
        %v1224 = vadd.f32 0.0, %v1223
        %v1225 = vpop.f32.mrb[0].mxu0
        %v1226 = vadd.f32 0.0, %v1225
        %v1227 = vpop.f32.mrb[0].mxu0
        %v1228 = vadd.f32 0.0, %v1227
        %1229 = vmatprep.mubr.bf16.mxu0 0
        %1230 = vmatmul.mubr.bf16.gmra.mrb[0].mxu0 %v1109
        %v1231 = vpop.f32.mrb[0].mxu0
        %v1232 = vadd.f32 0.0, %v1231
        %v1233 = vpop.f32.mrb[0].mxu0
        %v1234 = vadd.f32 0.0, %v1233
        %v1235 = vpop.f32.mrb[0].mxu0
        %v1236 = vadd.f32 0.0, %v1235
        %v1237 = vpop.f32.mrb[0].mxu0
        %v1238 = vadd.f32 0.0, %v1237
        %1239 = vmatprep.mubr.bf16.mxu0 0
        %1240 = vmatmul.mubr.bf16.gmra.mrb[0].mxu0 %v1112
        %v1241 = vpop.f32.mrb[0].mxu0
        %v1242 = vadd.f32 0.0, %v1241
        %v1243 = vpop.f32.mrb[0].mxu0
        %v1244 = vadd.f32 0.0, %v1243
        %v1245 = vpop.f32.mrb[0].mxu0
        %v1246 = vadd.f32 0.0, %v1245
        %v1247 = vpop.f32.mrb[0].mxu0
        %v1248 = vadd.f32 0.0, %v1247
        %1249 = vmatprep.mubr.bf16.mxu0 0
        %1250 = vmatmul.mubr.bf16.gmra.mrb[0].mxu0 %v1115
        %v1251 = vpop.f32.mrb[0].mxu0
        %v1252 = vadd.f32 0.0, %v1251
        %v1253 = vpop.f32.mrb[0].mxu0
        %v1254 = vadd.f32 0.0, %v1253
        %v1255 = vpop.f32.mrb[0].mxu0
        %v1256 = vadd.f32 0.0, %v1255
        %v1257 = vpop.f32.mrb[0].mxu0
        %v1258 = vadd.f32 0.0, %v1257
        %1259 = vmatprep.mubr.bf16.mxu0 0
        %1260 = vmatmul.mubr.bf16.gmra.mrb[0].mxu0 %v1118
        %v1261 = vpop.f32.mrb[0].mxu0
        %v1262 = vadd.f32 0.0, %v1261
        %v1263 = vpop.f32.mrb[0].mxu0
        %v1264 = vadd.f32 0.0, %v1263
        %v1265 = vpop.f32.mrb[0].mxu0
        %v1266 = vadd.f32 0.0, %v1265
        %v1267 = vpop.f32.mrb[0].mxu0
        %v1268 = vadd.f32 0.0, %v1267
        %1269 = vmatprep.mubr.bf16.mxu0 0
        %1270 = vmatmul.mubr.bf16.gmra.mrb[0].mxu0 %v1121
        %v1271 = vpop.f32.mrb[0].mxu0
        %v1272 = vadd.f32 0.0, %v1271
        %v1273 = vpop.f32.mrb[0].mxu0
        %v1274 = vadd.f32 0.0, %v1273
        %v1275 = vpop.f32.mrb[0].mxu0
        %v1276 = vadd.f32 0.0, %v1275
        %v1277 = vpop.f32.mrb[0].mxu0
        %v1278 = vadd.f32 0.0, %v1277
        %1279 = vmatprep.mubr.bf16.mxu0 0
        %1280 = vmatmul.mubr.bf16.gmra.mrb[0].mxu0 %v1124
        %v1281 = vpop.f32.mrb[0].mxu0
        %v1282 = vadd.f32 0.0, %v1281
        %v1283 = vpop.f32.mrb[0].mxu0
        %v1284 = vadd.f32 0.0, %v1283
        %v1285 = vpop.f32.mrb[0].mxu0
        %v1286 = vadd.f32 0.0, %v1285
        %v1287 = vpop.f32.mrb[0].mxu0
        %v1288 = vadd.f32 0.0, %v1287
        %1289 = vmatprep.mubr.bf16.mxu0 0
        %1290 = vmatmul.mubr.bf16.gmra.mrb[0].mxu0 %v1127
        %v1291 = vpop.f32.mrb[0].mxu0
        %v1292 = vadd.f32 0.0, %v1291
        %v1293 = vpop.f32.mrb[0].mxu0
        %v1294 = vadd.f32 0.0, %v1293
        %v1295 = vpop.f32.mrb[0].mxu0
        %v1296 = vadd.f32 0.0, %v1295
        %v1297 = vpop.f32.mrb[0].mxu0
        %v1298 = vadd.f32 0.0, %v1297
        %1299 = vmatprep.mubr.bf16.mxu0 0
        %1300 = vmatmul.mubr.bf16.gmra.mrb[0].mxu0 %v1130
        %v1301 = vpop.f32.mrb[0].mxu0
        %v1302 = vadd.f32 0.0, %v1301
        %v1303 = vpop.f32.mrb[0].mxu0
        %v1304 = vadd.f32 0.0, %v1303
        %v1305 = vpop.f32.mrb[0].mxu0
        %v1306 = vadd.f32 0.0, %v1305
        %v1307 = vpop.f32.mrb[0].mxu0
        %v1308 = vadd.f32 0.0, %v1307
        %1309 = vmatprep.mubr.bf16.mxu0 0
        %1310 = vmatmul.mubr.bf16.gmra.mrb[0].mxu0 %v1133
        %v1311 = vpop.f32.mrb[0].mxu0
        %v1312 = vadd.f32 0.0, %v1311
        %v1313 = vpop.f32.mrb[0].mxu0
        %v1314 = vadd.f32 0.0, %v1313
        %v1315 = vpop.f32.mrb[0].mxu0
        %v1316 = vadd.f32 0.0, %v1315
        %v1317 = vpop.f32.mrb[0].mxu0
        %v1318 = vadd.f32 0.0, %v1317
        %1319 = vmatprep.mubr.bf16.mxu0 0
        %1320 = vmatmul.mubr.bf16.gmra.mrb[0].mxu0 %v1136
        %v1321 = vpop.f32.mrb[0].mxu0
        %v1322 = vadd.f32 0.0, %v1321
        %v1323 = vpop.f32.mrb[0].mxu0
        %v1324 = vadd.f32 0.0, %v1323
        %v1325 = vpop.f32.mrb[0].mxu0
        %v1326 = vadd.f32 0.0, %v1325
        %v1327 = vpop.f32.mrb[0].mxu0
        %v1328 = vadd.f32 0.0, %v1327
        %1329 = vmatprep.mubr.bf16.mxu0 0
        %1330 = vmatmul.mubr.bf16.gmra.mrb[0].mxu0 %v1139
        %v1331 = vpop.f32.mrb[0].mxu0
        %v1332 = vadd.f32 0.0, %v1331
        %v1333 = vpop.f32.mrb[0].mxu0
        %v1334 = vadd.f32 0.0, %v1333
        %v1335 = vpop.f32.mrb[0].mxu0
        %v1336 = vadd.f32 0.0, %v1335
        %v1337 = vpop.f32.mrb[0].mxu0
        %v1338 = vadd.f32 0.0, %v1337
        %1339 = vdwg.mxu0
        %1340 = vxpose.xlu0.c.b16.start [1/8] %v483, 128
        %1341 = vxpose.xlu0.c.b16.cont [2/8] 0, 128
        %1342 = vxpose.xlu0.c.b16.cont [3/8] 0, 128
        %1343 = vxpose.xlu0.c.b16.cont [4/8] 0, 128
        %1344 = vxpose.xlu0.c.b16.cont [5/8] 0, 128
        %1345 = vxpose.xlu0.c.b16.cont [6/8] 0, 128
        %1346 = vxpose.xlu0.c.b16.cont [7/8] 0, 128
        %1347 = vxpose.xlu0.c.b16.end [8/8] 0, 128
        %v1348 = vpop.trf.xlu0
        %v1349 = vpop.trf.xlu0
        %v1350 = vpop.trf.xlu0
        %v1351 = vpop.trf.xlu0
        %v1352 = vpop.trf.xlu0
        %v1353 = vpop.trf.xlu0
        %v1354 = vpop.trf.xlu0
        %v1355 = vpop.trf.xlu0
        %1356 = vxpose.xlu0.c.b16.start [1/8] %v484, 128
        %1357 = vxpose.xlu0.c.b16.cont [2/8] 0, 128
        %1358 = vxpose.xlu0.c.b16.cont [3/8] 0, 128
        %1359 = vxpose.xlu0.c.b16.cont [4/8] 0, 128
        %1360 = vxpose.xlu0.c.b16.cont [5/8] 0, 128
        %1361 = vxpose.xlu0.c.b16.cont [6/8] 0, 128
        %1362 = vxpose.xlu0.c.b16.cont [7/8] 0, 128
        %1363 = vxpose.xlu0.c.b16.end [8/8] 0, 128
        %v1364 = vpop.trf.xlu0
        %v1365 = vpop.trf.xlu0
        %v1366 = vpop.trf.xlu0
        %v1367 = vpop.trf.xlu0
        %v1368 = vpop.trf.xlu0
        %v1369 = vpop.trf.xlu0
        %v1370 = vpop.trf.xlu0
        %v1371 = vpop.trf.xlu0
        %v1373 = vsel %vm533, %v1348, 0
        %v1376 = vsel %vm533, %v1349, 0
        %v1379 = vsel %vm533, %v1350, 0
        %v1382 = vsel %vm533, %v1351, 0
        %v1385 = vsel %vm533, %v1352, 0
        %v1388 = vsel %vm533, %v1353, 0
        %v1391 = vsel %vm533, %v1354, 0
        %v1394 = vsel %vm533, %v1355, 0
        %v1397 = vsel %vm533, %v1364, 0
        %v1400 = vsel %vm533, %v1365, 0
        %v1403 = vsel %vm533, %v1366, 0
        %v1406 = vsel %vm533, %v1367, 0
        %v1409 = vsel %vm533, %v1368, 0
        %v1412 = vsel %vm533, %v1369, 0
        %v1415 = vsel %vm533, %v1370, 0
        %v1418 = vsel %vm533, %v1371, 0
        %v1421 = vsel %vm582, %v491, 0
        %v1424 = vsel %vm582, %v492, 0
        %1426 = vmatprep.subr.bf16.mxu0 %v1424
        %1427 = vmatpush1.bf16.msra.mxu0 %v1421
        %1428 = vmatprep.subr.bf16.mxu0 0
        %1429 = vmatpush1.bf16.msra.mxu0 0
        %1430 = vmatprep.subr.bf16.mxu0 0
        %1431 = vmatpush1.bf16.msra.mxu0 0
        %1432 = vmatprep.subr.bf16.mxu0 0
        %1433 = vmatpush1.bf16.msra.mxu0 0
        %1434 = vmatprep.subr.bf16.mxu0 0
        %1435 = vmatpush1.bf16.msra.mxu0 0
        %1436 = vmatprep.subr.bf16.mxu0 0
        %1437 = vmatpush1.bf16.msra.mxu0 0
        %1438 = vmatprep.subr.bf16.mxu0 0
        %1439 = vmatpush1.bf16.msra.mxu0 0
        %1440 = vmatprep.subr.bf16.mxu0 0
        %1441 = vmatpush1.bf16.msra.mxu0 0
        %1442 = vmatprep.subr.bf16.mxu0 0
        %1443 = vmatpush1.bf16.msra.mxu0 0
        %1444 = vmatprep.subr.bf16.mxu0 0
        %1445 = vmatpush1.bf16.msra.mxu0 0
        %1446 = vmatprep.subr.bf16.mxu0 0
        %1447 = vmatpush1.bf16.msra.mxu0 0
        %1448 = vmatprep.subr.bf16.mxu0 0
        %1449 = vmatpush1.bf16.msra.mxu0 0
        %1450 = vmatprep.subr.bf16.mxu0 0
        %1451 = vmatpush1.bf16.msra.mxu0 0
        %1452 = vmatprep.subr.bf16.mxu0 0
        %1453 = vmatpush1.bf16.msra.mxu0 0
        %1454 = vmatprep.subr.bf16.mxu0 0
        %1455 = vmatpush1.bf16.msra.mxu0 0
        %1456 = vmatprep.subr.bf16.mxu0 0
        %1457 = vmatpush1.bf16.msra.mxu0 0
        %1458 = vmatprep.mubr.bf16.mxu0 0
        %1459 = vmatmul.mubr.bf16.gmra.mrb[0].mxu0 %v1373
        %v1460 = vpop.f32.mrb[0].mxu0
        %v1461 = vadd.f32 0.0, %v1460
        %v1462 = vpop.f32.mrb[0].mxu0
        %v1463 = vadd.f32 0.0, %v1462
        %v1464 = vpop.f32.mrb[0].mxu0
        %v1465 = vadd.f32 0.0, %v1464
        %v1466 = vpop.f32.mrb[0].mxu0
        %v1467 = vadd.f32 0.0, %v1466
        %1468 = vmatprep.mubr.bf16.mxu0 0
        %1469 = vmatmul.mubr.bf16.gmra.mrb[0].mxu0 %v1376
        %v1470 = vpop.f32.mrb[0].mxu0
        %v1471 = vadd.f32 0.0, %v1470
        %v1472 = vpop.f32.mrb[0].mxu0
        %v1473 = vadd.f32 0.0, %v1472
        %v1474 = vpop.f32.mrb[0].mxu0
        %v1475 = vadd.f32 0.0, %v1474
        %v1476 = vpop.f32.mrb[0].mxu0
        %v1477 = vadd.f32 0.0, %v1476
        %1478 = vmatprep.mubr.bf16.mxu0 0
        %1479 = vmatmul.mubr.bf16.gmra.mrb[0].mxu0 %v1379
        %v1480 = vpop.f32.mrb[0].mxu0
        %v1481 = vadd.f32 0.0, %v1480
        %v1482 = vpop.f32.mrb[0].mxu0
        %v1483 = vadd.f32 0.0, %v1482
        %v1484 = vpop.f32.mrb[0].mxu0
        %v1485 = vadd.f32 0.0, %v1484
        %v1486 = vpop.f32.mrb[0].mxu0
        %v1487 = vadd.f32 0.0, %v1486
        %1488 = vmatprep.mubr.bf16.mxu0 0
        %1489 = vmatmul.mubr.bf16.gmra.mrb[0].mxu0 %v1382
        %v1490 = vpop.f32.mrb[0].mxu0
        %v1491 = vadd.f32 0.0, %v1490
        %v1492 = vpop.f32.mrb[0].mxu0
        %v1493 = vadd.f32 0.0, %v1492
        %v1494 = vpop.f32.mrb[0].mxu0
        %v1495 = vadd.f32 0.0, %v1494
        %v1496 = vpop.f32.mrb[0].mxu0
        %v1497 = vadd.f32 0.0, %v1496
        %1498 = vmatprep.mubr.bf16.mxu0 0
        %1499 = vmatmul.mubr.bf16.gmra.mrb[0].mxu0 %v1385
        %v1500 = vpop.f32.mrb[0].mxu0
        %v1501 = vadd.f32 0.0, %v1500
        %v1502 = vpop.f32.mrb[0].mxu0
        %v1503 = vadd.f32 0.0, %v1502
        %v1504 = vpop.f32.mrb[0].mxu0
        %v1505 = vadd.f32 0.0, %v1504
        %v1506 = vpop.f32.mrb[0].mxu0
        %v1507 = vadd.f32 0.0, %v1506
        %1508 = vmatprep.mubr.bf16.mxu0 0
        %1509 = vmatmul.mubr.bf16.gmra.mrb[0].mxu0 %v1388
        %v1510 = vpop.f32.mrb[0].mxu0
        %v1511 = vadd.f32 0.0, %v1510
        %v1512 = vpop.f32.mrb[0].mxu0
        %v1513 = vadd.f32 0.0, %v1512
        %v1514 = vpop.f32.mrb[0].mxu0
        %v1515 = vadd.f32 0.0, %v1514
        %v1516 = vpop.f32.mrb[0].mxu0
        %v1517 = vadd.f32 0.0, %v1516
        %1518 = vmatprep.mubr.bf16.mxu0 0
        %1519 = vmatmul.mubr.bf16.gmra.mrb[0].mxu0 %v1391
        %v1520 = vpop.f32.mrb[0].mxu0
        %v1521 = vadd.f32 0.0, %v1520
        %v1522 = vpop.f32.mrb[0].mxu0
        %v1523 = vadd.f32 0.0, %v1522
        %v1524 = vpop.f32.mrb[0].mxu0
        %v1525 = vadd.f32 0.0, %v1524
        %v1526 = vpop.f32.mrb[0].mxu0
        %v1527 = vadd.f32 0.0, %v1526
        %1528 = vmatprep.mubr.bf16.mxu0 0
        %1529 = vmatmul.mubr.bf16.gmra.mrb[0].mxu0 %v1394
        %v1530 = vpop.f32.mrb[0].mxu0
        %v1531 = vadd.f32 0.0, %v1530
        %v1532 = vpop.f32.mrb[0].mxu0
        %v1533 = vadd.f32 0.0, %v1532
        %v1534 = vpop.f32.mrb[0].mxu0
        %v1535 = vadd.f32 0.0, %v1534
        %v1536 = vpop.f32.mrb[0].mxu0
        %v1537 = vadd.f32 0.0, %v1536
        %1538 = vmatprep.mubr.bf16.mxu0 0
        %1539 = vmatmul.mubr.bf16.gmra.mrb[0].mxu0 %v1397
        %v1540 = vpop.f32.mrb[0].mxu0
        %v1541 = vadd.f32 0.0, %v1540
        %v1542 = vpop.f32.mrb[0].mxu0
        %v1543 = vadd.f32 0.0, %v1542
        %v1544 = vpop.f32.mrb[0].mxu0
        %v1545 = vadd.f32 0.0, %v1544
        %v1546 = vpop.f32.mrb[0].mxu0
        %v1547 = vadd.f32 0.0, %v1546
        %1548 = vmatprep.mubr.bf16.mxu0 0
        %1549 = vmatmul.mubr.bf16.gmra.mrb[0].mxu0 %v1400
        %v1550 = vpop.f32.mrb[0].mxu0
        %v1551 = vadd.f32 0.0, %v1550
        %v1552 = vpop.f32.mrb[0].mxu0
        %v1553 = vadd.f32 0.0, %v1552
        %v1554 = vpop.f32.mrb[0].mxu0
        %v1555 = vadd.f32 0.0, %v1554
        %v1556 = vpop.f32.mrb[0].mxu0
        %v1557 = vadd.f32 0.0, %v1556
        %1558 = vmatprep.mubr.bf16.mxu0 0
        %1559 = vmatmul.mubr.bf16.gmra.mrb[0].mxu0 %v1403
        %v1560 = vpop.f32.mrb[0].mxu0
        %v1561 = vadd.f32 0.0, %v1560
        %v1562 = vpop.f32.mrb[0].mxu0
        %v1563 = vadd.f32 0.0, %v1562
        %v1564 = vpop.f32.mrb[0].mxu0
        %v1565 = vadd.f32 0.0, %v1564
        %v1566 = vpop.f32.mrb[0].mxu0
        %v1567 = vadd.f32 0.0, %v1566
        %1568 = vmatprep.mubr.bf16.mxu0 0
        %1569 = vmatmul.mubr.bf16.gmra.mrb[0].mxu0 %v1406
        %v1570 = vpop.f32.mrb[0].mxu0
        %v1571 = vadd.f32 0.0, %v1570
        %v1572 = vpop.f32.mrb[0].mxu0
        %v1573 = vadd.f32 0.0, %v1572
        %v1574 = vpop.f32.mrb[0].mxu0
        %v1575 = vadd.f32 0.0, %v1574
        %v1576 = vpop.f32.mrb[0].mxu0
        %v1577 = vadd.f32 0.0, %v1576
        %1578 = vmatprep.mubr.bf16.mxu0 0
        %1579 = vmatmul.mubr.bf16.gmra.mrb[0].mxu0 %v1409
        %v1580 = vpop.f32.mrb[0].mxu0
        %v1581 = vadd.f32 0.0, %v1580
        %v1582 = vpop.f32.mrb[0].mxu0
        %v1583 = vadd.f32 0.0, %v1582
        %v1584 = vpop.f32.mrb[0].mxu0
        %v1585 = vadd.f32 0.0, %v1584
        %v1586 = vpop.f32.mrb[0].mxu0
        %v1587 = vadd.f32 0.0, %v1586
        %1588 = vmatprep.mubr.bf16.mxu0 0
        %1589 = vmatmul.mubr.bf16.gmra.mrb[0].mxu0 %v1412
        %v1590 = vpop.f32.mrb[0].mxu0
        %v1591 = vadd.f32 0.0, %v1590
        %v1592 = vpop.f32.mrb[0].mxu0
        %v1593 = vadd.f32 0.0, %v1592
        %v1594 = vpop.f32.mrb[0].mxu0
        %v1595 = vadd.f32 0.0, %v1594
        %v1596 = vpop.f32.mrb[0].mxu0
        %v1597 = vadd.f32 0.0, %v1596
        %1598 = vmatprep.mubr.bf16.mxu0 0
        %1599 = vmatmul.mubr.bf16.gmra.mrb[0].mxu0 %v1415
        %v1600 = vpop.f32.mrb[0].mxu0
        %v1601 = vadd.f32 0.0, %v1600
        %v1602 = vpop.f32.mrb[0].mxu0
        %v1603 = vadd.f32 0.0, %v1602
        %v1604 = vpop.f32.mrb[0].mxu0
        %v1605 = vadd.f32 0.0, %v1604
        %v1606 = vpop.f32.mrb[0].mxu0
        %v1607 = vadd.f32 0.0, %v1606
        %1608 = vmatprep.mubr.bf16.mxu0 0
        %1609 = vmatmul.mubr.bf16.gmra.mrb[0].mxu0 %v1418
        %v1610 = vpop.f32.mrb[0].mxu0
        %v1611 = vadd.f32 0.0, %v1610
        %v1612 = vpop.f32.mrb[0].mxu0
        %v1613 = vadd.f32 0.0, %v1612
        %v1614 = vpop.f32.mrb[0].mxu0
        %v1615 = vadd.f32 0.0, %v1614
        %v1616 = vpop.f32.mrb[0].mxu0
        %v1617 = vadd.f32 0.0, %v1616
        %1618 = vdwg.mxu0
        %v1619 = vmax.f32 %v624, %v626
        %1620 = vmax.xlane.f32.xlu0 %v1619
        %v1621 = vpop.xlane.xlu0 %1620
        %v1622 = vmax.f32 %v628, %v630
        %1623 = vmax.xlane.f32.xlu0 %v1622
        %v1624 = vpop.xlane.xlu0 %1623
        %v1625 = vmax.f32 %v634, %v636
        %1626 = vmax.xlane.f32.xlu0 %v1625
        %v1627 = vpop.xlane.xlu0 %1626
        %v1628 = vmax.f32 %v638, %v640
        %1629 = vmax.xlane.f32.xlu0 %v1628
        %v1630 = vpop.xlane.xlu0 %1629
        %v1631 = vmax.f32 %v644, %v646
        %1632 = vmax.xlane.f32.xlu0 %v1631
        %v1633 = vpop.xlane.xlu0 %1632
        %v1634 = vmax.f32 %v648, %v650
        %1635 = vmax.xlane.f32.xlu0 %v1634
        %v1636 = vpop.xlane.xlu0 %1635
        %v1637 = vmax.f32 %v654, %v656
        %1638 = vmax.xlane.f32.xlu0 %v1637
        %v1639 = vpop.xlane.xlu0 %1638
        %v1640 = vmax.f32 %v658, %v660
        %1641 = vmax.xlane.f32.xlu0 %v1640
        %v1642 = vpop.xlane.xlu0 %1641
        %v1643 = vmax.f32 %v664, %v666
        %1644 = vmax.xlane.f32.xlu0 %v1643
        %v1645 = vpop.xlane.xlu0 %1644
        %v1646 = vmax.f32 %v668, %v670
        %1647 = vmax.xlane.f32.xlu0 %v1646
        %v1648 = vpop.xlane.xlu0 %1647
        %v1649 = vmax.f32 %v674, %v676
        %1650 = vmax.xlane.f32.xlu0 %v1649
        %v1651 = vpop.xlane.xlu0 %1650
        %v1652 = vmax.f32 %v678, %v680
        %1653 = vmax.xlane.f32.xlu0 %v1652
        %v1654 = vpop.xlane.xlu0 %1653
        %v1655 = vmax.f32 %v684, %v686
        %1656 = vmax.xlane.f32.xlu0 %v1655
        %v1657 = vpop.xlane.xlu0 %1656
        %v1658 = vmax.f32 %v688, %v690
        %1659 = vmax.xlane.f32.xlu0 %v1658
        %v1660 = vpop.xlane.xlu0 %1659
        %v1661 = vmax.f32 %v694, %v696
        %1662 = vmax.xlane.f32.xlu0 %v1661
        %v1663 = vpop.xlane.xlu0 %1662
        %v1664 = vmax.f32 %v698, %v700
        %1665 = vmax.xlane.f32.xlu0 %v1664
        %v1666 = vpop.xlane.xlu0 %1665
        %v1667 = vmax.f32 %v704, %v706
        %1668 = vmax.xlane.f32.xlu0 %v1667
        %v1669 = vpop.xlane.xlu0 %1668
        %v1670 = vmax.f32 %v708, %v710
        %1671 = vmax.xlane.f32.xlu0 %v1670
        %v1672 = vpop.xlane.xlu0 %1671
        %v1673 = vmax.f32 %v714, %v716
        %1674 = vmax.xlane.f32.xlu0 %v1673
        %v1675 = vpop.xlane.xlu0 %1674
        %v1676 = vmax.f32 %v718, %v720
        %1677 = vmax.xlane.f32.xlu0 %v1676
        %v1678 = vpop.xlane.xlu0 %1677
        %v1679 = vmax.f32 %v724, %v726
        %1680 = vmax.xlane.f32.xlu0 %v1679
        %v1681 = vpop.xlane.xlu0 %1680
        %v1682 = vmax.f32 %v728, %v730
        %1683 = vmax.xlane.f32.xlu0 %v1682
        %v1684 = vpop.xlane.xlu0 %1683
        %v1685 = vmax.f32 %v734, %v736
        %1686 = vmax.xlane.f32.xlu0 %v1685
        %v1687 = vpop.xlane.xlu0 %1686
        %v1688 = vmax.f32 %v738, %v740
        %1689 = vmax.xlane.f32.xlu0 %v1688
        %v1690 = vpop.xlane.xlu0 %1689
        %v1691 = vmax.f32 %v744, %v746
        %1692 = vmax.xlane.f32.xlu0 %v1691
        %v1693 = vpop.xlane.xlu0 %1692
        %v1694 = vmax.f32 %v748, %v750
        %1695 = vmax.xlane.f32.xlu0 %v1694
        %v1696 = vpop.xlane.xlu0 %1695
        %v1697 = vmax.f32 %v754, %v756
        %1698 = vmax.xlane.f32.xlu0 %v1697
        %v1699 = vpop.xlane.xlu0 %1698
        %v1700 = vmax.f32 %v758, %v760
        %1701 = vmax.xlane.f32.xlu0 %v1700
        %v1702 = vpop.xlane.xlu0 %1701
        %v1703 = vmax.f32 %v764, %v766
        %1704 = vmax.xlane.f32.xlu0 %v1703
        %v1705 = vpop.xlane.xlu0 %1704
        %v1706 = vmax.f32 %v768, %v770
        %1707 = vmax.xlane.f32.xlu0 %v1706
        %v1708 = vpop.xlane.xlu0 %1707
        %v1709 = vmax.f32 %v774, %v776
        %1710 = vmax.xlane.f32.xlu0 %v1709
        %v1711 = vpop.xlane.xlu0 %1710
        %v1712 = vmax.f32 %v778, %v780
        %1713 = vmax.xlane.f32.xlu0 %v1712
        %v1714 = vpop.xlane.xlu0 %1713
        %v1715 = vmax.f32 %v903, %v905
        %1716 = vmax.xlane.f32.xlu0 %v1715
        %v1717 = vpop.xlane.xlu0 %1716
        %v1718 = vmax.f32 %v907, %v909
        %1719 = vmax.xlane.f32.xlu0 %v1718
        %v1720 = vpop.xlane.xlu0 %1719
        %v1721 = vmax.f32 %v913, %v915
        %1722 = vmax.xlane.f32.xlu0 %v1721
        %v1723 = vpop.xlane.xlu0 %1722
        %v1724 = vmax.f32 %v917, %v919
        %1725 = vmax.xlane.f32.xlu0 %v1724
        %v1726 = vpop.xlane.xlu0 %1725
        %v1727 = vmax.f32 %v923, %v925
        %1728 = vmax.xlane.f32.xlu0 %v1727
        %v1729 = vpop.xlane.xlu0 %1728
        %v1730 = vmax.f32 %v927, %v929
        %1731 = vmax.xlane.f32.xlu0 %v1730
        %v1732 = vpop.xlane.xlu0 %1731
        %v1733 = vmax.f32 %v933, %v935
        %1734 = vmax.xlane.f32.xlu0 %v1733
        %v1735 = vpop.xlane.xlu0 %1734
        %v1736 = vmax.f32 %v937, %v939
        %1737 = vmax.xlane.f32.xlu0 %v1736
        %v1738 = vpop.xlane.xlu0 %1737
        %v1739 = vmax.f32 %v943, %v945
        %1740 = vmax.xlane.f32.xlu0 %v1739
        %v1741 = vpop.xlane.xlu0 %1740
        %v1742 = vmax.f32 %v947, %v949
        %1743 = vmax.xlane.f32.xlu0 %v1742
        %v1744 = vpop.xlane.xlu0 %1743
        %v1745 = vmax.f32 %v953, %v955
        %1746 = vmax.xlane.f32.xlu0 %v1745
        %v1747 = vpop.xlane.xlu0 %1746
        %v1748 = vmax.f32 %v957, %v959
        %1749 = vmax.xlane.f32.xlu0 %v1748
        %v1750 = vpop.xlane.xlu0 %1749
        %v1751 = vmax.f32 %v963, %v965
        %1752 = vmax.xlane.f32.xlu0 %v1751
        %v1753 = vpop.xlane.xlu0 %1752
        %v1754 = vmax.f32 %v967, %v969
        %1755 = vmax.xlane.f32.xlu0 %v1754
        %v1756 = vpop.xlane.xlu0 %1755
        %v1757 = vmax.f32 %v973, %v975
        %1758 = vmax.xlane.f32.xlu0 %v1757
        %v1759 = vpop.xlane.xlu0 %1758
        %v1760 = vmax.f32 %v977, %v979
        %1761 = vmax.xlane.f32.xlu0 %v1760
        %v1762 = vpop.xlane.xlu0 %1761
        %v1763 = vmax.f32 %v983, %v985
        %1764 = vmax.xlane.f32.xlu0 %v1763
        %v1765 = vpop.xlane.xlu0 %1764
        %v1766 = vmax.f32 %v987, %v989
        %1767 = vmax.xlane.f32.xlu0 %v1766
        %v1768 = vpop.xlane.xlu0 %1767
        %v1769 = vmax.f32 %v993, %v995
        %1770 = vmax.xlane.f32.xlu0 %v1769
        %v1771 = vpop.xlane.xlu0 %1770
        %v1772 = vmax.f32 %v997, %v999
        %1773 = vmax.xlane.f32.xlu0 %v1772
        %v1774 = vpop.xlane.xlu0 %1773
        %v1775 = vmax.f32 %v1003, %v1005
        %1776 = vmax.xlane.f32.xlu0 %v1775
        %v1777 = vpop.xlane.xlu0 %1776
        %v1778 = vmax.f32 %v1007, %v1009
        %1779 = vmax.xlane.f32.xlu0 %v1778
        %v1780 = vpop.xlane.xlu0 %1779
        %v1781 = vmax.f32 %v1013, %v1015
        %1782 = vmax.xlane.f32.xlu0 %v1781
        %v1783 = vpop.xlane.xlu0 %1782
        %v1784 = vmax.f32 %v1017, %v1019
        %1785 = vmax.xlane.f32.xlu0 %v1784
        %v1786 = vpop.xlane.xlu0 %1785
        %v1787 = vmax.f32 %v1023, %v1025
        %1788 = vmax.xlane.f32.xlu0 %v1787
        %v1789 = vpop.xlane.xlu0 %1788
        %v1790 = vmax.f32 %v1027, %v1029
        %1791 = vmax.xlane.f32.xlu0 %v1790
        %v1792 = vpop.xlane.xlu0 %1791
        %v1793 = vmax.f32 %v1033, %v1035
        %1794 = vmax.xlane.f32.xlu0 %v1793
        %v1795 = vpop.xlane.xlu0 %1794
        %v1796 = vmax.f32 %v1037, %v1039
        %1797 = vmax.xlane.f32.xlu0 %v1796
        %v1798 = vpop.xlane.xlu0 %1797
        %v1799 = vmax.f32 %v1043, %v1045
        %1800 = vmax.xlane.f32.xlu0 %v1799
        %v1801 = vpop.xlane.xlu0 %1800
        %v1802 = vmax.f32 %v1047, %v1049
        %1803 = vmax.xlane.f32.xlu0 %v1802
        %v1804 = vpop.xlane.xlu0 %1803
        %v1805 = vmax.f32 %v1053, %v1055
        %1806 = vmax.xlane.f32.xlu0 %v1805
        %v1807 = vpop.xlane.xlu0 %1806
        %v1808 = vmax.f32 %v1057, %v1059
        %1809 = vmax.xlane.f32.xlu0 %v1808
        %v1810 = vpop.xlane.xlu0 %1809
        %v1811 = vmax.f32 %v1182, %v1184
        %1812 = vmax.xlane.f32.xlu0 %v1811
        %v1813 = vpop.xlane.xlu0 %1812
        %v1814 = vmax.f32 %v1186, %v1188
        %1815 = vmax.xlane.f32.xlu0 %v1814
        %v1816 = vpop.xlane.xlu0 %1815
        %v1817 = vmax.f32 %v1192, %v1194
        %1818 = vmax.xlane.f32.xlu0 %v1817
        %v1819 = vpop.xlane.xlu0 %1818
        %v1820 = vmax.f32 %v1196, %v1198
        %1821 = vmax.xlane.f32.xlu0 %v1820
        %v1822 = vpop.xlane.xlu0 %1821
        %v1823 = vmax.f32 %v1202, %v1204
        %1824 = vmax.xlane.f32.xlu0 %v1823
        %v1825 = vpop.xlane.xlu0 %1824
        %v1826 = vmax.f32 %v1206, %v1208
        %1827 = vmax.xlane.f32.xlu0 %v1826
        %v1828 = vpop.xlane.xlu0 %1827
        %v1829 = vmax.f32 %v1212, %v1214
        %1830 = vmax.xlane.f32.xlu0 %v1829
        %v1831 = vpop.xlane.xlu0 %1830
        %v1832 = vmax.f32 %v1216, %v1218
        %1833 = vmax.xlane.f32.xlu0 %v1832
        %v1834 = vpop.xlane.xlu0 %1833
        %v1835 = vmax.f32 %v1222, %v1224
        %1836 = vmax.xlane.f32.xlu0 %v1835
        %v1837 = vpop.xlane.xlu0 %1836
        %v1838 = vmax.f32 %v1226, %v1228
        %1839 = vmax.xlane.f32.xlu0 %v1838
        %v1840 = vpop.xlane.xlu0 %1839
        %v1841 = vmax.f32 %v1232, %v1234
        %1842 = vmax.xlane.f32.xlu0 %v1841
        %v1843 = vpop.xlane.xlu0 %1842
        %v1844 = vmax.f32 %v1236, %v1238
        %1845 = vmax.xlane.f32.xlu0 %v1844
        %v1846 = vpop.xlane.xlu0 %1845
        %v1847 = vmax.f32 %v1242, %v1244
        %1848 = vmax.xlane.f32.xlu0 %v1847
        %v1849 = vpop.xlane.xlu0 %1848
        %v1850 = vmax.f32 %v1246, %v1248
        %1851 = vmax.xlane.f32.xlu0 %v1850
        %v1852 = vpop.xlane.xlu0 %1851
        %v1853 = vmax.f32 %v1252, %v1254
        %1854 = vmax.xlane.f32.xlu0 %v1853
        %v1855 = vpop.xlane.xlu0 %1854
        %v1856 = vmax.f32 %v1256, %v1258
        %1857 = vmax.xlane.f32.xlu0 %v1856
        %v1858 = vpop.xlane.xlu0 %1857
        %v1859 = vmax.f32 %v1262, %v1264
        %1860 = vmax.xlane.f32.xlu0 %v1859
        %v1861 = vpop.xlane.xlu0 %1860
        %v1862 = vmax.f32 %v1266, %v1268
        %1863 = vmax.xlane.f32.xlu0 %v1862
        %v1864 = vpop.xlane.xlu0 %1863
        %v1865 = vmax.f32 %v1272, %v1274
        %1866 = vmax.xlane.f32.xlu0 %v1865
        %v1867 = vpop.xlane.xlu0 %1866
        %v1868 = vmax.f32 %v1276, %v1278
        %1869 = vmax.xlane.f32.xlu0 %v1868
        %v1870 = vpop.xlane.xlu0 %1869
        %v1871 = vmax.f32 %v1282, %v1284
        %1872 = vmax.xlane.f32.xlu0 %v1871
        %v1873 = vpop.xlane.xlu0 %1872
        %v1874 = vmax.f32 %v1286, %v1288
        %1875 = vmax.xlane.f32.xlu0 %v1874
        %v1876 = vpop.xlane.xlu0 %1875
        %v1877 = vmax.f32 %v1292, %v1294
        %1878 = vmax.xlane.f32.xlu0 %v1877
        %v1879 = vpop.xlane.xlu0 %1878
        %v1880 = vmax.f32 %v1296, %v1298
        %1881 = vmax.xlane.f32.xlu0 %v1880
        %v1882 = vpop.xlane.xlu0 %1881
        %v1883 = vmax.f32 %v1302, %v1304
        %1884 = vmax.xlane.f32.xlu0 %v1883
        %v1885 = vpop.xlane.xlu0 %1884
        %v1886 = vmax.f32 %v1306, %v1308
        %1887 = vmax.xlane.f32.xlu0 %v1886
        %v1888 = vpop.xlane.xlu0 %1887
        %v1889 = vmax.f32 %v1312, %v1314
        %1890 = vmax.xlane.f32.xlu0 %v1889
        %v1891 = vpop.xlane.xlu0 %1890
        %v1892 = vmax.f32 %v1316, %v1318
        %1893 = vmax.xlane.f32.xlu0 %v1892
        %v1894 = vpop.xlane.xlu0 %1893
        %v1895 = vmax.f32 %v1322, %v1324
        %1896 = vmax.xlane.f32.xlu0 %v1895
        %v1897 = vpop.xlane.xlu0 %1896
        %v1898 = vmax.f32 %v1326, %v1328
        %1899 = vmax.xlane.f32.xlu0 %v1898
        %v1900 = vpop.xlane.xlu0 %1899
        %v1901 = vmax.f32 %v1332, %v1334
        %1902 = vmax.xlane.f32.xlu0 %v1901
        %v1903 = vpop.xlane.xlu0 %1902
        %v1904 = vmax.f32 %v1336, %v1338
        %1905 = vmax.xlane.f32.xlu0 %v1904
        %v1906 = vpop.xlane.xlu0 %1905
        %v1907 = vmax.f32 %v1461, %v1463
        %1908 = vmax.xlane.f32.xlu0 %v1907
        %v1909 = vpop.xlane.xlu0 %1908
        %v1910 = vmax.f32 %v1465, %v1467
        %1911 = vmax.xlane.f32.xlu0 %v1910
        %v1912 = vpop.xlane.xlu0 %1911
        %v1913 = vmax.f32 %v1471, %v1473
        %1914 = vmax.xlane.f32.xlu0 %v1913
        %v1915 = vpop.xlane.xlu0 %1914
        %v1916 = vmax.f32 %v1475, %v1477
        %1917 = vmax.xlane.f32.xlu0 %v1916
        %v1918 = vpop.xlane.xlu0 %1917
        %v1919 = vmax.f32 %v1481, %v1483
        %1920 = vmax.xlane.f32.xlu0 %v1919
        %v1921 = vpop.xlane.xlu0 %1920
        %v1922 = vmax.f32 %v1485, %v1487
        %1923 = vmax.xlane.f32.xlu0 %v1922
        %v1924 = vpop.xlane.xlu0 %1923
        %v1925 = vmax.f32 %v1491, %v1493
        %1926 = vmax.xlane.f32.xlu0 %v1925
        %v1927 = vpop.xlane.xlu0 %1926
        %v1928 = vmax.f32 %v1495, %v1497
        %1929 = vmax.xlane.f32.xlu0 %v1928
        %v1930 = vpop.xlane.xlu0 %1929
        %v1931 = vmax.f32 %v1501, %v1503
        %1932 = vmax.xlane.f32.xlu0 %v1931
        %v1933 = vpop.xlane.xlu0 %1932
        %v1934 = vmax.f32 %v1505, %v1507
        %1935 = vmax.xlane.f32.xlu0 %v1934
        %v1936 = vpop.xlane.xlu0 %1935
        %v1937 = vmax.f32 %v1511, %v1513
        %1938 = vmax.xlane.f32.xlu0 %v1937
        %v1939 = vpop.xlane.xlu0 %1938
        %v1940 = vmax.f32 %v1515, %v1517
        %1941 = vmax.xlane.f32.xlu0 %v1940
        %v1942 = vpop.xlane.xlu0 %1941
        %v1943 = vmax.f32 %v1521, %v1523
        %1944 = vmax.xlane.f32.xlu0 %v1943
        %v1945 = vpop.xlane.xlu0 %1944
        %v1946 = vmax.f32 %v1525, %v1527
        %1947 = vmax.xlane.f32.xlu0 %v1946
        %v1948 = vpop.xlane.xlu0 %1947
        %v1949 = vmax.f32 %v1531, %v1533
        %1950 = vmax.xlane.f32.xlu0 %v1949
        %v1951 = vpop.xlane.xlu0 %1950
        %v1952 = vmax.f32 %v1535, %v1537
        %1953 = vmax.xlane.f32.xlu0 %v1952
        %v1954 = vpop.xlane.xlu0 %1953
        %v1955 = vmax.f32 %v1541, %v1543
        %1956 = vmax.xlane.f32.xlu0 %v1955
        %v1957 = vpop.xlane.xlu0 %1956
        %v1958 = vmax.f32 %v1545, %v1547
        %1959 = vmax.xlane.f32.xlu0 %v1958
        %v1960 = vpop.xlane.xlu0 %1959
        %v1961 = vmax.f32 %v1551, %v1553
        %1962 = vmax.xlane.f32.xlu0 %v1961
        %v1963 = vpop.xlane.xlu0 %1962
        %v1964 = vmax.f32 %v1555, %v1557
        %1965 = vmax.xlane.f32.xlu0 %v1964
        %v1966 = vpop.xlane.xlu0 %1965
        %v1967 = vmax.f32 %v1561, %v1563
        %1968 = vmax.xlane.f32.xlu0 %v1967
        %v1969 = vpop.xlane.xlu0 %1968
        %v1970 = vmax.f32 %v1565, %v1567
        %1971 = vmax.xlane.f32.xlu0 %v1970
        %v1972 = vpop.xlane.xlu0 %1971
        %v1973 = vmax.f32 %v1571, %v1573
        %1974 = vmax.xlane.f32.xlu0 %v1973
        %v1975 = vpop.xlane.xlu0 %1974
        %v1976 = vmax.f32 %v1575, %v1577
        %1977 = vmax.xlane.f32.xlu0 %v1976
        %v1978 = vpop.xlane.xlu0 %1977
        %v1979 = vmax.f32 %v1581, %v1583
        %1980 = vmax.xlane.f32.xlu0 %v1979
        %v1981 = vpop.xlane.xlu0 %1980
        %v1982 = vmax.f32 %v1585, %v1587
        %1983 = vmax.xlane.f32.xlu0 %v1982
        %v1984 = vpop.xlane.xlu0 %1983
        %v1985 = vmax.f32 %v1591, %v1593
        %1986 = vmax.xlane.f32.xlu0 %v1985
        %v1987 = vpop.xlane.xlu0 %1986
        %v1988 = vmax.f32 %v1595, %v1597
        %1989 = vmax.xlane.f32.xlu0 %v1988
        %v1990 = vpop.xlane.xlu0 %1989
        %v1991 = vmax.f32 %v1601, %v1603
        %1992 = vmax.xlane.f32.xlu0 %v1991
        %v1993 = vpop.xlane.xlu0 %1992
        %v1994 = vmax.f32 %v1605, %v1607
        %1995 = vmax.xlane.f32.xlu0 %v1994
        %v1996 = vpop.xlane.xlu0 %1995
        %v1997 = vmax.f32 %v1611, %v1613
        %1998 = vmax.xlane.f32.xlu0 %v1997
        %v1999 = vpop.xlane.xlu0 %1998
        %v2000 = vmax.f32 %v1615, %v1617
        %2001 = vmax.xlane.f32.xlu0 %v2000
        %v2002 = vpop.xlane.xlu0 %2001
        %v2003 = vsub.f32 %v624, %v1621
        %v2004 = vsub.f32 %v626, %v1621
        %v2005 = vsub.f32 %v628, %v1624
        %v2006 = vsub.f32 %v630, %v1624
        %v2007 = vsub.f32 %v634, %v1627
        %v2008 = vsub.f32 %v636, %v1627
        %v2009 = vsub.f32 %v638, %v1630
        %v2010 = vsub.f32 %v640, %v1630
        %v2011 = vsub.f32 %v644, %v1633
        %v2012 = vsub.f32 %v646, %v1633
        %v2013 = vsub.f32 %v648, %v1636
        %v2014 = vsub.f32 %v650, %v1636
        %v2015 = vsub.f32 %v654, %v1639
        %v2016 = vsub.f32 %v656, %v1639
        %v2017 = vsub.f32 %v658, %v1642
        %v2018 = vsub.f32 %v660, %v1642
        %v2019 = vsub.f32 %v664, %v1645
        %v2020 = vsub.f32 %v666, %v1645
        %v2021 = vsub.f32 %v668, %v1648
        %v2022 = vsub.f32 %v670, %v1648
        %v2023 = vsub.f32 %v674, %v1651
        %v2024 = vsub.f32 %v676, %v1651
        %v2025 = vsub.f32 %v678, %v1654
        %v2026 = vsub.f32 %v680, %v1654
        %v2027 = vsub.f32 %v684, %v1657
        %v2028 = vsub.f32 %v686, %v1657
        %v2029 = vsub.f32 %v688, %v1660
        %v2030 = vsub.f32 %v690, %v1660
        %v2031 = vsub.f32 %v694, %v1663
        %v2032 = vsub.f32 %v696, %v1663
        %v2033 = vsub.f32 %v698, %v1666
        %v2034 = vsub.f32 %v700, %v1666
        %v2035 = vsub.f32 %v704, %v1669
        %v2036 = vsub.f32 %v706, %v1669
        %v2037 = vsub.f32 %v708, %v1672
        %v2038 = vsub.f32 %v710, %v1672
        %v2039 = vsub.f32 %v714, %v1675
        %v2040 = vsub.f32 %v716, %v1675
        %v2041 = vsub.f32 %v718, %v1678
        %v2042 = vsub.f32 %v720, %v1678
        %v2043 = vsub.f32 %v724, %v1681
        %v2044 = vsub.f32 %v726, %v1681
        %v2045 = vsub.f32 %v728, %v1684
        %v2046 = vsub.f32 %v730, %v1684
        %v2047 = vsub.f32 %v734, %v1687
        %v2048 = vsub.f32 %v736, %v1687
        %v2049 = vsub.f32 %v738, %v1690
        %v2050 = vsub.f32 %v740, %v1690
        %v2051 = vsub.f32 %v744, %v1693
        %v2052 = vsub.f32 %v746, %v1693
        %v2053 = vsub.f32 %v748, %v1696
        %v2054 = vsub.f32 %v750, %v1696
        %v2055 = vsub.f32 %v754, %v1699
        %v2056 = vsub.f32 %v756, %v1699
        %v2057 = vsub.f32 %v758, %v1702
        %v2058 = vsub.f32 %v760, %v1702
        %v2059 = vsub.f32 %v764, %v1705
        %v2060 = vsub.f32 %v766, %v1705
        %v2061 = vsub.f32 %v768, %v1708
        %v2062 = vsub.f32 %v770, %v1708
        %v2063 = vsub.f32 %v774, %v1711
        %v2064 = vsub.f32 %v776, %v1711
        %v2065 = vsub.f32 %v778, %v1714
        %v2066 = vsub.f32 %v780, %v1714
        %v2067 = vsub.f32 %v903, %v1717
        %v2068 = vsub.f32 %v905, %v1717
        %v2069 = vsub.f32 %v907, %v1720
        %v2070 = vsub.f32 %v909, %v1720
        %v2071 = vsub.f32 %v913, %v1723
        %v2072 = vsub.f32 %v915, %v1723
        %v2073 = vsub.f32 %v917, %v1726
        %v2074 = vsub.f32 %v919, %v1726
        %v2075 = vsub.f32 %v923, %v1729
        %v2076 = vsub.f32 %v925, %v1729
        %v2077 = vsub.f32 %v927, %v1732
        %v2078 = vsub.f32 %v929, %v1732
        %v2079 = vsub.f32 %v933, %v1735
        %v2080 = vsub.f32 %v935, %v1735
        %v2081 = vsub.f32 %v937, %v1738
        %v2082 = vsub.f32 %v939, %v1738
        %v2083 = vsub.f32 %v943, %v1741
        %v2084 = vsub.f32 %v945, %v1741
        %v2085 = vsub.f32 %v947, %v1744
        %v2086 = vsub.f32 %v949, %v1744
        %v2087 = vsub.f32 %v953, %v1747
        %v2088 = vsub.f32 %v955, %v1747
        %v2089 = vsub.f32 %v957, %v1750
        %v2090 = vsub.f32 %v959, %v1750
        %v2091 = vsub.f32 %v963, %v1753
        %v2092 = vsub.f32 %v965, %v1753
        %v2093 = vsub.f32 %v967, %v1756
        %v2094 = vsub.f32 %v969, %v1756
        %v2095 = vsub.f32 %v973, %v1759
        %v2096 = vsub.f32 %v975, %v1759
        %v2097 = vsub.f32 %v977, %v1762
        %v2098 = vsub.f32 %v979, %v1762
        %v2099 = vsub.f32 %v983, %v1765
        %v2100 = vsub.f32 %v985, %v1765
        %v2101 = vsub.f32 %v987, %v1768
        %v2102 = vsub.f32 %v989, %v1768
        %v2103 = vsub.f32 %v993, %v1771
        %v2104 = vsub.f32 %v995, %v1771
        %v2105 = vsub.f32 %v997, %v1774
        %v2106 = vsub.f32 %v999, %v1774
        %v2107 = vsub.f32 %v1003, %v1777
        %v2108 = vsub.f32 %v1005, %v1777
        %v2109 = vsub.f32 %v1007, %v1780
        %v2110 = vsub.f32 %v1009, %v1780
        %v2111 = vsub.f32 %v1013, %v1783
        %v2112 = vsub.f32 %v1015, %v1783
        %v2113 = vsub.f32 %v1017, %v1786
        %v2114 = vsub.f32 %v1019, %v1786
        %v2115 = vsub.f32 %v1023, %v1789
        %v2116 = vsub.f32 %v1025, %v1789
        %v2117 = vsub.f32 %v1027, %v1792
        %v2118 = vsub.f32 %v1029, %v1792
        %v2119 = vsub.f32 %v1033, %v1795
        %v2120 = vsub.f32 %v1035, %v1795
        %v2121 = vsub.f32 %v1037, %v1798
        %v2122 = vsub.f32 %v1039, %v1798
        %v2123 = vsub.f32 %v1043, %v1801
        %v2124 = vsub.f32 %v1045, %v1801
        %v2125 = vsub.f32 %v1047, %v1804
        %v2126 = vsub.f32 %v1049, %v1804
        %v2127 = vsub.f32 %v1053, %v1807
        %v2128 = vsub.f32 %v1055, %v1807
        %v2129 = vsub.f32 %v1057, %v1810
        %v2130 = vsub.f32 %v1059, %v1810
        %v2131 = vsub.f32 %v1182, %v1813
        %v2132 = vsub.f32 %v1184, %v1813
        %v2133 = vsub.f32 %v1186, %v1816
        %v2134 = vsub.f32 %v1188, %v1816
        %v2135 = vsub.f32 %v1192, %v1819
        %v2136 = vsub.f32 %v1194, %v1819
        %v2137 = vsub.f32 %v1196, %v1822
        %v2138 = vsub.f32 %v1198, %v1822
        %v2139 = vsub.f32 %v1202, %v1825
        %v2140 = vsub.f32 %v1204, %v1825
        %v2141 = vsub.f32 %v1206, %v1828
        %v2142 = vsub.f32 %v1208, %v1828
        %v2143 = vsub.f32 %v1212, %v1831
        %v2144 = vsub.f32 %v1214, %v1831
        %v2145 = vsub.f32 %v1216, %v1834
        %v2146 = vsub.f32 %v1218, %v1834
        %v2147 = vsub.f32 %v1222, %v1837
        %v2148 = vsub.f32 %v1224, %v1837
        %v2149 = vsub.f32 %v1226, %v1840
        %v2150 = vsub.f32 %v1228, %v1840
        %v2151 = vsub.f32 %v1232, %v1843
        %v2152 = vsub.f32 %v1234, %v1843
        %v2153 = vsub.f32 %v1236, %v1846
        %v2154 = vsub.f32 %v1238, %v1846
        %v2155 = vsub.f32 %v1242, %v1849
        %v2156 = vsub.f32 %v1244, %v1849
        %v2157 = vsub.f32 %v1246, %v1852
        %v2158 = vsub.f32 %v1248, %v1852
        %v2159 = vsub.f32 %v1252, %v1855
        %v2160 = vsub.f32 %v1254, %v1855
        %v2161 = vsub.f32 %v1256, %v1858
        %v2162 = vsub.f32 %v1258, %v1858
        %v2163 = vsub.f32 %v1262, %v1861
        %v2164 = vsub.f32 %v1264, %v1861
        %v2165 = vsub.f32 %v1266, %v1864
        %v2166 = vsub.f32 %v1268, %v1864
        %v2167 = vsub.f32 %v1272, %v1867
        %v2168 = vsub.f32 %v1274, %v1867
        %v2169 = vsub.f32 %v1276, %v1870
        %v2170 = vsub.f32 %v1278, %v1870
        %v2171 = vsub.f32 %v1282, %v1873
        %v2172 = vsub.f32 %v1284, %v1873
        %v2173 = vsub.f32 %v1286, %v1876
        %v2174 = vsub.f32 %v1288, %v1876
        %v2175 = vsub.f32 %v1292, %v1879
        %v2176 = vsub.f32 %v1294, %v1879
        %v2177 = vsub.f32 %v1296, %v1882
        %v2178 = vsub.f32 %v1298, %v1882
        %v2179 = vsub.f32 %v1302, %v1885
        %v2180 = vsub.f32 %v1304, %v1885
        %v2181 = vsub.f32 %v1306, %v1888
        %v2182 = vsub.f32 %v1308, %v1888
        %v2183 = vsub.f32 %v1312, %v1891
        %v2184 = vsub.f32 %v1314, %v1891
        %v2185 = vsub.f32 %v1316, %v1894
        %v2186 = vsub.f32 %v1318, %v1894
        %v2187 = vsub.f32 %v1322, %v1897
        %v2188 = vsub.f32 %v1324, %v1897
        %v2189 = vsub.f32 %v1326, %v1900
        %v2190 = vsub.f32 %v1328, %v1900
        %v2191 = vsub.f32 %v1332, %v1903
        %v2192 = vsub.f32 %v1334, %v1903
        %v2193 = vsub.f32 %v1336, %v1906
        %v2194 = vsub.f32 %v1338, %v1906
        %v2195 = vsub.f32 %v1461, %v1909
        %v2196 = vsub.f32 %v1463, %v1909
        %v2197 = vsub.f32 %v1465, %v1912
        %v2198 = vsub.f32 %v1467, %v1912
        %v2199 = vsub.f32 %v1471, %v1915
        %v2200 = vsub.f32 %v1473, %v1915
        %v2201 = vsub.f32 %v1475, %v1918
        %v2202 = vsub.f32 %v1477, %v1918
        %v2203 = vsub.f32 %v1481, %v1921
        %v2204 = vsub.f32 %v1483, %v1921
        %v2205 = vsub.f32 %v1485, %v1924
        %v2206 = vsub.f32 %v1487, %v1924
        %v2207 = vsub.f32 %v1491, %v1927
        %v2208 = vsub.f32 %v1493, %v1927
        %v2209 = vsub.f32 %v1495, %v1930
        %v2210 = vsub.f32 %v1497, %v1930
        %v2211 = vsub.f32 %v1501, %v1933
        %v2212 = vsub.f32 %v1503, %v1933
        %v2213 = vsub.f32 %v1505, %v1936
        %v2214 = vsub.f32 %v1507, %v1936
        %v2215 = vsub.f32 %v1511, %v1939
        %v2216 = vsub.f32 %v1513, %v1939
        %v2217 = vsub.f32 %v1515, %v1942
        %v2218 = vsub.f32 %v1517, %v1942
        %v2219 = vsub.f32 %v1521, %v1945
        %v2220 = vsub.f32 %v1523, %v1945
        %v2221 = vsub.f32 %v1525, %v1948
        %v2222 = vsub.f32 %v1527, %v1948
        %v2223 = vsub.f32 %v1531, %v1951
        %v2224 = vsub.f32 %v1533, %v1951
        %v2225 = vsub.f32 %v1535, %v1954
        %v2226 = vsub.f32 %v1537, %v1954
        %v2227 = vsub.f32 %v1541, %v1957
        %v2228 = vsub.f32 %v1543, %v1957
        %v2229 = vsub.f32 %v1545, %v1960
        %v2230 = vsub.f32 %v1547, %v1960
        %v2231 = vsub.f32 %v1551, %v1963
        %v2232 = vsub.f32 %v1553, %v1963
        %v2233 = vsub.f32 %v1555, %v1966
        %v2234 = vsub.f32 %v1557, %v1966
        %v2235 = vsub.f32 %v1561, %v1969
        %v2236 = vsub.f32 %v1563, %v1969
        %v2237 = vsub.f32 %v1565, %v1972
        %v2238 = vsub.f32 %v1567, %v1972
        %v2239 = vsub.f32 %v1571, %v1975
        %v2240 = vsub.f32 %v1573, %v1975
        %v2241 = vsub.f32 %v1575, %v1978
        %v2242 = vsub.f32 %v1577, %v1978
        %v2243 = vsub.f32 %v1581, %v1981
        %v2244 = vsub.f32 %v1583, %v1981
        %v2245 = vsub.f32 %v1585, %v1984
        %v2246 = vsub.f32 %v1587, %v1984
        %v2247 = vsub.f32 %v1591, %v1987
        %v2248 = vsub.f32 %v1593, %v1987
        %v2249 = vsub.f32 %v1595, %v1990
        %v2250 = vsub.f32 %v1597, %v1990
        %v2251 = vsub.f32 %v1601, %v1993
        %v2252 = vsub.f32 %v1603, %v1993
        %v2253 = vsub.f32 %v1605, %v1996
        %v2254 = vsub.f32 %v1607, %v1996
        %v2255 = vsub.f32 %v1611, %v1999
        %v2256 = vsub.f32 %v1613, %v1999
        %v2257 = vsub.f32 %v1615, %v2002
        %v2258 = vsub.f32 %v1617, %v2002
        %v2259 = vmul.f32 %v2003, 1.442695
        %v2260 = vpow.pop %v2259
        %v2261 = vmul.f32 %v2004, 1.442695
        %v2262 = vpow.pop %v2261
        %v2263 = vmul.f32 %v2005, 1.442695
        %v2264 = vpow.pop %v2263
        %v2265 = vmul.f32 %v2006, 1.442695
        %v2266 = vpow.pop %v2265
        %v2267 = vmul.f32 %v2007, 1.442695
        %v2268 = vpow.pop %v2267
        %v2269 = vmul.f32 %v2008, 1.442695
        %v2270 = vpow.pop %v2269
        %v2271 = vmul.f32 %v2009, 1.442695
        %v2272 = vpow.pop %v2271
        %v2273 = vmul.f32 %v2010, 1.442695
        %v2274 = vpow.pop %v2273
        %v2275 = vmul.f32 %v2011, 1.442695
        %v2276 = vpow.pop %v2275
        %v2277 = vmul.f32 %v2012, 1.442695
        %v2278 = vpow.pop %v2277
        %v2279 = vmul.f32 %v2013, 1.442695
        %v2280 = vpow.pop %v2279
        %v2281 = vmul.f32 %v2014, 1.442695
        %v2282 = vpow.pop %v2281
        %v2283 = vmul.f32 %v2015, 1.442695
        %v2284 = vpow.pop %v2283
        %v2285 = vmul.f32 %v2016, 1.442695
        %v2286 = vpow.pop %v2285
        %v2287 = vmul.f32 %v2017, 1.442695
        %v2288 = vpow.pop %v2287
        %v2289 = vmul.f32 %v2018, 1.442695
        %v2290 = vpow.pop %v2289
        %v2291 = vmul.f32 %v2019, 1.442695
        %v2292 = vpow.pop %v2291
        %v2293 = vmul.f32 %v2020, 1.442695
        %v2294 = vpow.pop %v2293
        %v2295 = vmul.f32 %v2021, 1.442695
        %v2296 = vpow.pop %v2295
        %v2297 = vmul.f32 %v2022, 1.442695
        %v2298 = vpow.pop %v2297
        %v2299 = vmul.f32 %v2023, 1.442695
        %v2300 = vpow.pop %v2299
        %v2301 = vmul.f32 %v2024, 1.442695
        %v2302 = vpow.pop %v2301
        %v2303 = vmul.f32 %v2025, 1.442695
        %v2304 = vpow.pop %v2303
        %v2305 = vmul.f32 %v2026, 1.442695
        %v2306 = vpow.pop %v2305
        %v2307 = vmul.f32 %v2027, 1.442695
        %v2308 = vpow.pop %v2307
        %v2309 = vmul.f32 %v2028, 1.442695
        %v2310 = vpow.pop %v2309
        %v2311 = vmul.f32 %v2029, 1.442695
        %v2312 = vpow.pop %v2311
        %v2313 = vmul.f32 %v2030, 1.442695
        %v2314 = vpow.pop %v2313
        %v2315 = vmul.f32 %v2031, 1.442695
        %v2316 = vpow.pop %v2315
        %v2317 = vmul.f32 %v2032, 1.442695
        %v2318 = vpow.pop %v2317
        %v2319 = vmul.f32 %v2033, 1.442695
        %v2320 = vpow.pop %v2319
        %v2321 = vmul.f32 %v2034, 1.442695
        %v2322 = vpow.pop %v2321
        %v2323 = vmul.f32 %v2035, 1.442695
        %v2324 = vpow.pop %v2323
        %v2325 = vmul.f32 %v2036, 1.442695
        %v2326 = vpow.pop %v2325
        %v2327 = vmul.f32 %v2037, 1.442695
        %v2328 = vpow.pop %v2327
        %v2329 = vmul.f32 %v2038, 1.442695
        %v2330 = vpow.pop %v2329
        %v2331 = vmul.f32 %v2039, 1.442695
        %v2332 = vpow.pop %v2331
        %v2333 = vmul.f32 %v2040, 1.442695
        %v2334 = vpow.pop %v2333
        %v2335 = vmul.f32 %v2041, 1.442695
        %v2336 = vpow.pop %v2335
        %v2337 = vmul.f32 %v2042, 1.442695
        %v2338 = vpow.pop %v2337
        %v2339 = vmul.f32 %v2043, 1.442695
        %v2340 = vpow.pop %v2339
        %v2341 = vmul.f32 %v2044, 1.442695
        %v2342 = vpow.pop %v2341
        %v2343 = vmul.f32 %v2045, 1.442695
        %v2344 = vpow.pop %v2343
        %v2345 = vmul.f32 %v2046, 1.442695
        %v2346 = vpow.pop %v2345
        %v2347 = vmul.f32 %v2047, 1.442695
        %v2348 = vpow.pop %v2347
        %v2349 = vmul.f32 %v2048, 1.442695
        %v2350 = vpow.pop %v2349
        %v2351 = vmul.f32 %v2049, 1.442695
        %v2352 = vpow.pop %v2351
        %v2353 = vmul.f32 %v2050, 1.442695
        %v2354 = vpow.pop %v2353
        %v2355 = vmul.f32 %v2051, 1.442695
        %v2356 = vpow.pop %v2355
        %v2357 = vmul.f32 %v2052, 1.442695
        %v2358 = vpow.pop %v2357
        %v2359 = vmul.f32 %v2053, 1.442695
        %v2360 = vpow.pop %v2359
        %v2361 = vmul.f32 %v2054, 1.442695
        %v2362 = vpow.pop %v2361
        %v2363 = vmul.f32 %v2055, 1.442695
        %v2364 = vpow.pop %v2363
        %v2365 = vmul.f32 %v2056, 1.442695
        %v2366 = vpow.pop %v2365
        %v2367 = vmul.f32 %v2057, 1.442695
        %v2368 = vpow.pop %v2367
        %v2369 = vmul.f32 %v2058, 1.442695
        %v2370 = vpow.pop %v2369
        %v2371 = vmul.f32 %v2059, 1.442695
        %v2372 = vpow.pop %v2371
        %v2373 = vmul.f32 %v2060, 1.442695
        %v2374 = vpow.pop %v2373
        %v2375 = vmul.f32 %v2061, 1.442695
        %v2376 = vpow.pop %v2375
        %v2377 = vmul.f32 %v2062, 1.442695
        %v2378 = vpow.pop %v2377
        %v2379 = vmul.f32 %v2063, 1.442695
        %v2380 = vpow.pop %v2379
        %v2381 = vmul.f32 %v2064, 1.442695
        %v2382 = vpow.pop %v2381
        %v2383 = vmul.f32 %v2065, 1.442695
        %v2384 = vpow.pop %v2383
        %v2385 = vmul.f32 %v2066, 1.442695
        %v2386 = vpow.pop %v2385
        %v2387 = vmul.f32 %v2067, 1.442695
        %v2388 = vpow.pop %v2387
        %v2389 = vmul.f32 %v2068, 1.442695
        %v2390 = vpow.pop %v2389
        %v2391 = vmul.f32 %v2069, 1.442695
        %v2392 = vpow.pop %v2391
        %v2393 = vmul.f32 %v2070, 1.442695
        %v2394 = vpow.pop %v2393
        %v2395 = vmul.f32 %v2071, 1.442695
        %v2396 = vpow.pop %v2395
        %v2397 = vmul.f32 %v2072, 1.442695
        %v2398 = vpow.pop %v2397
        %v2399 = vmul.f32 %v2073, 1.442695
        %v2400 = vpow.pop %v2399
        %v2401 = vmul.f32 %v2074, 1.442695
        %v2402 = vpow.pop %v2401
        %v2403 = vmul.f32 %v2075, 1.442695
        %v2404 = vpow.pop %v2403
        %v2405 = vmul.f32 %v2076, 1.442695
        %v2406 = vpow.pop %v2405
        %v2407 = vmul.f32 %v2077, 1.442695
        %v2408 = vpow.pop %v2407
        %v2409 = vmul.f32 %v2078, 1.442695
        %v2410 = vpow.pop %v2409
        %v2411 = vmul.f32 %v2079, 1.442695
        %v2412 = vpow.pop %v2411
        %v2413 = vmul.f32 %v2080, 1.442695
        %v2414 = vpow.pop %v2413
        %v2415 = vmul.f32 %v2081, 1.442695
        %v2416 = vpow.pop %v2415
        %v2417 = vmul.f32 %v2082, 1.442695
        %v2418 = vpow.pop %v2417
        %v2419 = vmul.f32 %v2083, 1.442695
        %v2420 = vpow.pop %v2419
        %v2421 = vmul.f32 %v2084, 1.442695
        %v2422 = vpow.pop %v2421
        %v2423 = vmul.f32 %v2085, 1.442695
        %v2424 = vpow.pop %v2423
        %v2425 = vmul.f32 %v2086, 1.442695
        %v2426 = vpow.pop %v2425
        %v2427 = vmul.f32 %v2087, 1.442695
        %v2428 = vpow.pop %v2427
        %v2429 = vmul.f32 %v2088, 1.442695
        %v2430 = vpow.pop %v2429
        %v2431 = vmul.f32 %v2089, 1.442695
        %v2432 = vpow.pop %v2431
        %v2433 = vmul.f32 %v2090, 1.442695
        %v2434 = vpow.pop %v2433
        %v2435 = vmul.f32 %v2091, 1.442695
        %v2436 = vpow.pop %v2435
        %v2437 = vmul.f32 %v2092, 1.442695
        %v2438 = vpow.pop %v2437
        %v2439 = vmul.f32 %v2093, 1.442695
        %v2440 = vpow.pop %v2439
        %v2441 = vmul.f32 %v2094, 1.442695
        %v2442 = vpow.pop %v2441
        %v2443 = vmul.f32 %v2095, 1.442695
        %v2444 = vpow.pop %v2443
        %v2445 = vmul.f32 %v2096, 1.442695
        %v2446 = vpow.pop %v2445
        %v2447 = vmul.f32 %v2097, 1.442695
        %v2448 = vpow.pop %v2447
        %v2449 = vmul.f32 %v2098, 1.442695
        %v2450 = vpow.pop %v2449
        %v2451 = vmul.f32 %v2099, 1.442695
        %v2452 = vpow.pop %v2451
        %v2453 = vmul.f32 %v2100, 1.442695
        %v2454 = vpow.pop %v2453
        %v2455 = vmul.f32 %v2101, 1.442695
        %v2456 = vpow.pop %v2455
        %v2457 = vmul.f32 %v2102, 1.442695
        %v2458 = vpow.pop %v2457
        %v2459 = vmul.f32 %v2103, 1.442695
        %v2460 = vpow.pop %v2459
        %v2461 = vmul.f32 %v2104, 1.442695
        %v2462 = vpow.pop %v2461
        %v2463 = vmul.f32 %v2105, 1.442695
        %v2464 = vpow.pop %v2463
        %v2465 = vmul.f32 %v2106, 1.442695
        %v2466 = vpow.pop %v2465
        %v2467 = vmul.f32 %v2107, 1.442695
        %v2468 = vpow.pop %v2467
        %v2469 = vmul.f32 %v2108, 1.442695
        %v2470 = vpow.pop %v2469
        %v2471 = vmul.f32 %v2109, 1.442695
        %v2472 = vpow.pop %v2471
        %v2473 = vmul.f32 %v2110, 1.442695
        %v2474 = vpow.pop %v2473
        %v2475 = vmul.f32 %v2111, 1.442695
        %v2476 = vpow.pop %v2475
        %v2477 = vmul.f32 %v2112, 1.442695
        %v2478 = vpow.pop %v2477
        %v2479 = vmul.f32 %v2113, 1.442695
        %v2480 = vpow.pop %v2479
        %v2481 = vmul.f32 %v2114, 1.442695
        %v2482 = vpow.pop %v2481
        %v2483 = vmul.f32 %v2115, 1.442695
        %v2484 = vpow.pop %v2483
        %v2485 = vmul.f32 %v2116, 1.442695
        %v2486 = vpow.pop %v2485
        %v2487 = vmul.f32 %v2117, 1.442695
        %v2488 = vpow.pop %v2487
        %v2489 = vmul.f32 %v2118, 1.442695
        %v2490 = vpow.pop %v2489
        %v2491 = vmul.f32 %v2119, 1.442695
        %v2492 = vpow.pop %v2491
        %v2493 = vmul.f32 %v2120, 1.442695
        %v2494 = vpow.pop %v2493
        %v2495 = vmul.f32 %v2121, 1.442695
        %v2496 = vpow.pop %v2495
        %v2497 = vmul.f32 %v2122, 1.442695
        %v2498 = vpow.pop %v2497
        %v2499 = vmul.f32 %v2123, 1.442695
        %v2500 = vpow.pop %v2499
        %v2501 = vmul.f32 %v2124, 1.442695
        %v2502 = vpow.pop %v2501
        %v2503 = vmul.f32 %v2125, 1.442695
        %v2504 = vpow.pop %v2503
        %v2505 = vmul.f32 %v2126, 1.442695
        %v2506 = vpow.pop %v2505
        %v2507 = vmul.f32 %v2127, 1.442695
        %v2508 = vpow.pop %v2507
        %v2509 = vmul.f32 %v2128, 1.442695
        %v2510 = vpow.pop %v2509
        %v2511 = vmul.f32 %v2129, 1.442695
        %v2512 = vpow.pop %v2511
        %v2513 = vmul.f32 %v2130, 1.442695
        %v2514 = vpow.pop %v2513
        %v2515 = vmul.f32 %v2131, 1.442695
        %v2516 = vpow.pop %v2515
        %v2517 = vmul.f32 %v2132, 1.442695
        %v2518 = vpow.pop %v2517
        %v2519 = vmul.f32 %v2133, 1.442695
        %v2520 = vpow.pop %v2519
        %v2521 = vmul.f32 %v2134, 1.442695
        %v2522 = vpow.pop %v2521
        %v2523 = vmul.f32 %v2135, 1.442695
        %v2524 = vpow.pop %v2523
        %v2525 = vmul.f32 %v2136, 1.442695
        %v2526 = vpow.pop %v2525
        %v2527 = vmul.f32 %v2137, 1.442695
        %v2528 = vpow.pop %v2527
        %v2529 = vmul.f32 %v2138, 1.442695
        %v2530 = vpow.pop %v2529
        %v2531 = vmul.f32 %v2139, 1.442695
        %v2532 = vpow.pop %v2531
        %v2533 = vmul.f32 %v2140, 1.442695
        %v2534 = vpow.pop %v2533
        %v2535 = vmul.f32 %v2141, 1.442695
        %v2536 = vpow.pop %v2535
        %v2537 = vmul.f32 %v2142, 1.442695
        %v2538 = vpow.pop %v2537
        %v2539 = vmul.f32 %v2143, 1.442695
        %v2540 = vpow.pop %v2539
        %v2541 = vmul.f32 %v2144, 1.442695
        %v2542 = vpow.pop %v2541
        %v2543 = vmul.f32 %v2145, 1.442695
        %v2544 = vpow.pop %v2543
        %v2545 = vmul.f32 %v2146, 1.442695
        %v2546 = vpow.pop %v2545
        %v2547 = vmul.f32 %v2147, 1.442695
        %v2548 = vpow.pop %v2547
        %v2549 = vmul.f32 %v2148, 1.442695
        %v2550 = vpow.pop %v2549
        %v2551 = vmul.f32 %v2149, 1.442695
        %v2552 = vpow.pop %v2551
        %v2553 = vmul.f32 %v2150, 1.442695
        %v2554 = vpow.pop %v2553
        %v2555 = vmul.f32 %v2151, 1.442695
        %v2556 = vpow.pop %v2555
        %v2557 = vmul.f32 %v2152, 1.442695
        %v2558 = vpow.pop %v2557
        %v2559 = vmul.f32 %v2153, 1.442695
        %v2560 = vpow.pop %v2559
        %v2561 = vmul.f32 %v2154, 1.442695
        %v2562 = vpow.pop %v2561
        %v2563 = vmul.f32 %v2155, 1.442695
        %v2564 = vpow.pop %v2563
        %v2565 = vmul.f32 %v2156, 1.442695
        %v2566 = vpow.pop %v2565
        %v2567 = vmul.f32 %v2157, 1.442695
        %v2568 = vpow.pop %v2567
        %v2569 = vmul.f32 %v2158, 1.442695
        %v2570 = vpow.pop %v2569
        %v2571 = vmul.f32 %v2159, 1.442695
        %v2572 = vpow.pop %v2571
        %v2573 = vmul.f32 %v2160, 1.442695
        %v2574 = vpow.pop %v2573
        %v2575 = vmul.f32 %v2161, 1.442695
        %v2576 = vpow.pop %v2575
        %v2577 = vmul.f32 %v2162, 1.442695
        %v2578 = vpow.pop %v2577
        %v2579 = vmul.f32 %v2163, 1.442695
        %v2580 = vpow.pop %v2579
        %v2581 = vmul.f32 %v2164, 1.442695
        %v2582 = vpow.pop %v2581
        %v2583 = vmul.f32 %v2165, 1.442695
        %v2584 = vpow.pop %v2583
        %v2585 = vmul.f32 %v2166, 1.442695
        %v2586 = vpow.pop %v2585
        %v2587 = vmul.f32 %v2167, 1.442695
        %v2588 = vpow.pop %v2587
        %v2589 = vmul.f32 %v2168, 1.442695
        %v2590 = vpow.pop %v2589
        %v2591 = vmul.f32 %v2169, 1.442695
        %v2592 = vpow.pop %v2591
        %v2593 = vmul.f32 %v2170, 1.442695
        %v2594 = vpow.pop %v2593
        %v2595 = vmul.f32 %v2171, 1.442695
        %v2596 = vpow.pop %v2595
        %v2597 = vmul.f32 %v2172, 1.442695
        %v2598 = vpow.pop %v2597
        %v2599 = vmul.f32 %v2173, 1.442695
        %v2600 = vpow.pop %v2599
        %v2601 = vmul.f32 %v2174, 1.442695
        %v2602 = vpow.pop %v2601
        %v2603 = vmul.f32 %v2175, 1.442695
        %v2604 = vpow.pop %v2603
        %v2605 = vmul.f32 %v2176, 1.442695
        %v2606 = vpow.pop %v2605
        %v2607 = vmul.f32 %v2177, 1.442695
        %v2608 = vpow.pop %v2607
        %v2609 = vmul.f32 %v2178, 1.442695
        %v2610 = vpow.pop %v2609
        %v2611 = vmul.f32 %v2179, 1.442695
        %v2612 = vpow.pop %v2611
        %v2613 = vmul.f32 %v2180, 1.442695
        %v2614 = vpow.pop %v2613
        %v2615 = vmul.f32 %v2181, 1.442695
        %v2616 = vpow.pop %v2615
        %v2617 = vmul.f32 %v2182, 1.442695
        %v2618 = vpow.pop %v2617
        %v2619 = vmul.f32 %v2183, 1.442695
        %v2620 = vpow.pop %v2619
        %v2621 = vmul.f32 %v2184, 1.442695
        %v2622 = vpow.pop %v2621
        %v2623 = vmul.f32 %v2185, 1.442695
        %v2624 = vpow.pop %v2623
        %v2625 = vmul.f32 %v2186, 1.442695
        %v2626 = vpow.pop %v2625
        %v2627 = vmul.f32 %v2187, 1.442695
        %v2628 = vpow.pop %v2627
        %v2629 = vmul.f32 %v2188, 1.442695
        %v2630 = vpow.pop %v2629
        %v2631 = vmul.f32 %v2189, 1.442695
        %v2632 = vpow.pop %v2631
        %v2633 = vmul.f32 %v2190, 1.442695
        %v2634 = vpow.pop %v2633
        %v2635 = vmul.f32 %v2191, 1.442695
        %v2636 = vpow.pop %v2635
        %v2637 = vmul.f32 %v2192, 1.442695
        %v2638 = vpow.pop %v2637
        %v2639 = vmul.f32 %v2193, 1.442695
        %v2640 = vpow.pop %v2639
        %v2641 = vmul.f32 %v2194, 1.442695
        %v2642 = vpow.pop %v2641
        %v2643 = vmul.f32 %v2195, 1.442695
        %v2644 = vpow.pop %v2643
        %v2645 = vmul.f32 %v2196, 1.442695
        %v2646 = vpow.pop %v2645
        %v2647 = vmul.f32 %v2197, 1.442695
        %v2648 = vpow.pop %v2647
        %v2649 = vmul.f32 %v2198, 1.442695
        %v2650 = vpow.pop %v2649
        %v2651 = vmul.f32 %v2199, 1.442695
        %v2652 = vpow.pop %v2651
        %v2653 = vmul.f32 %v2200, 1.442695
        %v2654 = vpow.pop %v2653
        %v2655 = vmul.f32 %v2201, 1.442695
        %v2656 = vpow.pop %v2655
        %v2657 = vmul.f32 %v2202, 1.442695
        %v2658 = vpow.pop %v2657
        %v2659 = vmul.f32 %v2203, 1.442695
        %v2660 = vpow.pop %v2659
        %v2661 = vmul.f32 %v2204, 1.442695
        %v2662 = vpow.pop %v2661
        %v2663 = vmul.f32 %v2205, 1.442695
        %v2664 = vpow.pop %v2663
        %v2665 = vmul.f32 %v2206, 1.442695
        %v2666 = vpow.pop %v2665
        %v2667 = vmul.f32 %v2207, 1.442695
        %v2668 = vpow.pop %v2667
        %v2669 = vmul.f32 %v2208, 1.442695
        %v2670 = vpow.pop %v2669
        %v2671 = vmul.f32 %v2209, 1.442695
        %v2672 = vpow.pop %v2671
        %v2673 = vmul.f32 %v2210, 1.442695
        %v2674 = vpow.pop %v2673
        %v2675 = vmul.f32 %v2211, 1.442695
        %v2676 = vpow.pop %v2675
        %v2677 = vmul.f32 %v2212, 1.442695
        %v2678 = vpow.pop %v2677
        %v2679 = vmul.f32 %v2213, 1.442695
        %v2680 = vpow.pop %v2679
        %v2681 = vmul.f32 %v2214, 1.442695
        %v2682 = vpow.pop %v2681
        %v2683 = vmul.f32 %v2215, 1.442695
        %v2684 = vpow.pop %v2683
        %v2685 = vmul.f32 %v2216, 1.442695
        %v2686 = vpow.pop %v2685
        %v2687 = vmul.f32 %v2217, 1.442695
        %v2688 = vpow.pop %v2687
        %v2689 = vmul.f32 %v2218, 1.442695
        %v2690 = vpow.pop %v2689
        %v2691 = vmul.f32 %v2219, 1.442695
        %v2692 = vpow.pop %v2691
        %v2693 = vmul.f32 %v2220, 1.442695
        %v2694 = vpow.pop %v2693
        %v2695 = vmul.f32 %v2221, 1.442695
        %v2696 = vpow.pop %v2695
        %v2697 = vmul.f32 %v2222, 1.442695
        %v2698 = vpow.pop %v2697
        %v2699 = vmul.f32 %v2223, 1.442695
        %v2700 = vpow.pop %v2699
        %v2701 = vmul.f32 %v2224, 1.442695
        %v2702 = vpow.pop %v2701
        %v2703 = vmul.f32 %v2225, 1.442695
        %v2704 = vpow.pop %v2703
        %v2705 = vmul.f32 %v2226, 1.442695
        %v2706 = vpow.pop %v2705
        %v2707 = vmul.f32 %v2227, 1.442695
        %v2708 = vpow.pop %v2707
        %v2709 = vmul.f32 %v2228, 1.442695
        %v2710 = vpow.pop %v2709
        %v2711 = vmul.f32 %v2229, 1.442695
        %v2712 = vpow.pop %v2711
        %v2713 = vmul.f32 %v2230, 1.442695
        %v2714 = vpow.pop %v2713
        %v2715 = vmul.f32 %v2231, 1.442695
        %v2716 = vpow.pop %v2715
        %v2717 = vmul.f32 %v2232, 1.442695
        %v2718 = vpow.pop %v2717
        %v2719 = vmul.f32 %v2233, 1.442695
        %v2720 = vpow.pop %v2719
        %v2721 = vmul.f32 %v2234, 1.442695
        %v2722 = vpow.pop %v2721
        %v2723 = vmul.f32 %v2235, 1.442695
        %v2724 = vpow.pop %v2723
        %v2725 = vmul.f32 %v2236, 1.442695
        %v2726 = vpow.pop %v2725
        %v2727 = vmul.f32 %v2237, 1.442695
        %v2728 = vpow.pop %v2727
        %v2729 = vmul.f32 %v2238, 1.442695
        %v2730 = vpow.pop %v2729
        %v2731 = vmul.f32 %v2239, 1.442695
        %v2732 = vpow.pop %v2731
        %v2733 = vmul.f32 %v2240, 1.442695
        %v2734 = vpow.pop %v2733
        %v2735 = vmul.f32 %v2241, 1.442695
        %v2736 = vpow.pop %v2735
        %v2737 = vmul.f32 %v2242, 1.442695
        %v2738 = vpow.pop %v2737
        %v2739 = vmul.f32 %v2243, 1.442695
        %v2740 = vpow.pop %v2739
        %v2741 = vmul.f32 %v2244, 1.442695
        %v2742 = vpow.pop %v2741
        %v2743 = vmul.f32 %v2245, 1.442695
        %v2744 = vpow.pop %v2743
        %v2745 = vmul.f32 %v2246, 1.442695
        %v2746 = vpow.pop %v2745
        %v2747 = vmul.f32 %v2247, 1.442695
        %v2748 = vpow.pop %v2747
        %v2749 = vmul.f32 %v2248, 1.442695
        %v2750 = vpow.pop %v2749
        %v2751 = vmul.f32 %v2249, 1.442695
        %v2752 = vpow.pop %v2751
        %v2753 = vmul.f32 %v2250, 1.442695
        %v2754 = vpow.pop %v2753
        %v2755 = vmul.f32 %v2251, 1.442695
        %v2756 = vpow.pop %v2755
        %v2757 = vmul.f32 %v2252, 1.442695
        %v2758 = vpow.pop %v2757
        %v2759 = vmul.f32 %v2253, 1.442695
        %v2760 = vpow.pop %v2759
        %v2761 = vmul.f32 %v2254, 1.442695
        %v2762 = vpow.pop %v2761
        %v2763 = vmul.f32 %v2255, 1.442695
        %v2764 = vpow.pop %v2763
        %v2765 = vmul.f32 %v2256, 1.442695
        %v2766 = vpow.pop %v2765
        %v2767 = vmul.f32 %v2257, 1.442695
        %v2768 = vpow.pop %v2767
        %v2769 = vmul.f32 %v2258, 1.442695
        %v2770 = vpow.pop %v2769
        %v2771 = vadd.f32 %v2260, %v2262
        %2772 = vadd.xlane.f32.xlu0 %v2771
        %v2773 = vpop.xlane.xlu0 %2772
        %v2774 = vadd.f32 %v2264, %v2266
        %2775 = vadd.xlane.f32.xlu0 %v2774
        %v2776 = vpop.xlane.xlu0 %2775
        %v2777 = vadd.f32 %v2268, %v2270
        %2778 = vadd.xlane.f32.xlu0 %v2777
        %v2779 = vpop.xlane.xlu0 %2778
        %v2780 = vadd.f32 %v2272, %v2274
        %2781 = vadd.xlane.f32.xlu0 %v2780
        %v2782 = vpop.xlane.xlu0 %2781
        %v2783 = vadd.f32 %v2276, %v2278
        %2784 = vadd.xlane.f32.xlu0 %v2783
        %v2785 = vpop.xlane.xlu0 %2784
        %v2786 = vadd.f32 %v2280, %v2282
        %2787 = vadd.xlane.f32.xlu0 %v2786
        %v2788 = vpop.xlane.xlu0 %2787
        %v2789 = vadd.f32 %v2284, %v2286
        %2790 = vadd.xlane.f32.xlu0 %v2789
        %v2791 = vpop.xlane.xlu0 %2790
        %v2792 = vadd.f32 %v2288, %v2290
        %2793 = vadd.xlane.f32.xlu0 %v2792
        %v2794 = vpop.xlane.xlu0 %2793
        %v2795 = vadd.f32 %v2292, %v2294
        %2796 = vadd.xlane.f32.xlu0 %v2795
        %v2797 = vpop.xlane.xlu0 %2796
        %v2798 = vadd.f32 %v2296, %v2298
        %2799 = vadd.xlane.f32.xlu0 %v2798
        %v2800 = vpop.xlane.xlu0 %2799
        %v2801 = vadd.f32 %v2300, %v2302
        %2802 = vadd.xlane.f32.xlu0 %v2801
        %v2803 = vpop.xlane.xlu0 %2802
        %v2804 = vadd.f32 %v2304, %v2306
        %2805 = vadd.xlane.f32.xlu0 %v2804
        %v2806 = vpop.xlane.xlu0 %2805
        %v2807 = vadd.f32 %v2308, %v2310
        %2808 = vadd.xlane.f32.xlu0 %v2807
        %v2809 = vpop.xlane.xlu0 %2808
        %v2810 = vadd.f32 %v2312, %v2314
        %2811 = vadd.xlane.f32.xlu0 %v2810
        %v2812 = vpop.xlane.xlu0 %2811
        %v2813 = vadd.f32 %v2316, %v2318
        %2814 = vadd.xlane.f32.xlu0 %v2813
        %v2815 = vpop.xlane.xlu0 %2814
        %v2816 = vadd.f32 %v2320, %v2322
        %2817 = vadd.xlane.f32.xlu0 %v2816
        %v2818 = vpop.xlane.xlu0 %2817
        %v2819 = vadd.f32 %v2324, %v2326
        %2820 = vadd.xlane.f32.xlu0 %v2819
        %v2821 = vpop.xlane.xlu0 %2820
        %v2822 = vadd.f32 %v2328, %v2330
        %2823 = vadd.xlane.f32.xlu0 %v2822
        %v2824 = vpop.xlane.xlu0 %2823
        %v2825 = vadd.f32 %v2332, %v2334
        %2826 = vadd.xlane.f32.xlu0 %v2825
        %v2827 = vpop.xlane.xlu0 %2826
        %v2828 = vadd.f32 %v2336, %v2338
        %2829 = vadd.xlane.f32.xlu0 %v2828
        %v2830 = vpop.xlane.xlu0 %2829
        %v2831 = vadd.f32 %v2340, %v2342
        %2832 = vadd.xlane.f32.xlu0 %v2831
        %v2833 = vpop.xlane.xlu0 %2832
        %v2834 = vadd.f32 %v2344, %v2346
        %2835 = vadd.xlane.f32.xlu0 %v2834
        %v2836 = vpop.xlane.xlu0 %2835
        %v2837 = vadd.f32 %v2348, %v2350
        %2838 = vadd.xlane.f32.xlu0 %v2837
        %v2839 = vpop.xlane.xlu0 %2838
        %v2840 = vadd.f32 %v2352, %v2354
        %2841 = vadd.xlane.f32.xlu0 %v2840
        %v2842 = vpop.xlane.xlu0 %2841
        %v2843 = vadd.f32 %v2356, %v2358
        %2844 = vadd.xlane.f32.xlu0 %v2843
        %v2845 = vpop.xlane.xlu0 %2844
        %v2846 = vadd.f32 %v2360, %v2362
        %2847 = vadd.xlane.f32.xlu0 %v2846
        %v2848 = vpop.xlane.xlu0 %2847
        %v2849 = vadd.f32 %v2364, %v2366
        %2850 = vadd.xlane.f32.xlu0 %v2849
        %v2851 = vpop.xlane.xlu0 %2850
        %v2852 = vadd.f32 %v2368, %v2370
        %2853 = vadd.xlane.f32.xlu0 %v2852
        %v2854 = vpop.xlane.xlu0 %2853
        %v2855 = vadd.f32 %v2372, %v2374
        %2856 = vadd.xlane.f32.xlu0 %v2855
        %v2857 = vpop.xlane.xlu0 %2856
        %v2858 = vadd.f32 %v2376, %v2378
        %2859 = vadd.xlane.f32.xlu0 %v2858
        %v2860 = vpop.xlane.xlu0 %2859
        %v2861 = vadd.f32 %v2380, %v2382
        %2862 = vadd.xlane.f32.xlu0 %v2861
        %v2863 = vpop.xlane.xlu0 %2862
        %v2864 = vadd.f32 %v2384, %v2386
        %2865 = vadd.xlane.f32.xlu0 %v2864
        %v2866 = vpop.xlane.xlu0 %2865
        %v2867 = vadd.f32 %v2388, %v2390
        %2868 = vadd.xlane.f32.xlu0 %v2867
        %v2869 = vpop.xlane.xlu0 %2868
        %v2870 = vadd.f32 %v2392, %v2394
        %2871 = vadd.xlane.f32.xlu0 %v2870
        %v2872 = vpop.xlane.xlu0 %2871
        %v2873 = vadd.f32 %v2396, %v2398
        %2874 = vadd.xlane.f32.xlu0 %v2873
        %v2875 = vpop.xlane.xlu0 %2874
        %v2876 = vadd.f32 %v2400, %v2402
        %2877 = vadd.xlane.f32.xlu0 %v2876
        %v2878 = vpop.xlane.xlu0 %2877
        %v2879 = vadd.f32 %v2404, %v2406
        %2880 = vadd.xlane.f32.xlu0 %v2879
        %v2881 = vpop.xlane.xlu0 %2880
        %v2882 = vadd.f32 %v2408, %v2410
        %2883 = vadd.xlane.f32.xlu0 %v2882
        %v2884 = vpop.xlane.xlu0 %2883
        %v2885 = vadd.f32 %v2412, %v2414
        %2886 = vadd.xlane.f32.xlu0 %v2885
        %v2887 = vpop.xlane.xlu0 %2886
        %v2888 = vadd.f32 %v2416, %v2418
        %2889 = vadd.xlane.f32.xlu0 %v2888
        %v2890 = vpop.xlane.xlu0 %2889
        %v2891 = vadd.f32 %v2420, %v2422
        %2892 = vadd.xlane.f32.xlu0 %v2891
        %v2893 = vpop.xlane.xlu0 %2892
        %v2894 = vadd.f32 %v2424, %v2426
        %2895 = vadd.xlane.f32.xlu0 %v2894
        %v2896 = vpop.xlane.xlu0 %2895
        %v2897 = vadd.f32 %v2428, %v2430
        %2898 = vadd.xlane.f32.xlu0 %v2897
        %v2899 = vpop.xlane.xlu0 %2898
        %v2900 = vadd.f32 %v2432, %v2434
        %2901 = vadd.xlane.f32.xlu0 %v2900
        %v2902 = vpop.xlane.xlu0 %2901
        %v2903 = vadd.f32 %v2436, %v2438
        %2904 = vadd.xlane.f32.xlu0 %v2903
        %v2905 = vpop.xlane.xlu0 %2904
        %v2906 = vadd.f32 %v2440, %v2442
        %2907 = vadd.xlane.f32.xlu0 %v2906
        %v2908 = vpop.xlane.xlu0 %2907
        %v2909 = vadd.f32 %v2444, %v2446
        %2910 = vadd.xlane.f32.xlu0 %v2909
        %v2911 = vpop.xlane.xlu0 %2910
        %v2912 = vadd.f32 %v2448, %v2450
        %2913 = vadd.xlane.f32.xlu0 %v2912
        %v2914 = vpop.xlane.xlu0 %2913
        %v2915 = vadd.f32 %v2452, %v2454
        %2916 = vadd.xlane.f32.xlu0 %v2915
        %v2917 = vpop.xlane.xlu0 %2916
        %v2918 = vadd.f32 %v2456, %v2458
        %2919 = vadd.xlane.f32.xlu0 %v2918
        %v2920 = vpop.xlane.xlu0 %2919
        %v2921 = vadd.f32 %v2460, %v2462
        %2922 = vadd.xlane.f32.xlu0 %v2921
        %v2923 = vpop.xlane.xlu0 %2922
        %v2924 = vadd.f32 %v2464, %v2466
        %2925 = vadd.xlane.f32.xlu0 %v2924
        %v2926 = vpop.xlane.xlu0 %2925
        %v2927 = vadd.f32 %v2468, %v2470
        %2928 = vadd.xlane.f32.xlu0 %v2927
        %v2929 = vpop.xlane.xlu0 %2928
        %v2930 = vadd.f32 %v2472, %v2474
        %2931 = vadd.xlane.f32.xlu0 %v2930
        %v2932 = vpop.xlane.xlu0 %2931
        %v2933 = vadd.f32 %v2476, %v2478
        %2934 = vadd.xlane.f32.xlu0 %v2933
        %v2935 = vpop.xlane.xlu0 %2934
        %v2936 = vadd.f32 %v2480, %v2482
        %2937 = vadd.xlane.f32.xlu0 %v2936
        %v2938 = vpop.xlane.xlu0 %2937
        %v2939 = vadd.f32 %v2484, %v2486
        %2940 = vadd.xlane.f32.xlu0 %v2939
        %v2941 = vpop.xlane.xlu0 %2940
        %v2942 = vadd.f32 %v2488, %v2490
        %2943 = vadd.xlane.f32.xlu0 %v2942
        %v2944 = vpop.xlane.xlu0 %2943
        %v2945 = vadd.f32 %v2492, %v2494
        %2946 = vadd.xlane.f32.xlu0 %v2945
        %v2947 = vpop.xlane.xlu0 %2946
        %v2948 = vadd.f32 %v2496, %v2498
        %2949 = vadd.xlane.f32.xlu0 %v2948
        %v2950 = vpop.xlane.xlu0 %2949
        %v2951 = vadd.f32 %v2500, %v2502
        %2952 = vadd.xlane.f32.xlu0 %v2951
        %v2953 = vpop.xlane.xlu0 %2952
        %v2954 = vadd.f32 %v2504, %v2506
        %2955 = vadd.xlane.f32.xlu0 %v2954
        %v2956 = vpop.xlane.xlu0 %2955
        %v2957 = vadd.f32 %v2508, %v2510
        %2958 = vadd.xlane.f32.xlu0 %v2957
        %v2959 = vpop.xlane.xlu0 %2958
        %v2960 = vadd.f32 %v2512, %v2514
        %2961 = vadd.xlane.f32.xlu0 %v2960
        %v2962 = vpop.xlane.xlu0 %2961
        %v2963 = vadd.f32 %v2516, %v2518
        %2964 = vadd.xlane.f32.xlu0 %v2963
        %v2965 = vpop.xlane.xlu0 %2964
        %v2966 = vadd.f32 %v2520, %v2522
        %2967 = vadd.xlane.f32.xlu0 %v2966
        %v2968 = vpop.xlane.xlu0 %2967
        %v2969 = vadd.f32 %v2524, %v2526
        %2970 = vadd.xlane.f32.xlu0 %v2969
        %v2971 = vpop.xlane.xlu0 %2970
        %v2972 = vadd.f32 %v2528, %v2530
        %2973 = vadd.xlane.f32.xlu0 %v2972
        %v2974 = vpop.xlane.xlu0 %2973
        %v2975 = vadd.f32 %v2532, %v2534
        %2976 = vadd.xlane.f32.xlu0 %v2975
        %v2977 = vpop.xlane.xlu0 %2976
        %v2978 = vadd.f32 %v2536, %v2538
        %2979 = vadd.xlane.f32.xlu0 %v2978
        %v2980 = vpop.xlane.xlu0 %2979
        %v2981 = vadd.f32 %v2540, %v2542
        %2982 = vadd.xlane.f32.xlu0 %v2981
        %v2983 = vpop.xlane.xlu0 %2982
        %v2984 = vadd.f32 %v2544, %v2546
        %2985 = vadd.xlane.f32.xlu0 %v2984
        %v2986 = vpop.xlane.xlu0 %2985
        %v2987 = vadd.f32 %v2548, %v2550
        %2988 = vadd.xlane.f32.xlu0 %v2987
        %v2989 = vpop.xlane.xlu0 %2988
        %v2990 = vadd.f32 %v2552, %v2554
        %2991 = vadd.xlane.f32.xlu0 %v2990
        %v2992 = vpop.xlane.xlu0 %2991
        %v2993 = vadd.f32 %v2556, %v2558
        %2994 = vadd.xlane.f32.xlu0 %v2993
        %v2995 = vpop.xlane.xlu0 %2994
        %v2996 = vadd.f32 %v2560, %v2562
        %2997 = vadd.xlane.f32.xlu0 %v2996
        %v2998 = vpop.xlane.xlu0 %2997
        %v2999 = vadd.f32 %v2564, %v2566
        %3000 = vadd.xlane.f32.xlu0 %v2999
        %v3001 = vpop.xlane.xlu0 %3000
        %v3002 = vadd.f32 %v2568, %v2570
        %3003 = vadd.xlane.f32.xlu0 %v3002
        %v3004 = vpop.xlane.xlu0 %3003
        %v3005 = vadd.f32 %v2572, %v2574
        %3006 = vadd.xlane.f32.xlu0 %v3005
        %v3007 = vpop.xlane.xlu0 %3006
        %v3008 = vadd.f32 %v2576, %v2578
        %3009 = vadd.xlane.f32.xlu0 %v3008
        %v3010 = vpop.xlane.xlu0 %3009
        %v3011 = vadd.f32 %v2580, %v2582
        %3012 = vadd.xlane.f32.xlu0 %v3011
        %v3013 = vpop.xlane.xlu0 %3012
        %v3014 = vadd.f32 %v2584, %v2586
        %3015 = vadd.xlane.f32.xlu0 %v3014
        %v3016 = vpop.xlane.xlu0 %3015
        %v3017 = vadd.f32 %v2588, %v2590
        %3018 = vadd.xlane.f32.xlu0 %v3017
        %v3019 = vpop.xlane.xlu0 %3018
        %v3020 = vadd.f32 %v2592, %v2594
        %3021 = vadd.xlane.f32.xlu0 %v3020
        %v3022 = vpop.xlane.xlu0 %3021
        %v3023 = vadd.f32 %v2596, %v2598
        %3024 = vadd.xlane.f32.xlu0 %v3023
        %v3025 = vpop.xlane.xlu0 %3024
        %v3026 = vadd.f32 %v2600, %v2602
        %3027 = vadd.xlane.f32.xlu0 %v3026
        %v3028 = vpop.xlane.xlu0 %3027
        %v3029 = vadd.f32 %v2604, %v2606
        %3030 = vadd.xlane.f32.xlu0 %v3029
        %v3031 = vpop.xlane.xlu0 %3030
        %v3032 = vadd.f32 %v2608, %v2610
        %3033 = vadd.xlane.f32.xlu0 %v3032
        %v3034 = vpop.xlane.xlu0 %3033
        %v3035 = vadd.f32 %v2612, %v2614
        %3036 = vadd.xlane.f32.xlu0 %v3035
        %v3037 = vpop.xlane.xlu0 %3036
        %v3038 = vadd.f32 %v2616, %v2618
        %3039 = vadd.xlane.f32.xlu0 %v3038
        %v3040 = vpop.xlane.xlu0 %3039
        %v3041 = vadd.f32 %v2620, %v2622
        %3042 = vadd.xlane.f32.xlu0 %v3041
        %v3043 = vpop.xlane.xlu0 %3042
        %v3044 = vadd.f32 %v2624, %v2626
        %3045 = vadd.xlane.f32.xlu0 %v3044
        %v3046 = vpop.xlane.xlu0 %3045
        %v3047 = vadd.f32 %v2628, %v2630
        %3048 = vadd.xlane.f32.xlu0 %v3047
        %v3049 = vpop.xlane.xlu0 %3048
        %v3050 = vadd.f32 %v2632, %v2634
        %3051 = vadd.xlane.f32.xlu0 %v3050
        %v3052 = vpop.xlane.xlu0 %3051
        %v3053 = vadd.f32 %v2636, %v2638
        %3054 = vadd.xlane.f32.xlu0 %v3053
        %v3055 = vpop.xlane.xlu0 %3054
        %v3056 = vadd.f32 %v2640, %v2642
        %3057 = vadd.xlane.f32.xlu0 %v3056
        %v3058 = vpop.xlane.xlu0 %3057
        %v3059 = vadd.f32 %v2644, %v2646
        %3060 = vadd.xlane.f32.xlu0 %v3059
        %v3061 = vpop.xlane.xlu0 %3060
        %v3062 = vadd.f32 %v2648, %v2650
        %3063 = vadd.xlane.f32.xlu0 %v3062
        %v3064 = vpop.xlane.xlu0 %3063
        %v3065 = vadd.f32 %v2652, %v2654
        %3066 = vadd.xlane.f32.xlu0 %v3065
        %v3067 = vpop.xlane.xlu0 %3066
        %v3068 = vadd.f32 %v2656, %v2658
        %3069 = vadd.xlane.f32.xlu0 %v3068
        %v3070 = vpop.xlane.xlu0 %3069
        %v3071 = vadd.f32 %v2660, %v2662
        %3072 = vadd.xlane.f32.xlu0 %v3071
        %v3073 = vpop.xlane.xlu0 %3072
        %v3074 = vadd.f32 %v2664, %v2666
        %3075 = vadd.xlane.f32.xlu0 %v3074
        %v3076 = vpop.xlane.xlu0 %3075
        %v3077 = vadd.f32 %v2668, %v2670
        %3078 = vadd.xlane.f32.xlu0 %v3077
        %v3079 = vpop.xlane.xlu0 %3078
        %v3080 = vadd.f32 %v2672, %v2674
        %3081 = vadd.xlane.f32.xlu0 %v3080
        %v3082 = vpop.xlane.xlu0 %3081
        %v3083 = vadd.f32 %v2676, %v2678
        %3084 = vadd.xlane.f32.xlu0 %v3083
        %v3085 = vpop.xlane.xlu0 %3084
        %v3086 = vadd.f32 %v2680, %v2682
        %3087 = vadd.xlane.f32.xlu0 %v3086
        %v3088 = vpop.xlane.xlu0 %3087
        %v3089 = vadd.f32 %v2684, %v2686
        %3090 = vadd.xlane.f32.xlu0 %v3089
        %v3091 = vpop.xlane.xlu0 %3090
        %v3092 = vadd.f32 %v2688, %v2690
        %3093 = vadd.xlane.f32.xlu0 %v3092
        %v3094 = vpop.xlane.xlu0 %3093
        %v3095 = vadd.f32 %v2692, %v2694
        %3096 = vadd.xlane.f32.xlu0 %v3095
        %v3097 = vpop.xlane.xlu0 %3096
        %v3098 = vadd.f32 %v2696, %v2698
        %3099 = vadd.xlane.f32.xlu0 %v3098
        %v3100 = vpop.xlane.xlu0 %3099
        %v3101 = vadd.f32 %v2700, %v2702
        %3102 = vadd.xlane.f32.xlu0 %v3101
        %v3103 = vpop.xlane.xlu0 %3102
        %v3104 = vadd.f32 %v2704, %v2706
        %3105 = vadd.xlane.f32.xlu0 %v3104
        %v3106 = vpop.xlane.xlu0 %3105
        %v3107 = vadd.f32 %v2708, %v2710
        %3108 = vadd.xlane.f32.xlu0 %v3107
        %v3109 = vpop.xlane.xlu0 %3108
        %v3110 = vadd.f32 %v2712, %v2714
        %3111 = vadd.xlane.f32.xlu0 %v3110
        %v3112 = vpop.xlane.xlu0 %3111
        %v3113 = vadd.f32 %v2716, %v2718
        %3114 = vadd.xlane.f32.xlu0 %v3113
        %v3115 = vpop.xlane.xlu0 %3114
        %v3116 = vadd.f32 %v2720, %v2722
        %3117 = vadd.xlane.f32.xlu0 %v3116
        %v3118 = vpop.xlane.xlu0 %3117
        %v3119 = vadd.f32 %v2724, %v2726
        %3120 = vadd.xlane.f32.xlu0 %v3119
        %v3121 = vpop.xlane.xlu0 %3120
        %v3122 = vadd.f32 %v2728, %v2730
        %3123 = vadd.xlane.f32.xlu0 %v3122
        %v3124 = vpop.xlane.xlu0 %3123
        %v3125 = vadd.f32 %v2732, %v2734
        %3126 = vadd.xlane.f32.xlu0 %v3125
        %v3127 = vpop.xlane.xlu0 %3126
        %v3128 = vadd.f32 %v2736, %v2738
        %3129 = vadd.xlane.f32.xlu0 %v3128
        %v3130 = vpop.xlane.xlu0 %3129
        %v3131 = vadd.f32 %v2740, %v2742
        %3132 = vadd.xlane.f32.xlu0 %v3131
        %v3133 = vpop.xlane.xlu0 %3132
        %v3134 = vadd.f32 %v2744, %v2746
        %3135 = vadd.xlane.f32.xlu0 %v3134
        %v3136 = vpop.xlane.xlu0 %3135
        %v3137 = vadd.f32 %v2748, %v2750
        %3138 = vadd.xlane.f32.xlu0 %v3137
        %v3139 = vpop.xlane.xlu0 %3138
        %v3140 = vadd.f32 %v2752, %v2754
        %3141 = vadd.xlane.f32.xlu0 %v3140
        %v3142 = vpop.xlane.xlu0 %3141
        %v3143 = vadd.f32 %v2756, %v2758
        %3144 = vadd.xlane.f32.xlu0 %v3143
        %v3145 = vpop.xlane.xlu0 %3144
        %v3146 = vadd.f32 %v2760, %v2762
        %3147 = vadd.xlane.f32.xlu0 %v3146
        %v3148 = vpop.xlane.xlu0 %3147
        %v3149 = vadd.f32 %v2764, %v2766
        %3150 = vadd.xlane.f32.xlu0 %v3149
        %v3151 = vpop.xlane.xlu0 %3150
        %v3152 = vadd.f32 %v2768, %v2770
        %3153 = vadd.xlane.f32.xlu0 %v3152
        %v3154 = vpop.xlane.xlu0 %3153
        %v3155 = vpack.c.bf16 %v2264, %v2260
        %v3156 = vpack.c.bf16 %v2266, %v2262
        %v3157 = vpack.c.bf16 %v2272, %v2268
        %v3158 = vpack.c.bf16 %v2274, %v2270
        %v3159 = vpack.c.bf16 %v2280, %v2276
        %v3160 = vpack.c.bf16 %v2282, %v2278
        %v3161 = vpack.c.bf16 %v2288, %v2284
        %v3162 = vpack.c.bf16 %v2290, %v2286
        %v3163 = vpack.c.bf16 %v2296, %v2292
        %v3164 = vpack.c.bf16 %v2298, %v2294
        %v3165 = vpack.c.bf16 %v2304, %v2300
        %v3166 = vpack.c.bf16 %v2306, %v2302
        %v3167 = vpack.c.bf16 %v2312, %v2308
        %v3168 = vpack.c.bf16 %v2314, %v2310
        %v3169 = vpack.c.bf16 %v2320, %v2316
        %v3170 = vpack.c.bf16 %v2322, %v2318
        %v3171 = vpack.c.bf16 %v2328, %v2324
        %v3172 = vpack.c.bf16 %v2330, %v2326
        %v3173 = vpack.c.bf16 %v2336, %v2332
        %v3174 = vpack.c.bf16 %v2338, %v2334
        %v3175 = vpack.c.bf16 %v2344, %v2340
        %v3176 = vpack.c.bf16 %v2346, %v2342
        %v3177 = vpack.c.bf16 %v2352, %v2348
        %v3178 = vpack.c.bf16 %v2354, %v2350
        %v3179 = vpack.c.bf16 %v2360, %v2356
        %v3180 = vpack.c.bf16 %v2362, %v2358
        %v3181 = vpack.c.bf16 %v2368, %v2364
        %v3182 = vpack.c.bf16 %v2370, %v2366
        %v3183 = vpack.c.bf16 %v2376, %v2372
        %v3184 = vpack.c.bf16 %v2378, %v2374
        %v3185 = vpack.c.bf16 %v2384, %v2380
        %v3186 = vpack.c.bf16 %v2386, %v2382
        %v3187 = vpack.c.bf16 %v2392, %v2388
        %v3188 = vpack.c.bf16 %v2394, %v2390
        %v3189 = vpack.c.bf16 %v2400, %v2396
        %v3190 = vpack.c.bf16 %v2402, %v2398
        %v3191 = vpack.c.bf16 %v2408, %v2404
        %v3192 = vpack.c.bf16 %v2410, %v2406
        %v3193 = vpack.c.bf16 %v2416, %v2412
        %v3194 = vpack.c.bf16 %v2418, %v2414
        %v3195 = vpack.c.bf16 %v2424, %v2420
        %v3196 = vpack.c.bf16 %v2426, %v2422
        %v3197 = vpack.c.bf16 %v2432, %v2428
        %v3198 = vpack.c.bf16 %v2434, %v2430
        %v3199 = vpack.c.bf16 %v2440, %v2436
        %v3200 = vpack.c.bf16 %v2442, %v2438
        %v3201 = vpack.c.bf16 %v2448, %v2444
        %v3202 = vpack.c.bf16 %v2450, %v2446
        %v3203 = vpack.c.bf16 %v2456, %v2452
        %v3204 = vpack.c.bf16 %v2458, %v2454
        %v3205 = vpack.c.bf16 %v2464, %v2460
        %v3206 = vpack.c.bf16 %v2466, %v2462
        %v3207 = vpack.c.bf16 %v2472, %v2468
        %v3208 = vpack.c.bf16 %v2474, %v2470
        %v3209 = vpack.c.bf16 %v2480, %v2476
        %v3210 = vpack.c.bf16 %v2482, %v2478
        %v3211 = vpack.c.bf16 %v2488, %v2484
        %v3212 = vpack.c.bf16 %v2490, %v2486
        %v3213 = vpack.c.bf16 %v2496, %v2492
        %v3214 = vpack.c.bf16 %v2498, %v2494
        %v3215 = vpack.c.bf16 %v2504, %v2500
        %v3216 = vpack.c.bf16 %v2506, %v2502
        %v3217 = vpack.c.bf16 %v2512, %v2508
        %v3218 = vpack.c.bf16 %v2514, %v2510
        %v3219 = vpack.c.bf16 %v2520, %v2516
        %v3220 = vpack.c.bf16 %v2522, %v2518
        %v3221 = vpack.c.bf16 %v2528, %v2524
        %v3222 = vpack.c.bf16 %v2530, %v2526
        %v3223 = vpack.c.bf16 %v2536, %v2532
        %v3224 = vpack.c.bf16 %v2538, %v2534
        %v3225 = vpack.c.bf16 %v2544, %v2540
        %v3226 = vpack.c.bf16 %v2546, %v2542
        %v3227 = vpack.c.bf16 %v2552, %v2548
        %v3228 = vpack.c.bf16 %v2554, %v2550
        %v3229 = vpack.c.bf16 %v2560, %v2556
        %v3230 = vpack.c.bf16 %v2562, %v2558
        %v3231 = vpack.c.bf16 %v2568, %v2564
        %v3232 = vpack.c.bf16 %v2570, %v2566
        %v3233 = vpack.c.bf16 %v2576, %v2572
        %v3234 = vpack.c.bf16 %v2578, %v2574
        %v3235 = vpack.c.bf16 %v2584, %v2580
        %v3236 = vpack.c.bf16 %v2586, %v2582
        %v3237 = vpack.c.bf16 %v2592, %v2588
        %v3238 = vpack.c.bf16 %v2594, %v2590
        %v3239 = vpack.c.bf16 %v2600, %v2596
        %v3240 = vpack.c.bf16 %v2602, %v2598
        %v3241 = vpack.c.bf16 %v2608, %v2604
        %v3242 = vpack.c.bf16 %v2610, %v2606
        %v3243 = vpack.c.bf16 %v2616, %v2612
        %v3244 = vpack.c.bf16 %v2618, %v2614
        %v3245 = vpack.c.bf16 %v2624, %v2620
        %v3246 = vpack.c.bf16 %v2626, %v2622
        %v3247 = vpack.c.bf16 %v2632, %v2628
        %v3248 = vpack.c.bf16 %v2634, %v2630
        %v3249 = vpack.c.bf16 %v2640, %v2636
        %v3250 = vpack.c.bf16 %v2642, %v2638
        %v3251 = vpack.c.bf16 %v2648, %v2644
        %v3252 = vpack.c.bf16 %v2650, %v2646
        %v3253 = vpack.c.bf16 %v2656, %v2652
        %v3254 = vpack.c.bf16 %v2658, %v2654
        %v3255 = vpack.c.bf16 %v2664, %v2660
        %v3256 = vpack.c.bf16 %v2666, %v2662
        %v3257 = vpack.c.bf16 %v2672, %v2668
        %v3258 = vpack.c.bf16 %v2674, %v2670
        %v3259 = vpack.c.bf16 %v2680, %v2676
        %v3260 = vpack.c.bf16 %v2682, %v2678
        %v3261 = vpack.c.bf16 %v2688, %v2684
        %v3262 = vpack.c.bf16 %v2690, %v2686
        %v3263 = vpack.c.bf16 %v2696, %v2692
        %v3264 = vpack.c.bf16 %v2698, %v2694
        %v3265 = vpack.c.bf16 %v2704, %v2700
        %v3266 = vpack.c.bf16 %v2706, %v2702
        %v3267 = vpack.c.bf16 %v2712, %v2708
        %v3268 = vpack.c.bf16 %v2714, %v2710
        %v3269 = vpack.c.bf16 %v2720, %v2716
        %v3270 = vpack.c.bf16 %v2722, %v2718
        %v3271 = vpack.c.bf16 %v2728, %v2724
        %v3272 = vpack.c.bf16 %v2730, %v2726
        %v3273 = vpack.c.bf16 %v2736, %v2732
        %v3274 = vpack.c.bf16 %v2738, %v2734
        %v3275 = vpack.c.bf16 %v2744, %v2740
        %v3276 = vpack.c.bf16 %v2746, %v2742
        %v3277 = vpack.c.bf16 %v2752, %v2748
        %v3278 = vpack.c.bf16 %v2754, %v2750
        %v3279 = vpack.c.bf16 %v2760, %v2756
        %v3280 = vpack.c.bf16 %v2762, %v2758
        %v3281 = vpack.c.bf16 %v2768, %v2764
        %v3282 = vpack.c.bf16 %v2770, %v2766
        %3283 = vmatprep.subr.bf16.mxu0 %v3156
        %3284 = vmatpush1.bf16.xpose.msra.mxu0 %v3155
        %3285 = vmatprep.subr.bf16.mxu0 %v3158
        %3286 = vmatpush1.bf16.xpose.msra.mxu0 %v3157
        %3287 = vmatprep.subr.bf16.mxu0 %v3160
        %3288 = vmatpush1.bf16.xpose.msra.mxu0 %v3159
        %3289 = vmatprep.subr.bf16.mxu0 %v3162
        %3290 = vmatpush1.bf16.xpose.msra.mxu0 %v3161
        %3291 = vmatprep.subr.bf16.mxu0 %v3164
        %3292 = vmatpush1.bf16.xpose.msra.mxu0 %v3163
        %3293 = vmatprep.subr.bf16.mxu0 %v3166
        %3294 = vmatpush1.bf16.xpose.msra.mxu0 %v3165
        %3295 = vmatprep.subr.bf16.mxu0 %v3168
        %3296 = vmatpush1.bf16.xpose.msra.mxu0 %v3167
        %3297 = vmatprep.subr.bf16.mxu0 %v3170
        %3298 = vmatpush1.bf16.xpose.msra.mxu0 %v3169
        %3299 = vmatprep.subr.bf16.mxu0 %v3172
        %3300 = vmatpush1.bf16.xpose.msra.mxu0 %v3171
        %3301 = vmatprep.subr.bf16.mxu0 %v3174
        %3302 = vmatpush1.bf16.xpose.msra.mxu0 %v3173
        %3303 = vmatprep.subr.bf16.mxu0 %v3176
        %3304 = vmatpush1.bf16.xpose.msra.mxu0 %v3175
        %3305 = vmatprep.subr.bf16.mxu0 %v3178
        %3306 = vmatpush1.bf16.xpose.msra.mxu0 %v3177
        %3307 = vmatprep.subr.bf16.mxu0 %v3180
        %3308 = vmatpush1.bf16.xpose.msra.mxu0 %v3179
        %3309 = vmatprep.subr.bf16.mxu0 %v3182
        %3310 = vmatpush1.bf16.xpose.msra.mxu0 %v3181
        %3311 = vmatprep.subr.bf16.mxu0 %v3184
        %3312 = vmatpush1.bf16.xpose.msra.mxu0 %v3183
        %3313 = vmatprep.subr.bf16.mxu0 %v3186
        %3314 = vmatpush1.bf16.xpose.msra.mxu0 %v3185
        %3315 = vmatprep.mubr.bf16.mxu0 %v494
        %3316 = vmatmul.mubr.bf16.gmra.mrb[0].mxu0 %v493
        %v3317 = vpop.f32.mrb[0].mxu0
        %v3318 = vadd.f32 0.0, %v3317
        %v3319 = vpop.f32.mrb[0].mxu0
        %v3320 = vadd.f32 0.0, %v3319
        %v3321 = vpop.f32.mrb[0].mxu0
        %v3322 = vpop.f32.mrb[0].mxu0
        %3323 = vdwg.mxu0
        %3324 = vmatprep.subr.bf16.mxu0 %v3188
        %3325 = vmatpush1.bf16.xpose.msra.mxu0 %v3187
        %3326 = vmatprep.subr.bf16.mxu0 %v3190
        %3327 = vmatpush1.bf16.xpose.msra.mxu0 %v3189
        %3328 = vmatprep.subr.bf16.mxu0 %v3192
        %3329 = vmatpush1.bf16.xpose.msra.mxu0 %v3191
        %3330 = vmatprep.subr.bf16.mxu0 %v3194
        %3331 = vmatpush1.bf16.xpose.msra.mxu0 %v3193
        %3332 = vmatprep.subr.bf16.mxu0 %v3196
        %3333 = vmatpush1.bf16.xpose.msra.mxu0 %v3195
        %3334 = vmatprep.subr.bf16.mxu0 %v3198
        %3335 = vmatpush1.bf16.xpose.msra.mxu0 %v3197
        %3336 = vmatprep.subr.bf16.mxu0 %v3200
        %3337 = vmatpush1.bf16.xpose.msra.mxu0 %v3199
        %3338 = vmatprep.subr.bf16.mxu0 %v3202
        %3339 = vmatpush1.bf16.xpose.msra.mxu0 %v3201
        %3340 = vmatprep.subr.bf16.mxu0 %v3204
        %3341 = vmatpush1.bf16.xpose.msra.mxu0 %v3203
        %3342 = vmatprep.subr.bf16.mxu0 %v3206
        %3343 = vmatpush1.bf16.xpose.msra.mxu0 %v3205
        %3344 = vmatprep.subr.bf16.mxu0 %v3208
        %3345 = vmatpush1.bf16.xpose.msra.mxu0 %v3207
        %3346 = vmatprep.subr.bf16.mxu0 %v3210
        %3347 = vmatpush1.bf16.xpose.msra.mxu0 %v3209
        %3348 = vmatprep.subr.bf16.mxu0 %v3212
        %3349 = vmatpush1.bf16.xpose.msra.mxu0 %v3211
        %3350 = vmatprep.subr.bf16.mxu0 %v3214
        %3351 = vmatpush1.bf16.xpose.msra.mxu0 %v3213
        %3352 = vmatprep.subr.bf16.mxu0 %v3216
        %3353 = vmatpush1.bf16.xpose.msra.mxu0 %v3215
        %3354 = vmatprep.subr.bf16.mxu0 %v3218
        %3355 = vmatpush1.bf16.xpose.msra.mxu0 %v3217
        %3356 = vmatprep.mubr.bf16.mxu0 %v496
        %3357 = vmatmul.mubr.bf16.gmra.mrb[0].mxu0 %v495
        %v3358 = vpop.f32.mrb[0].mxu0
        %v3359 = vadd.f32 0.0, %v3358
        %v3360 = vpop.f32.mrb[0].mxu0
        %v3361 = vadd.f32 0.0, %v3360
        %v3362 = vpop.f32.mrb[0].mxu0
        %v3363 = vpop.f32.mrb[0].mxu0
        %3364 = vdwg.mxu0
        %3365 = vmatprep.subr.bf16.mxu0 %v3220
        %3366 = vmatpush1.bf16.xpose.msra.mxu0 %v3219
        %3367 = vmatprep.subr.bf16.mxu0 %v3222
        %3368 = vmatpush1.bf16.xpose.msra.mxu0 %v3221
        %3369 = vmatprep.subr.bf16.mxu0 %v3224
        %3370 = vmatpush1.bf16.xpose.msra.mxu0 %v3223
        %3371 = vmatprep.subr.bf16.mxu0 %v3226
        %3372 = vmatpush1.bf16.xpose.msra.mxu0 %v3225
        %3373 = vmatprep.subr.bf16.mxu0 %v3228
        %3374 = vmatpush1.bf16.xpose.msra.mxu0 %v3227
        %3375 = vmatprep.subr.bf16.mxu0 %v3230
        %3376 = vmatpush1.bf16.xpose.msra.mxu0 %v3229
        %3377 = vmatprep.subr.bf16.mxu0 %v3232
        %3378 = vmatpush1.bf16.xpose.msra.mxu0 %v3231
        %3379 = vmatprep.subr.bf16.mxu0 %v3234
        %3380 = vmatpush1.bf16.xpose.msra.mxu0 %v3233
        %3381 = vmatprep.subr.bf16.mxu0 %v3236
        %3382 = vmatpush1.bf16.xpose.msra.mxu0 %v3235
        %3383 = vmatprep.subr.bf16.mxu0 %v3238
        %3384 = vmatpush1.bf16.xpose.msra.mxu0 %v3237
        %3385 = vmatprep.subr.bf16.mxu0 %v3240
        %3386 = vmatpush1.bf16.xpose.msra.mxu0 %v3239
        %3387 = vmatprep.subr.bf16.mxu0 %v3242
        %3388 = vmatpush1.bf16.xpose.msra.mxu0 %v3241
        %3389 = vmatprep.subr.bf16.mxu0 %v3244
        %3390 = vmatpush1.bf16.xpose.msra.mxu0 %v3243
        %3391 = vmatprep.subr.bf16.mxu0 %v3246
        %3392 = vmatpush1.bf16.xpose.msra.mxu0 %v3245
        %3393 = vmatprep.subr.bf16.mxu0 %v3248
        %3394 = vmatpush1.bf16.xpose.msra.mxu0 %v3247
        %3395 = vmatprep.subr.bf16.mxu0 %v3250
        %3396 = vmatpush1.bf16.xpose.msra.mxu0 %v3249
        %3397 = vmatprep.mubr.bf16.mxu0 %v498
        %3398 = vmatmul.mubr.bf16.gmra.mrb[0].mxu0 %v497
        %v3399 = vpop.f32.mrb[0].mxu0
        %v3400 = vadd.f32 0.0, %v3399
        %v3401 = vpop.f32.mrb[0].mxu0
        %v3402 = vadd.f32 0.0, %v3401
        %v3403 = vpop.f32.mrb[0].mxu0
        %v3404 = vpop.f32.mrb[0].mxu0
        %3405 = vdwg.mxu0
        %3406 = vmatprep.subr.bf16.mxu0 %v3252
        %3407 = vmatpush1.bf16.xpose.msra.mxu0 %v3251
        %3408 = vmatprep.subr.bf16.mxu0 %v3254
        %3409 = vmatpush1.bf16.xpose.msra.mxu0 %v3253
        %3410 = vmatprep.subr.bf16.mxu0 %v3256
        %3411 = vmatpush1.bf16.xpose.msra.mxu0 %v3255
        %3412 = vmatprep.subr.bf16.mxu0 %v3258
        %3413 = vmatpush1.bf16.xpose.msra.mxu0 %v3257
        %3414 = vmatprep.subr.bf16.mxu0 %v3260
        %3415 = vmatpush1.bf16.xpose.msra.mxu0 %v3259
        %3416 = vmatprep.subr.bf16.mxu0 %v3262
        %3417 = vmatpush1.bf16.xpose.msra.mxu0 %v3261
        %3418 = vmatprep.subr.bf16.mxu0 %v3264
        %3419 = vmatpush1.bf16.xpose.msra.mxu0 %v3263
        %3420 = vmatprep.subr.bf16.mxu0 %v3266
        %3421 = vmatpush1.bf16.xpose.msra.mxu0 %v3265
        %3422 = vmatprep.subr.bf16.mxu0 %v3268
        %3423 = vmatpush1.bf16.xpose.msra.mxu0 %v3267
        %3424 = vmatprep.subr.bf16.mxu0 %v3270
        %3425 = vmatpush1.bf16.xpose.msra.mxu0 %v3269
        %3426 = vmatprep.subr.bf16.mxu0 %v3272
        %3427 = vmatpush1.bf16.xpose.msra.mxu0 %v3271
        %3428 = vmatprep.subr.bf16.mxu0 %v3274
        %3429 = vmatpush1.bf16.xpose.msra.mxu0 %v3273
        %3430 = vmatprep.subr.bf16.mxu0 %v3276
        %3431 = vmatpush1.bf16.xpose.msra.mxu0 %v3275
        %3432 = vmatprep.subr.bf16.mxu0 %v3278
        %3433 = vmatpush1.bf16.xpose.msra.mxu0 %v3277
        %3434 = vmatprep.subr.bf16.mxu0 %v3280
        %3435 = vmatpush1.bf16.xpose.msra.mxu0 %v3279
        %3436 = vmatprep.subr.bf16.mxu0 %v3282
        %3437 = vmatpush1.bf16.xpose.msra.mxu0 %v3281
        %3438 = vmatprep.mubr.bf16.mxu0 %v500
        %3439 = vmatmul.mubr.bf16.gmra.mrb[0].mxu0 %v499
        %v3440 = vpop.f32.mrb[0].mxu0
        %v3441 = vadd.f32 0.0, %v3440
        %v3442 = vpop.f32.mrb[0].mxu0
        %v3443 = vadd.f32 0.0, %v3442
        %v3444 = vpop.f32.mrb[0].mxu0
        %v3445 = vpop.f32.mrb[0].mxu0
        %3446 = vdwg.mxu0
        %v3447 = vrcp.pop %v2773
        %v3448 = vrcp.pop %v2776
        %v3449 = vrcp.pop %v2779
        %v3450 = vrcp.pop %v2782
        %v3451 = vrcp.pop %v2785
        %v3452 = vrcp.pop %v2788
        %v3453 = vrcp.pop %v2791
        %v3454 = vrcp.pop %v2794
        %v3455 = vrcp.pop %v2797
        %v3456 = vrcp.pop %v2800
        %v3457 = vrcp.pop %v2803
        %v3458 = vrcp.pop %v2806
        %v3459 = vrcp.pop %v2809
        %v3460 = vrcp.pop %v2812
        %v3461 = vrcp.pop %v2815
        %v3462 = vrcp.pop %v2818
        %v3463 = vrcp.pop %v2821
        %v3464 = vrcp.pop %v2824
        %v3465 = vrcp.pop %v2827
        %v3466 = vrcp.pop %v2830
        %v3467 = vrcp.pop %v2833
        %v3468 = vrcp.pop %v2836
        %v3469 = vrcp.pop %v2839
        %v3470 = vrcp.pop %v2842
        %v3471 = vrcp.pop %v2845
        %v3472 = vrcp.pop %v2848
        %v3473 = vrcp.pop %v2851
        %v3474 = vrcp.pop %v2854
        %v3475 = vrcp.pop %v2857
        %v3476 = vrcp.pop %v2860
        %v3477 = vrcp.pop %v2863
        %v3478 = vrcp.pop %v2866
        %v3479 = vrcp.pop %v2869
        %v3480 = vrcp.pop %v2872
        %v3481 = vrcp.pop %v2875
        %v3482 = vrcp.pop %v2878
        %v3483 = vrcp.pop %v2881
        %v3484 = vrcp.pop %v2884
        %v3485 = vrcp.pop %v2887
        %v3486 = vrcp.pop %v2890
        %v3487 = vrcp.pop %v2893
        %v3488 = vrcp.pop %v2896
        %v3489 = vrcp.pop %v2899
        %v3490 = vrcp.pop %v2902
        %v3491 = vrcp.pop %v2905
        %v3492 = vrcp.pop %v2908
        %v3493 = vrcp.pop %v2911
        %v3494 = vrcp.pop %v2914
        %v3495 = vrcp.pop %v2917
        %v3496 = vrcp.pop %v2920
        %v3497 = vrcp.pop %v2923
        %v3498 = vrcp.pop %v2926
        %v3499 = vrcp.pop %v2929
        %v3500 = vrcp.pop %v2932
        %v3501 = vrcp.pop %v2935
        %v3502 = vrcp.pop %v2938
        %v3503 = vrcp.pop %v2941
        %v3504 = vrcp.pop %v2944
        %v3505 = vrcp.pop %v2947
        %v3506 = vrcp.pop %v2950
        %v3507 = vrcp.pop %v2953
        %v3508 = vrcp.pop %v2956
        %v3509 = vrcp.pop %v2959
        %v3510 = vrcp.pop %v2962
        %v3511 = vrcp.pop %v2965
        %v3512 = vrcp.pop %v2968
        %v3513 = vrcp.pop %v2971
        %v3514 = vrcp.pop %v2974
        %v3515 = vrcp.pop %v2977
        %v3516 = vrcp.pop %v2980
        %v3517 = vrcp.pop %v2983
        %v3518 = vrcp.pop %v2986
        %v3519 = vrcp.pop %v2989
        %v3520 = vrcp.pop %v2992
        %v3521 = vrcp.pop %v2995
        %v3522 = vrcp.pop %v2998
        %v3523 = vrcp.pop %v3001
        %v3524 = vrcp.pop %v3004
        %v3525 = vrcp.pop %v3007
        %v3526 = vrcp.pop %v3010
        %v3527 = vrcp.pop %v3013
        %v3528 = vrcp.pop %v3016
        %v3529 = vrcp.pop %v3019
        %v3530 = vrcp.pop %v3022
        %v3531 = vrcp.pop %v3025
        %v3532 = vrcp.pop %v3028
        %v3533 = vrcp.pop %v3031
        %v3534 = vrcp.pop %v3034
        %v3535 = vrcp.pop %v3037
        %v3536 = vrcp.pop %v3040
        %v3537 = vrcp.pop %v3043
        %v3538 = vrcp.pop %v3046
        %v3539 = vrcp.pop %v3049
        %v3540 = vrcp.pop %v3052
        %v3541 = vrcp.pop %v3055
        %v3542 = vrcp.pop %v3058
        %v3543 = vrcp.pop %v3061
        %v3544 = vrcp.pop %v3064
        %v3545 = vrcp.pop %v3067
        %v3546 = vrcp.pop %v3070
        %v3547 = vrcp.pop %v3073
        %v3548 = vrcp.pop %v3076
        %v3549 = vrcp.pop %v3079
        %v3550 = vrcp.pop %v3082
        %v3551 = vrcp.pop %v3085
        %v3552 = vrcp.pop %v3088
        %v3553 = vrcp.pop %v3091
        %v3554 = vrcp.pop %v3094
        %v3555 = vrcp.pop %v3097
        %v3556 = vrcp.pop %v3100
        %v3557 = vrcp.pop %v3103
        %v3558 = vrcp.pop %v3106
        %v3559 = vrcp.pop %v3109
        %v3560 = vrcp.pop %v3112
        %v3561 = vrcp.pop %v3115
        %v3562 = vrcp.pop %v3118
        %v3563 = vrcp.pop %v3121
        %v3564 = vrcp.pop %v3124
        %v3565 = vrcp.pop %v3127
        %v3566 = vrcp.pop %v3130
        %v3567 = vrcp.pop %v3133
        %v3568 = vrcp.pop %v3136
        %v3569 = vrcp.pop %v3139
        %v3570 = vrcp.pop %v3142
        %v3571 = vrcp.pop %v3145
        %v3572 = vrcp.pop %v3148
        %v3573 = vrcp.pop %v3151
        %v3574 = vrcp.pop %v3154
        %v3703 = vlaneseq
        %v3704 = vand.u32 %v3703, 127
        %v3705 = vlaneseq
        %v3706 = vshrl.u32 %v3705, 7
        %v3707 = vsub.s32 %v3704, %v3706
        %v3708 = vrot.slane %v3447, %v3707
        %v3709 = vadd.s32 %v3704, 4294967288
        %v3710 = vlaneseq
        %v3711 = vshrl.u32 %v3710, 7
        %v3712 = vsub.s32 %v3709, %v3711
        %v3713 = vrot.slane %v3448, %v3712
        %vm3714 = vcmask 130112
        %v3715 = vsel %vm3714, %v3713, %v3708
        %v3716 = vadd.s32 %v3704, 4294967280
        %v3717 = vlaneseq
        %v3718 = vshrl.u32 %v3717, 7
        %v3719 = vsub.s32 %v3716, %v3718
        %v3720 = vrot.slane %v3449, %v3719
        %vm3721 = vcmask 195712
        %v3722 = vsel %vm3721, %v3720, %v3715
        %v3723 = vadd.s32 %v3704, 4294967272
        %v3724 = vlaneseq
        %v3725 = vshrl.u32 %v3724, 7
        %v3726 = vsub.s32 %v3723, %v3725
        %v3727 = vrot.slane %v3450, %v3726
        %vm3728 = vcmask 261312
        %v3729 = vsel %vm3728, %v3727, %v3722
        %v3730 = vadd.s32 %v3704, 4294967264
        %v3731 = vlaneseq
        %v3732 = vshrl.u32 %v3731, 7
        %v3733 = vsub.s32 %v3730, %v3732
        %v3734 = vrot.slane %v3451, %v3733
        %vm3735 = vcmask 326912
        %v3736 = vsel %vm3735, %v3734, %v3729
        %v3737 = vadd.s32 %v3704, 4294967256
        %v3738 = vlaneseq
        %v3739 = vshrl.u32 %v3738, 7
        %v3740 = vsub.s32 %v3737, %v3739
        %v3741 = vrot.slane %v3452, %v3740
        %vm3742 = vcmask 392512
        %v3743 = vsel %vm3742, %v3741, %v3736
        %v3744 = vadd.s32 %v3704, 4294967248
        %v3745 = vlaneseq
        %v3746 = vshrl.u32 %v3745, 7
        %v3747 = vsub.s32 %v3744, %v3746
        %v3748 = vrot.slane %v3453, %v3747
        %vm3749 = vcmask 458112
        %v3750 = vsel %vm3749, %v3748, %v3743
        %v3751 = vadd.s32 %v3704, 4294967240
        %v3752 = vlaneseq
        %v3753 = vshrl.u32 %v3752, 7
        %v3754 = vsub.s32 %v3751, %v3753
        %v3755 = vrot.slane %v3454, %v3754
        %vm3756 = vcmask 523712
        %v3757 = vsel %vm3756, %v3755, %v3750
        %v3758 = vadd.s32 %v3704, 4294967232
        %v3759 = vlaneseq
        %v3760 = vshrl.u32 %v3759, 7
        %v3761 = vsub.s32 %v3758, %v3760
        %v3762 = vrot.slane %v3455, %v3761
        %vm3763 = vcmask 589312
        %v3764 = vsel %vm3763, %v3762, %v3757
        %v3765 = vadd.s32 %v3704, 4294967224
        %v3766 = vlaneseq
        %v3767 = vshrl.u32 %v3766, 7
        %v3768 = vsub.s32 %v3765, %v3767
        %v3769 = vrot.slane %v3456, %v3768
        %vm3770 = vcmask 654912
        %v3771 = vsel %vm3770, %v3769, %v3764
        %v3772 = vadd.s32 %v3704, 4294967216
        %v3773 = vlaneseq
        %v3774 = vshrl.u32 %v3773, 7
        %v3775 = vsub.s32 %v3772, %v3774
        %v3776 = vrot.slane %v3457, %v3775
        %vm3777 = vcmask 720512
        %v3778 = vsel %vm3777, %v3776, %v3771
        %v3779 = vadd.s32 %v3704, 4294967208
        %v3780 = vlaneseq
        %v3781 = vshrl.u32 %v3780, 7
        %v3782 = vsub.s32 %v3779, %v3781
        %v3783 = vrot.slane %v3458, %v3782
        %vm3784 = vcmask 786112
        %v3785 = vsel %vm3784, %v3783, %v3778
        %v3786 = vadd.s32 %v3704, 4294967200
        %v3787 = vlaneseq
        %v3788 = vshrl.u32 %v3787, 7
        %v3789 = vsub.s32 %v3786, %v3788
        %v3790 = vrot.slane %v3459, %v3789
        %vm3791 = vcmask 851712
        %v3792 = vsel %vm3791, %v3790, %v3785
        %v3793 = vadd.s32 %v3704, 4294967192
        %v3794 = vlaneseq
        %v3795 = vshrl.u32 %v3794, 7
        %v3796 = vsub.s32 %v3793, %v3795
        %v3797 = vrot.slane %v3460, %v3796
        %vm3798 = vcmask 917312
        %v3799 = vsel %vm3798, %v3797, %v3792
        %v3800 = vadd.s32 %v3704, 4294967184
        %v3801 = vlaneseq
        %v3802 = vshrl.u32 %v3801, 7
        %v3803 = vsub.s32 %v3800, %v3802
        %v3804 = vrot.slane %v3461, %v3803
        %vm3805 = vcmask 982912
        %v3806 = vsel %vm3805, %v3804, %v3799
        %v3807 = vadd.s32 %v3704, 4294967176
        %v3808 = vlaneseq
        %v3809 = vshrl.u32 %v3808, 7
        %v3810 = vsub.s32 %v3807, %v3809
        %v3811 = vrot.slane %v3462, %v3810
        %vm3812 = vcmask 1048512
        %v3813 = vsel %vm3812, %v3811, %v3806
        %v3814 = vlaneseq
        %v3815 = vshrl.u32 %v3814, 7
        %v3816 = vsub.s32 %v3704, %v3815
        %v3817 = vrot.slane %v3463, %v3816
        %v3818 = vlaneseq
        %v3819 = vshrl.u32 %v3818, 7
        %v3820 = vsub.s32 %v3709, %v3819
        %v3821 = vrot.slane %v3464, %v3820
        %v3822 = vsel %vm3714, %v3821, %v3817
        %v3823 = vlaneseq
        %v3824 = vshrl.u32 %v3823, 7
        %v3825 = vsub.s32 %v3716, %v3824
        %v3826 = vrot.slane %v3465, %v3825
        %v3827 = vsel %vm3721, %v3826, %v3822
        %v3828 = vlaneseq
        %v3829 = vshrl.u32 %v3828, 7
        %v3830 = vsub.s32 %v3723, %v3829
        %v3831 = vrot.slane %v3466, %v3830
        %v3832 = vsel %vm3728, %v3831, %v3827
        %v3833 = vlaneseq
        %v3834 = vshrl.u32 %v3833, 7
        %v3835 = vsub.s32 %v3730, %v3834
        %v3836 = vrot.slane %v3467, %v3835
        %v3837 = vsel %vm3735, %v3836, %v3832
        %v3838 = vlaneseq
        %v3839 = vshrl.u32 %v3838, 7
        %v3840 = vsub.s32 %v3737, %v3839
        %v3841 = vrot.slane %v3468, %v3840
        %v3842 = vsel %vm3742, %v3841, %v3837
        %v3843 = vlaneseq
        %v3844 = vshrl.u32 %v3843, 7
        %v3845 = vsub.s32 %v3744, %v3844
        %v3846 = vrot.slane %v3469, %v3845
        %v3847 = vsel %vm3749, %v3846, %v3842
        %v3848 = vlaneseq
        %v3849 = vshrl.u32 %v3848, 7
        %v3850 = vsub.s32 %v3751, %v3849
        %v3851 = vrot.slane %v3470, %v3850
        %v3852 = vsel %vm3756, %v3851, %v3847
        %v3853 = vlaneseq
        %v3854 = vshrl.u32 %v3853, 7
        %v3855 = vsub.s32 %v3758, %v3854
        %v3856 = vrot.slane %v3471, %v3855
        %v3857 = vsel %vm3763, %v3856, %v3852
        %v3858 = vlaneseq
        %v3859 = vshrl.u32 %v3858, 7
        %v3860 = vsub.s32 %v3765, %v3859
        %v3861 = vrot.slane %v3472, %v3860
        %v3862 = vsel %vm3770, %v3861, %v3857
        %v3863 = vlaneseq
        %v3864 = vshrl.u32 %v3863, 7
        %v3865 = vsub.s32 %v3772, %v3864
        %v3866 = vrot.slane %v3473, %v3865
        %v3867 = vsel %vm3777, %v3866, %v3862
        %v3868 = vlaneseq
        %v3869 = vshrl.u32 %v3868, 7
        %v3870 = vsub.s32 %v3779, %v3869
        %v3871 = vrot.slane %v3474, %v3870
        %v3872 = vsel %vm3784, %v3871, %v3867
        %v3873 = vlaneseq
        %v3874 = vshrl.u32 %v3873, 7
        %v3875 = vsub.s32 %v3786, %v3874
        %v3876 = vrot.slane %v3475, %v3875
        %v3877 = vsel %vm3791, %v3876, %v3872
        %v3878 = vlaneseq
        %v3879 = vshrl.u32 %v3878, 7
        %v3880 = vsub.s32 %v3793, %v3879
        %v3881 = vrot.slane %v3476, %v3880
        %v3882 = vsel %vm3798, %v3881, %v3877
        %v3883 = vlaneseq
        %v3884 = vshrl.u32 %v3883, 7
        %v3885 = vsub.s32 %v3800, %v3884
        %v3886 = vrot.slane %v3477, %v3885
        %v3887 = vsel %vm3805, %v3886, %v3882
        %v3888 = vlaneseq
        %v3889 = vshrl.u32 %v3888, 7
        %v3890 = vsub.s32 %v3807, %v3889
        %v3891 = vrot.slane %v3478, %v3890
        %v3892 = vsel %vm3812, %v3891, %v3887
        %v3893 = vlaneseq
        %v3894 = vshrl.u32 %v3893, 7
        %v3895 = vsub.s32 %v3704, %v3894
        %v3896 = vrot.slane %v3479, %v3895
        %v3897 = vlaneseq
        %v3898 = vshrl.u32 %v3897, 7
        %v3899 = vsub.s32 %v3709, %v3898
        %v3900 = vrot.slane %v3480, %v3899
        %v3901 = vsel %vm3714, %v3900, %v3896
        %v3902 = vlaneseq
        %v3903 = vshrl.u32 %v3902, 7
        %v3904 = vsub.s32 %v3716, %v3903
        %v3905 = vrot.slane %v3481, %v3904
        %v3906 = vsel %vm3721, %v3905, %v3901
        %v3907 = vlaneseq
        %v3908 = vshrl.u32 %v3907, 7
        %v3909 = vsub.s32 %v3723, %v3908
        %v3910 = vrot.slane %v3482, %v3909
        %v3911 = vsel %vm3728, %v3910, %v3906
        %v3912 = vlaneseq
        %v3913 = vshrl.u32 %v3912, 7
        %v3914 = vsub.s32 %v3730, %v3913
        %v3915 = vrot.slane %v3483, %v3914
        %v3916 = vsel %vm3735, %v3915, %v3911
        %v3917 = vlaneseq
        %v3918 = vshrl.u32 %v3917, 7
        %v3919 = vsub.s32 %v3737, %v3918
        %v3920 = vrot.slane %v3484, %v3919
        %v3921 = vsel %vm3742, %v3920, %v3916
        %v3922 = vlaneseq
        %v3923 = vshrl.u32 %v3922, 7
        %v3924 = vsub.s32 %v3744, %v3923
        %v3925 = vrot.slane %v3485, %v3924
        %v3926 = vsel %vm3749, %v3925, %v3921
        %v3927 = vlaneseq
        %v3928 = vshrl.u32 %v3927, 7
        %v3929 = vsub.s32 %v3751, %v3928
        %v3930 = vrot.slane %v3486, %v3929
        %v3931 = vsel %vm3756, %v3930, %v3926
        %v3932 = vlaneseq
        %v3933 = vshrl.u32 %v3932, 7
        %v3934 = vsub.s32 %v3758, %v3933
        %v3935 = vrot.slane %v3487, %v3934
        %v3936 = vsel %vm3763, %v3935, %v3931
        %v3937 = vlaneseq
        %v3938 = vshrl.u32 %v3937, 7
        %v3939 = vsub.s32 %v3765, %v3938
        %v3940 = vrot.slane %v3488, %v3939
        %v3941 = vsel %vm3770, %v3940, %v3936
        %v3942 = vlaneseq
        %v3943 = vshrl.u32 %v3942, 7
        %v3944 = vsub.s32 %v3772, %v3943
        %v3945 = vrot.slane %v3489, %v3944
        %v3946 = vsel %vm3777, %v3945, %v3941
        %v3947 = vlaneseq
        %v3948 = vshrl.u32 %v3947, 7
        %v3949 = vsub.s32 %v3779, %v3948
        %v3950 = vrot.slane %v3490, %v3949
        %v3951 = vsel %vm3784, %v3950, %v3946
        %v3952 = vlaneseq
        %v3953 = vshrl.u32 %v3952, 7
        %v3954 = vsub.s32 %v3786, %v3953
        %v3955 = vrot.slane %v3491, %v3954
        %v3956 = vsel %vm3791, %v3955, %v3951
        %v3957 = vlaneseq
        %v3958 = vshrl.u32 %v3957, 7
        %v3959 = vsub.s32 %v3793, %v3958
        %v3960 = vrot.slane %v3492, %v3959
        %v3961 = vsel %vm3798, %v3960, %v3956
        %v3962 = vlaneseq
        %v3963 = vshrl.u32 %v3962, 7
        %v3964 = vsub.s32 %v3800, %v3963
        %v3965 = vrot.slane %v3493, %v3964
        %v3966 = vsel %vm3805, %v3965, %v3961
        %v3967 = vlaneseq
        %v3968 = vshrl.u32 %v3967, 7
        %v3969 = vsub.s32 %v3807, %v3968
        %v3970 = vrot.slane %v3494, %v3969
        %v3971 = vsel %vm3812, %v3970, %v3966
        %v3972 = vlaneseq
        %v3973 = vshrl.u32 %v3972, 7
        %v3974 = vsub.s32 %v3704, %v3973
        %v3975 = vrot.slane %v3495, %v3974
        %v3976 = vlaneseq
        %v3977 = vshrl.u32 %v3976, 7
        %v3978 = vsub.s32 %v3709, %v3977
        %v3979 = vrot.slane %v3496, %v3978
        %v3980 = vsel %vm3714, %v3979, %v3975
        %v3981 = vlaneseq
        %v3982 = vshrl.u32 %v3981, 7
        %v3983 = vsub.s32 %v3716, %v3982
        %v3984 = vrot.slane %v3497, %v3983
        %v3985 = vsel %vm3721, %v3984, %v3980
        %v3986 = vlaneseq
        %v3987 = vshrl.u32 %v3986, 7
        %v3988 = vsub.s32 %v3723, %v3987
        %v3989 = vrot.slane %v3498, %v3988
        %v3990 = vsel %vm3728, %v3989, %v3985
        %v3991 = vlaneseq
        %v3992 = vshrl.u32 %v3991, 7
        %v3993 = vsub.s32 %v3730, %v3992
        %v3994 = vrot.slane %v3499, %v3993
        %v3995 = vsel %vm3735, %v3994, %v3990
        %v3996 = vlaneseq
        %v3997 = vshrl.u32 %v3996, 7
        %v3998 = vsub.s32 %v3737, %v3997
        %v3999 = vrot.slane %v3500, %v3998
        %v4000 = vsel %vm3742, %v3999, %v3995
        %v4001 = vlaneseq
        %v4002 = vshrl.u32 %v4001, 7
        %v4003 = vsub.s32 %v3744, %v4002
        %v4004 = vrot.slane %v3501, %v4003
        %v4005 = vsel %vm3749, %v4004, %v4000
        %v4006 = vlaneseq
        %v4007 = vshrl.u32 %v4006, 7
        %v4008 = vsub.s32 %v3751, %v4007
        %v4009 = vrot.slane %v3502, %v4008
        %v4010 = vsel %vm3756, %v4009, %v4005
        %v4011 = vlaneseq
        %v4012 = vshrl.u32 %v4011, 7
        %v4013 = vsub.s32 %v3758, %v4012
        %v4014 = vrot.slane %v3503, %v4013
        %v4015 = vsel %vm3763, %v4014, %v4010
        %v4016 = vlaneseq
        %v4017 = vshrl.u32 %v4016, 7
        %v4018 = vsub.s32 %v3765, %v4017
        %v4019 = vrot.slane %v3504, %v4018
        %v4020 = vsel %vm3770, %v4019, %v4015
        %v4021 = vlaneseq
        %v4022 = vshrl.u32 %v4021, 7
        %v4023 = vsub.s32 %v3772, %v4022
        %v4024 = vrot.slane %v3505, %v4023
        %v4025 = vsel %vm3777, %v4024, %v4020
        %v4026 = vlaneseq
        %v4027 = vshrl.u32 %v4026, 7
        %v4028 = vsub.s32 %v3779, %v4027
        %v4029 = vrot.slane %v3506, %v4028
        %v4030 = vsel %vm3784, %v4029, %v4025
        %v4031 = vlaneseq
        %v4032 = vshrl.u32 %v4031, 7
        %v4033 = vsub.s32 %v3786, %v4032
        %v4034 = vrot.slane %v3507, %v4033
        %v4035 = vsel %vm3791, %v4034, %v4030
        %v4036 = vlaneseq
        %v4037 = vshrl.u32 %v4036, 7
        %v4038 = vsub.s32 %v3793, %v4037
        %v4039 = vrot.slane %v3508, %v4038
        %v4040 = vsel %vm3798, %v4039, %v4035
        %v4041 = vlaneseq
        %v4042 = vshrl.u32 %v4041, 7
        %v4043 = vsub.s32 %v3800, %v4042
        %v4044 = vrot.slane %v3509, %v4043
        %v4045 = vsel %vm3805, %v4044, %v4040
        %v4046 = vlaneseq
        %v4047 = vshrl.u32 %v4046, 7
        %v4048 = vsub.s32 %v3807, %v4047
        %v4049 = vrot.slane %v3510, %v4048
        %v4050 = vsel %vm3812, %v4049, %v4045
        %v4051 = vlaneseq
        %v4052 = vshrl.u32 %v4051, 7
        %v4053 = vsub.s32 %v3704, %v4052
        %v4054 = vrot.slane %v3511, %v4053
        %v4055 = vlaneseq
        %v4056 = vshrl.u32 %v4055, 7
        %v4057 = vsub.s32 %v3709, %v4056
        %v4058 = vrot.slane %v3512, %v4057
        %v4059 = vsel %vm3714, %v4058, %v4054
        %v4060 = vlaneseq
        %v4061 = vshrl.u32 %v4060, 7
        %v4062 = vsub.s32 %v3716, %v4061
        %v4063 = vrot.slane %v3513, %v4062
        %v4064 = vsel %vm3721, %v4063, %v4059
        %v4065 = vlaneseq
        %v4066 = vshrl.u32 %v4065, 7
        %v4067 = vsub.s32 %v3723, %v4066
        %v4068 = vrot.slane %v3514, %v4067
        %v4069 = vsel %vm3728, %v4068, %v4064
        %v4070 = vlaneseq
        %v4071 = vshrl.u32 %v4070, 7
        %v4072 = vsub.s32 %v3730, %v4071
        %v4073 = vrot.slane %v3515, %v4072
        %v4074 = vsel %vm3735, %v4073, %v4069
        %v4075 = vlaneseq
        %v4076 = vshrl.u32 %v4075, 7
        %v4077 = vsub.s32 %v3737, %v4076
        %v4078 = vrot.slane %v3516, %v4077
        %v4079 = vsel %vm3742, %v4078, %v4074
        %v4080 = vlaneseq
        %v4081 = vshrl.u32 %v4080, 7
        %v4082 = vsub.s32 %v3744, %v4081
        %v4083 = vrot.slane %v3517, %v4082
        %v4084 = vsel %vm3749, %v4083, %v4079
        %v4085 = vlaneseq
        %v4086 = vshrl.u32 %v4085, 7
        %v4087 = vsub.s32 %v3751, %v4086
        %v4088 = vrot.slane %v3518, %v4087
        %v4089 = vsel %vm3756, %v4088, %v4084
        %v4090 = vlaneseq
        %v4091 = vshrl.u32 %v4090, 7
        %v4092 = vsub.s32 %v3758, %v4091
        %v4093 = vrot.slane %v3519, %v4092
        %v4094 = vsel %vm3763, %v4093, %v4089
        %v4095 = vlaneseq
        %v4096 = vshrl.u32 %v4095, 7
        %v4097 = vsub.s32 %v3765, %v4096
        %v4098 = vrot.slane %v3520, %v4097
        %v4099 = vsel %vm3770, %v4098, %v4094
        %v4100 = vlaneseq
        %v4101 = vshrl.u32 %v4100, 7
        %v4102 = vsub.s32 %v3772, %v4101
        %v4103 = vrot.slane %v3521, %v4102
        %v4104 = vsel %vm3777, %v4103, %v4099
        %v4105 = vlaneseq
        %v4106 = vshrl.u32 %v4105, 7
        %v4107 = vsub.s32 %v3779, %v4106
        %v4108 = vrot.slane %v3522, %v4107
        %v4109 = vsel %vm3784, %v4108, %v4104
        %v4110 = vlaneseq
        %v4111 = vshrl.u32 %v4110, 7
        %v4112 = vsub.s32 %v3786, %v4111
        %v4113 = vrot.slane %v3523, %v4112
        %v4114 = vsel %vm3791, %v4113, %v4109
        %v4115 = vlaneseq
        %v4116 = vshrl.u32 %v4115, 7
        %v4117 = vsub.s32 %v3793, %v4116
        %v4118 = vrot.slane %v3524, %v4117
        %v4119 = vsel %vm3798, %v4118, %v4114
        %v4120 = vlaneseq
        %v4121 = vshrl.u32 %v4120, 7
        %v4122 = vsub.s32 %v3800, %v4121
        %v4123 = vrot.slane %v3525, %v4122
        %v4124 = vsel %vm3805, %v4123, %v4119
        %v4125 = vlaneseq
        %v4126 = vshrl.u32 %v4125, 7
        %v4127 = vsub.s32 %v3807, %v4126
        %v4128 = vrot.slane %v3526, %v4127
        %v4129 = vsel %vm3812, %v4128, %v4124
        %v4130 = vlaneseq
        %v4131 = vshrl.u32 %v4130, 7
        %v4132 = vsub.s32 %v3704, %v4131
        %v4133 = vrot.slane %v3527, %v4132
        %v4134 = vlaneseq
        %v4135 = vshrl.u32 %v4134, 7
        %v4136 = vsub.s32 %v3709, %v4135
        %v4137 = vrot.slane %v3528, %v4136
        %v4138 = vsel %vm3714, %v4137, %v4133
        %v4139 = vlaneseq
        %v4140 = vshrl.u32 %v4139, 7
        %v4141 = vsub.s32 %v3716, %v4140
        %v4142 = vrot.slane %v3529, %v4141
        %v4143 = vsel %vm3721, %v4142, %v4138
        %v4144 = vlaneseq
        %v4145 = vshrl.u32 %v4144, 7
        %v4146 = vsub.s32 %v3723, %v4145
        %v4147 = vrot.slane %v3530, %v4146
        %v4148 = vsel %vm3728, %v4147, %v4143
        %v4149 = vlaneseq
        %v4150 = vshrl.u32 %v4149, 7
        %v4151 = vsub.s32 %v3730, %v4150
        %v4152 = vrot.slane %v3531, %v4151
        %v4153 = vsel %vm3735, %v4152, %v4148
        %v4154 = vlaneseq
        %v4155 = vshrl.u32 %v4154, 7
        %v4156 = vsub.s32 %v3737, %v4155
        %v4157 = vrot.slane %v3532, %v4156
        %v4158 = vsel %vm3742, %v4157, %v4153
        %v4159 = vlaneseq
        %v4160 = vshrl.u32 %v4159, 7
        %v4161 = vsub.s32 %v3744, %v4160
        %v4162 = vrot.slane %v3533, %v4161
        %v4163 = vsel %vm3749, %v4162, %v4158
        %v4164 = vlaneseq
        %v4165 = vshrl.u32 %v4164, 7
        %v4166 = vsub.s32 %v3751, %v4165
        %v4167 = vrot.slane %v3534, %v4166
        %v4168 = vsel %vm3756, %v4167, %v4163
        %v4169 = vlaneseq
        %v4170 = vshrl.u32 %v4169, 7
        %v4171 = vsub.s32 %v3758, %v4170
        %v4172 = vrot.slane %v3535, %v4171
        %v4173 = vsel %vm3763, %v4172, %v4168
        %v4174 = vlaneseq
        %v4175 = vshrl.u32 %v4174, 7
        %v4176 = vsub.s32 %v3765, %v4175
        %v4177 = vrot.slane %v3536, %v4176
        %v4178 = vsel %vm3770, %v4177, %v4173
        %v4179 = vlaneseq
        %v4180 = vshrl.u32 %v4179, 7
        %v4181 = vsub.s32 %v3772, %v4180
        %v4182 = vrot.slane %v3537, %v4181
        %v4183 = vsel %vm3777, %v4182, %v4178
        %v4184 = vlaneseq
        %v4185 = vshrl.u32 %v4184, 7
        %v4186 = vsub.s32 %v3779, %v4185
        %v4187 = vrot.slane %v3538, %v4186
        %v4188 = vsel %vm3784, %v4187, %v4183
        %v4189 = vlaneseq
        %v4190 = vshrl.u32 %v4189, 7
        %v4191 = vsub.s32 %v3786, %v4190
        %v4192 = vrot.slane %v3539, %v4191
        %v4193 = vsel %vm3791, %v4192, %v4188
        %v4194 = vlaneseq
        %v4195 = vshrl.u32 %v4194, 7
        %v4196 = vsub.s32 %v3793, %v4195
        %v4197 = vrot.slane %v3540, %v4196
        %v4198 = vsel %vm3798, %v4197, %v4193
        %v4199 = vlaneseq
        %v4200 = vshrl.u32 %v4199, 7
        %v4201 = vsub.s32 %v3800, %v4200
        %v4202 = vrot.slane %v3541, %v4201
        %v4203 = vsel %vm3805, %v4202, %v4198
        %v4204 = vlaneseq
        %v4205 = vshrl.u32 %v4204, 7
        %v4206 = vsub.s32 %v3807, %v4205
        %v4207 = vrot.slane %v3542, %v4206
        %v4208 = vsel %vm3812, %v4207, %v4203
        %v4209 = vlaneseq
        %v4210 = vshrl.u32 %v4209, 7
        %v4211 = vsub.s32 %v3704, %v4210
        %v4212 = vrot.slane %v3543, %v4211
        %v4213 = vlaneseq
        %v4214 = vshrl.u32 %v4213, 7
        %v4215 = vsub.s32 %v3709, %v4214
        %v4216 = vrot.slane %v3544, %v4215
        %v4217 = vsel %vm3714, %v4216, %v4212
        %v4218 = vlaneseq
        %v4219 = vshrl.u32 %v4218, 7
        %v4220 = vsub.s32 %v3716, %v4219
        %v4221 = vrot.slane %v3545, %v4220
        %v4222 = vsel %vm3721, %v4221, %v4217
        %v4223 = vlaneseq
        %v4224 = vshrl.u32 %v4223, 7
        %v4225 = vsub.s32 %v3723, %v4224
        %v4226 = vrot.slane %v3546, %v4225
        %v4227 = vsel %vm3728, %v4226, %v4222
        %v4228 = vlaneseq
        %v4229 = vshrl.u32 %v4228, 7
        %v4230 = vsub.s32 %v3730, %v4229
        %v4231 = vrot.slane %v3547, %v4230
        %v4232 = vsel %vm3735, %v4231, %v4227
        %v4233 = vlaneseq
        %v4234 = vshrl.u32 %v4233, 7
        %v4235 = vsub.s32 %v3737, %v4234
        %v4236 = vrot.slane %v3548, %v4235
        %v4237 = vsel %vm3742, %v4236, %v4232
        %v4238 = vlaneseq
        %v4239 = vshrl.u32 %v4238, 7
        %v4240 = vsub.s32 %v3744, %v4239
        %v4241 = vrot.slane %v3549, %v4240
        %v4242 = vsel %vm3749, %v4241, %v4237
        %v4243 = vlaneseq
        %v4244 = vshrl.u32 %v4243, 7
        %v4245 = vsub.s32 %v3751, %v4244
        %v4246 = vrot.slane %v3550, %v4245
        %v4247 = vsel %vm3756, %v4246, %v4242
        %v4248 = vlaneseq
        %v4249 = vshrl.u32 %v4248, 7
        %v4250 = vsub.s32 %v3758, %v4249
        %v4251 = vrot.slane %v3551, %v4250
        %v4252 = vsel %vm3763, %v4251, %v4247
        %v4253 = vlaneseq
        %v4254 = vshrl.u32 %v4253, 7
        %v4255 = vsub.s32 %v3765, %v4254
        %v4256 = vrot.slane %v3552, %v4255
        %v4257 = vsel %vm3770, %v4256, %v4252
        %v4258 = vlaneseq
        %v4259 = vshrl.u32 %v4258, 7
        %v4260 = vsub.s32 %v3772, %v4259
        %v4261 = vrot.slane %v3553, %v4260
        %v4262 = vsel %vm3777, %v4261, %v4257
        %v4263 = vlaneseq
        %v4264 = vshrl.u32 %v4263, 7
        %v4265 = vsub.s32 %v3779, %v4264
        %v4266 = vrot.slane %v3554, %v4265
        %v4267 = vsel %vm3784, %v4266, %v4262
        %v4268 = vlaneseq
        %v4269 = vshrl.u32 %v4268, 7
        %v4270 = vsub.s32 %v3786, %v4269
        %v4271 = vrot.slane %v3555, %v4270
        %v4272 = vsel %vm3791, %v4271, %v4267
        %v4273 = vlaneseq
        %v4274 = vshrl.u32 %v4273, 7
        %v4275 = vsub.s32 %v3793, %v4274
        %v4276 = vrot.slane %v3556, %v4275
        %v4277 = vsel %vm3798, %v4276, %v4272
        %v4278 = vlaneseq
        %v4279 = vshrl.u32 %v4278, 7
        %v4280 = vsub.s32 %v3800, %v4279
        %v4281 = vrot.slane %v3557, %v4280
        %v4282 = vsel %vm3805, %v4281, %v4277
        %v4283 = vlaneseq
        %v4284 = vshrl.u32 %v4283, 7
        %v4285 = vsub.s32 %v3807, %v4284
        %v4286 = vrot.slane %v3558, %v4285
        %v4287 = vsel %vm3812, %v4286, %v4282
        %v4288 = vlaneseq
        %v4289 = vshrl.u32 %v4288, 7
        %v4290 = vsub.s32 %v3704, %v4289
        %v4291 = vrot.slane %v3559, %v4290
        %v4292 = vlaneseq
        %v4293 = vshrl.u32 %v4292, 7
        %v4294 = vsub.s32 %v3709, %v4293
        %v4295 = vrot.slane %v3560, %v4294
        %v4296 = vsel %vm3714, %v4295, %v4291
        %v4297 = vlaneseq
        %v4298 = vshrl.u32 %v4297, 7
        %v4299 = vsub.s32 %v3716, %v4298
        %v4300 = vrot.slane %v3561, %v4299
        %v4301 = vsel %vm3721, %v4300, %v4296
        %v4302 = vlaneseq
        %v4303 = vshrl.u32 %v4302, 7
        %v4304 = vsub.s32 %v3723, %v4303
        %v4305 = vrot.slane %v3562, %v4304
        %v4306 = vsel %vm3728, %v4305, %v4301
        %v4307 = vlaneseq
        %v4308 = vshrl.u32 %v4307, 7
        %v4309 = vsub.s32 %v3730, %v4308
        %v4310 = vrot.slane %v3563, %v4309
        %v4311 = vsel %vm3735, %v4310, %v4306
        %v4312 = vlaneseq
        %v4313 = vshrl.u32 %v4312, 7
        %v4314 = vsub.s32 %v3737, %v4313
        %v4315 = vrot.slane %v3564, %v4314
        %v4316 = vsel %vm3742, %v4315, %v4311
        %v4317 = vlaneseq
        %v4318 = vshrl.u32 %v4317, 7
        %v4319 = vsub.s32 %v3744, %v4318
        %v4320 = vrot.slane %v3565, %v4319
        %v4321 = vsel %vm3749, %v4320, %v4316
        %v4322 = vlaneseq
        %v4323 = vshrl.u32 %v4322, 7
        %v4324 = vsub.s32 %v3751, %v4323
        %v4325 = vrot.slane %v3566, %v4324
        %v4326 = vsel %vm3756, %v4325, %v4321
        %v4327 = vlaneseq
        %v4328 = vshrl.u32 %v4327, 7
        %v4329 = vsub.s32 %v3758, %v4328
        %v4330 = vrot.slane %v3567, %v4329
        %v4331 = vsel %vm3763, %v4330, %v4326
        %v4332 = vlaneseq
        %v4333 = vshrl.u32 %v4332, 7
        %v4334 = vsub.s32 %v3765, %v4333
        %v4335 = vrot.slane %v3568, %v4334
        %v4336 = vsel %vm3770, %v4335, %v4331
        %v4337 = vlaneseq
        %v4338 = vshrl.u32 %v4337, 7
        %v4339 = vsub.s32 %v3772, %v4338
        %v4340 = vrot.slane %v3569, %v4339
        %v4341 = vsel %vm3777, %v4340, %v4336
        %v4342 = vlaneseq
        %v4343 = vshrl.u32 %v4342, 7
        %v4344 = vsub.s32 %v3779, %v4343
        %v4345 = vrot.slane %v3570, %v4344
        %v4346 = vsel %vm3784, %v4345, %v4341
        %v4347 = vlaneseq
        %v4348 = vshrl.u32 %v4347, 7
        %v4349 = vsub.s32 %v3786, %v4348
        %v4350 = vrot.slane %v3571, %v4349
        %v4351 = vsel %vm3791, %v4350, %v4346
        %v4352 = vlaneseq
        %v4353 = vshrl.u32 %v4352, 7
        %v4354 = vsub.s32 %v3793, %v4353
        %v4355 = vrot.slane %v3572, %v4354
        %v4356 = vsel %vm3798, %v4355, %v4351
        %v4357 = vlaneseq
        %v4358 = vshrl.u32 %v4357, 7
        %v4359 = vsub.s32 %v3800, %v4358
        %v4360 = vrot.slane %v3573, %v4359
        %v4361 = vsel %vm3805, %v4360, %v4356
        %v4362 = vlaneseq
        %v4363 = vshrl.u32 %v4362, 7
        %v4364 = vsub.s32 %v3807, %v4363
        %v4365 = vrot.slane %v3574, %v4364
        %v4366 = vsel %vm3812, %v4365, %v4361
        %vm4367 = vcmask 1042434
        %v4368 = vsel %vm4367, %v3813, %v3813
        %vm4369 = vcmask 1043459
        %v4370 = vsel %vm4369, %v3813, %v4368
        %vm4371 = vcmask 1044484
        %v4372 = vsel %vm4371, %v3813, %v4370
        %vm4373 = vcmask 1045509
        %v4374 = vsel %vm4373, %v3813, %v4372
        %vm4375 = vcmask 1046534
        %v4376 = vsel %vm4375, %v3813, %v4374
        %vm4377 = vcmask 1047559
        %v4378 = vsel %vm4377, %v3813, %v4376
        %v4379 = vsel %vm4367, %v3892, %v3892
        %v4380 = vsel %vm4369, %v3892, %v4379
        %v4381 = vsel %vm4371, %v3892, %v4380
        %v4382 = vsel %vm4373, %v3892, %v4381
        %v4383 = vsel %vm4375, %v3892, %v4382
        %v4384 = vsel %vm4377, %v3892, %v4383
        %v4385 = vsel %vm4367, %v3971, %v3971
        %v4386 = vsel %vm4369, %v3971, %v4385
        %v4387 = vsel %vm4371, %v3971, %v4386
        %v4388 = vsel %vm4373, %v3971, %v4387
        %v4389 = vsel %vm4375, %v3971, %v4388
        %v4390 = vsel %vm4377, %v3971, %v4389
        %v4391 = vsel %vm4367, %v4050, %v4050
        %v4392 = vsel %vm4369, %v4050, %v4391
        %v4393 = vsel %vm4371, %v4050, %v4392
        %v4394 = vsel %vm4373, %v4050, %v4393
        %v4395 = vsel %vm4375, %v4050, %v4394
        %v4396 = vsel %vm4377, %v4050, %v4395
        %v4397 = vsel %vm4367, %v4129, %v4129
        %v4398 = vsel %vm4369, %v4129, %v4397
        %v4399 = vsel %vm4371, %v4129, %v4398
        %v4400 = vsel %vm4373, %v4129, %v4399
        %v4401 = vsel %vm4375, %v4129, %v4400
        %v4402 = vsel %vm4377, %v4129, %v4401
        %v4403 = vsel %vm4367, %v4208, %v4208
        %v4404 = vsel %vm4369, %v4208, %v4403
        %v4405 = vsel %vm4371, %v4208, %v4404
        %v4406 = vsel %vm4373, %v4208, %v4405
        %v4407 = vsel %vm4375, %v4208, %v4406
        %v4408 = vsel %vm4377, %v4208, %v4407
        %v4409 = vsel %vm4367, %v4287, %v4287
        %v4410 = vsel %vm4369, %v4287, %v4409
        %v4411 = vsel %vm4371, %v4287, %v4410
        %v4412 = vsel %vm4373, %v4287, %v4411
        %v4413 = vsel %vm4375, %v4287, %v4412
        %v4414 = vsel %vm4377, %v4287, %v4413
        %v4415 = vsel %vm4367, %v4366, %v4366
        %v4416 = vsel %vm4369, %v4366, %v4415
        %v4417 = vsel %vm4371, %v4366, %v4416
        %v4418 = vsel %vm4373, %v4366, %v4417
        %v4419 = vsel %vm4375, %v4366, %v4418
        %v4420 = vsel %vm4377, %v4366, %v4419
        %v4429 = vmul.f32 %v3318, %v4378
        %v4430 = vmul.f32 %v3320, %v4384
        %v4431 = vmul.f32 %v3359, %v4390
        %v4432 = vmul.f32 %v3361, %v4396
        %v4433 = vmul.f32 %v3400, %v4402
        %v4434 = vmul.f32 %v3402, %v4408
        %v4435 = vmul.f32 %v3441, %v4414
        %v4436 = vmul.f32 %v3443, %v4420
        %v4437 = vld [vmem:[%s3] sm:$0xf]
        %v4438 = vld [vmem:[%s3 + $0x4] sm:$0xf]
        %v4439 = vld [vmem:[%s3 + $0x8] sm:$0xf]
        %v4440 = vld [vmem:[%s3 + $0xc] sm:$0xf]
        %v4441 = vld [vmem:[%s4] sm:$0xff]
        %v4442 = vld [vmem:[%s4 + $0x8] sm:$0xff]
        %v4443 = vld [vmem:[%s4 + $0x10] sm:$0xff]
        %v4444 = vld [vmem:[%s4 + $0x18] sm:$0xff]
        %v4445 = vpack.c.bf16 %v4431, %v4429
        %v4446 = vpack.c.bf16 %v4432, %v4430
        %v4447 = vpack.c.bf16 %v4435, %v4433
        %v4448 = vpack.c.bf16 %v4436, %v4434
        %4450 = vset.pattern.permute.xlu0 0
        %4451 = vperm.xlu0 %4450, %v4441
        %v4452 = vpop.permute.xlu0 %4451
        %4455 = vset.pattern.permute.xlu0 0
        %4456 = vperm.xlu0 %4455, %v4442
        %v4457 = vpop.permute.xlu0 %4456
        %4460 = vset.pattern.permute.xlu0 0
        %4461 = vperm.xlu0 %4460, %v4443
        %v4462 = vpop.permute.xlu0 %4461
        %4465 = vset.pattern.permute.xlu0 0
        %4466 = vperm.xlu0 %4465, %v4444
        %v4467 = vpop.permute.xlu0 %4466
        %v4473 = vunpack.c.l.b16 %v4437
        %v4474 = vunpack.c.l.b16 %v4438
        %v4475 = vunpack.c.l.b16 %v4439
        %v4476 = vunpack.c.l.b16 %v4440
        %v4477 = vpack.c.b16 %v4474, %v4473
        %v4478 = vpack.c.b16 %v4476, %v4475
        %v4480 = vsel %vm365, %v4477, 0
        %v4483 = vsel %vm365, %v4478, 0
        %4485 = vmatprep.subr.bf16.mxu0 %v4446
        %4486 = vmatpush1.bf16.msra.mxu0 %v4445
        %4487 = vmatprep.subr.bf16.mxu0 %v4448
        %4488 = vmatpush1.bf16.msra.mxu0 %v4447
        %4489 = vmatprep.subr.bf16.mxu0 0
        %4490 = vmatpush1.bf16.msra.mxu0 0
        %4491 = vmatprep.subr.bf16.mxu0 0
        %4492 = vmatpush1.bf16.msra.mxu0 0
        %4493 = vmatprep.subr.bf16.mxu0 0
        %4494 = vmatpush1.bf16.msra.mxu0 0
        %4495 = vmatprep.subr.bf16.mxu0 0
        %4496 = vmatpush1.bf16.msra.mxu0 0
        %4497 = vmatprep.subr.bf16.mxu0 0
        %4498 = vmatpush1.bf16.msra.mxu0 0
        %4499 = vmatprep.subr.bf16.mxu0 0
        %4500 = vmatpush1.bf16.msra.mxu0 0
        %4501 = vmatprep.subr.bf16.mxu0 0
        %4502 = vmatpush1.bf16.msra.mxu0 0
        %4503 = vmatprep.subr.bf16.mxu0 0
        %4504 = vmatpush1.bf16.msra.mxu0 0
        %4505 = vmatprep.subr.bf16.mxu0 0
        %4506 = vmatpush1.bf16.msra.mxu0 0
        %4507 = vmatprep.subr.bf16.mxu0 0
        %4508 = vmatpush1.bf16.msra.mxu0 0
        %4509 = vmatprep.subr.bf16.mxu0 0
        %4510 = vmatpush1.bf16.msra.mxu0 0
        %4511 = vmatprep.subr.bf16.mxu0 0
        %4512 = vmatpush1.bf16.msra.mxu0 0
        %4513 = vmatprep.subr.bf16.mxu0 0
        %4514 = vmatpush1.bf16.msra.mxu0 0
        %4515 = vmatprep.subr.bf16.mxu0 0
        %4516 = vmatpush1.bf16.msra.mxu0 0
        %4517 = vmatprep.mubr.bf16.mxu0 0
        %4518 = vmatmul.mubr.bf16.gmra.mrb[0].mxu0 %v4480
        %v4519 = vpop.f32.mrb[0].mxu0
        %v4520 = vadd.f32 %v4452, %v4519
        %v4521 = vpop.f32.mrb[0].mxu0
        %v4522 = vadd.f32 %v4452, %v4521
        %v4523 = vpop.f32.mrb[0].mxu0
        %v4524 = vadd.f32 %v4457, %v4523
        %v4525 = vpop.f32.mrb[0].mxu0
        %v4526 = vadd.f32 %v4457, %v4525
        %4527 = vmatprep.mubr.bf16.mxu0 0
        %4528 = vmatmul.mubr.bf16.gmra.mrb[0].mxu0 %v4483
        %v4529 = vpop.f32.mrb[0].mxu0
        %v4530 = vadd.f32 %v4462, %v4529
        %v4531 = vpop.f32.mrb[0].mxu0
        %v4532 = vadd.f32 %v4462, %v4531
        %v4533 = vpop.f32.mrb[0].mxu0
        %v4534 = vadd.f32 %v4467, %v4533
        %v4535 = vpop.f32.mrb[0].mxu0
        %v4536 = vadd.f32 %v4467, %v4535
        %4537 = vdwg.mxu0
        %v4538 = vadd.f32 %v4520, %v239
        %v4539 = vadd.f32 %v4522, %v240
        %v4540 = vadd.f32 %v4524, %v241
        %v4541 = vadd.f32 %v4526, %v242
        %v4542 = vadd.f32 %v4530, %v243
        %v4543 = vadd.f32 %v4532, %v244
        %v4544 = vadd.f32 %v4534, %v245
        %v4545 = vadd.f32 %v4536, %v246
        %4546 = vst [vmem:[%s231] sm:$0xff] %v4538
        %4547 = vst [vmem:[%s231 + $0x8] sm:$0xff] %v4539
        %4548 = vst [vmem:[%s231 + $0x10] sm:$0xff] %v4540
        %4549 = vst [vmem:[%s231 + $0x18] sm:$0xff] %v4541
        %4550 = vst [vmem:[%s231 + $0x20] sm:$0xff] %v4542
        %4551 = vst [vmem:[%s231 + $0x28] sm:$0xff] %v4543
        %4552 = vst [vmem:[%s231 + $0x30] sm:$0xff] %v4544
        %4553 = vst [vmem:[%s231 + $0x38] sm:$0xff] %v4545
        %s4554 = sand.u32 %s151, 1
        %s4555 = scalar_lea.sflag [#allocation3], %s4554
        %s4556 = sand.u32 %s151, 1
        %s4557 = smul.addr %s4556, 64
        %s4558 = scalar_lea.vmem [#allocation2], %s4557
        // Predicated region
        $region41: #{tpu_custom_call.1} parent=39 // pred_check
          %p4559 = pneg %p161
        $region42: #{tpu_custom_call.1} parent=39 // pred_check_branch
          %4561 = sbr.rel (%p4559) target = $region44
        $region43: #{tpu_custom_call.1} parent=39 // pred_region
          %s4562 = smul.u32 2, %s24
          %s4564 = ssub.s32 1024, 1024
          %4565 = vsyncadd %s4555, %s4564
          %s4566 = smul.addr %s23, 8
          %s4567 = sadd.s32 %s4562, %s4566
          %s4568 = smul.addr %s4567, 128
          %s4569 = scalar_lea.hbm %s5, %s4568
          %s4570 = sshll.u32 %s4558, 4
          %s4571 = int_to_ptr.vmem [resolvable:$true] %s4570
          %4576 = dma.vmem_to_hbm [thread:$0]  %s4571, 1024, %s4569, %s4555, 256, 256, 16
        $region44: #{tpu_custom_call.1} parent=39 // pred_fallthru
          _
      $region40: #{tpu_custom_call.1} parent=5 // pred_fallthru
        _
      %p4577 = scmp.le.s32.totalorder 2, %s14
      // Predicated region
      $region45: #{tpu_custom_call.1} parent=5 // pred_check
        %p4578 = pneg %p4577
      $region46: #{tpu_custom_call.1} parent=5 // pred_check_branch
        %4580 = sbr.rel (%p4578) target = $region48
      $region47: #{tpu_custom_call.1} parent=5 // pred_region
        %s4581 = ssub.s32 %s14, 2
        // Predicated region
        $region49: #{tpu_custom_call.1} parent=47 // pred_check
          %p4582 = pneg %p167
        $region50: #{tpu_custom_call.1} parent=47 // pred_check_branch
          %4584 = sbr.rel (%p4582) target = $region52
        $region51: #{tpu_custom_call.1} parent=47 // pred_region
          %s4585 = sand.u32 %s152, 1
          %s4586 = scalar_lea.sflag [#allocation3], %s4585
          %s4587 = sand.u32 %s152, 1
          %s4588 = smul.addr %s4587, 64
          %s4589 = scalar_lea.vmem [#allocation2], %s4588
          %4590 = dma.done %s4586, 1024
        $region52: #{tpu_custom_call.1} parent=47 // pred_fallthru
          _
      $region48: #{tpu_custom_call.1} parent=5 // pred_fallthru
        _
    $region6: #{tpu_custom_call.1} parent=1 // loop_footer
      %s18 = sadd.s32 1, %s14
    $region7: #{tpu_custom_call.1} parent=1 // loop_footer_branch
      %13 = sbr.rel target = $region3
    $region8: #{tpu_custom_call.1} parent=1 // loop_exit
      _
    %4591 = vsyncpa [#allocation3], 1
    %s4592 = scalar_lea.sflag [#allocation3], 1
    %4593 = vsyncpa %s4592, 1

</llo_original>
